<compile_context>
chip_gen: v7x
topology: tpu7x:2x2x1
jax: 0.10.0
libtpu: 0.0.40
codegen_flags: <defaults>
</compile_context>

<pallas_src>
import numpy as np
import jax
import jax.numpy as jnp
from jax.experimental import pallas as pl
from jax.experimental.pallas import tpu as pltpu


def _round_up(x, m):
    return (x + m - 1) // m * m


# ---------------------------------------------------------------------------
# Kernel
# ---------------------------------------------------------------------------
def _gate_act(gates, c, Hp):
    """PyTorch LSTMCell gate math, gate order [i, f, g, o]; Hp is 128-lane aligned."""
    i = jax.nn.sigmoid(gates[:, 0 * Hp:1 * Hp])
    f = jax.nn.sigmoid(gates[:, 1 * Hp:2 * Hp])
    g = jnp.tanh(gates[:, 2 * Hp:3 * Hp])
    o = jax.nn.sigmoid(gates[:, 3 * Hp:4 * Hp])
    c_new = f * c + i * g
    h_new = o * jnp.tanh(c_new)
    return h_new, c_new


def _make_lstm_kernel(T, Bp, Hp):
    def kernel(x_ref,          # (T*Bp, I)   time-major, batch-padded input
               w1i_ref,        # (I, 4Hp)    layer-0 input weights (transposed)
               b1_ref,         # (1, 4Hp)    layer-0 combined bias (b_ih + b_hh)
               w1h_ref,        # (Hp, 4Hp)   layer-0 recurrent weights
               w2_ref,         # (2Hp, 4Hp)  layer-1 stacked [W_ih; W_hh]
               b2_ref,         # (1, 4Hp)    layer-1 combined bias
               out_ref):       # (Bp, Hp)    h2 at the last timestep
        # Hoisted, time-parallel input projection: one MXU call for all timesteps.
        gx = (jnp.dot(x_ref[...], w1i_ref[...], preferred_element_type=jnp.float32)
              + b1_ref[...])                                   # (T*Bp, 4Hp)

        # Loop-invariant operands read once (not re-read T times inside the unroll).
        w1h = w1h_ref[...]
        w2 = w2_ref[...]
        b2 = b2_ref[...]

        h1 = jnp.zeros((Bp, Hp), jnp.float32)
        c1 = jnp.zeros((Bp, Hp), jnp.float32)
        h2 = jnp.zeros((Bp, Hp), jnp.float32)
        c2 = jnp.zeros((Bp, Hp), jnp.float32)

        # T is static -> fully unrolled at trace time; Bp = 8 makes every per-step row
        # slice of gx sublane-aligned and static (zero-cost view).
        for t in range(T):
            # Layer 0: only the recurrent matmul remains on the serial critical path.
            g1 = gx[t * Bp:(t + 1) * Bp, :] + jnp.dot(
                h1, w1h, preferred_element_type=jnp.float32)
            h1, c1 = _gate_act(g1, c1, Hp)

            # Inter-layer dropout: identity in eval mode.
            # Layer 1: fused [h1, h2] @ [W_ih; W_hh] -> a single MXU round trip per step.
            xh = jnp.concatenate([h1, h2], axis=-1)            # (Bp, 2Hp)
            g2 = jnp.dot(xh, w2, preferred_element_type=jnp.float32) + b2
            h2, c2 = _gate_act(g2, c2, Hp)

        out_ref[...] = h2

    return kernel


# ---------------------------------------------------------------------------
# Parameters & padding
# ---------------------------------------------------------------------------
def init_params(key, input_size, hidden_size):
    """Deterministic init, PyTorch-style uniform(-1/sqrt(H), 1/sqrt(H)).
    Weights stored transposed as (in_features, 4H); biases combined b_ih + b_hh."""
    H, I = hidden_size, input_size
    k = 1.0 / np.sqrt(H)
    keys = jax.random.split(key, 10)
    u = lambda kk, shape: jax.random.uniform(kk, shape, jnp.float32, -k, k)
    return {
        "w1i": u(keys[0], (I, 4 * H)),
        "w1h": u(keys[1], (H, 4 * H)),
        "b1":  u(keys[2], (1, 4 * H)) + u(keys[3], (1, 4 * H)),
        "w2i": u(keys[4], (H, 4 * H)),
        "w2h": u(keys[5], (H, 4 * H)),
        "b2":  u(keys[6], (1, 4 * H)) + u(keys[7], (1, 4 * H)),
        "wfc": u(keys[8], (H, 1)),
        "bfc": u(keys[9], (1, 1)),
    }


def _pad_gate_cols(w, H, Hp):
    """(rows, 4H) -> (rows, 4Hp): each gate block moved to a lane-aligned offset g*Hp."""
    rows = w.shape[0]
    out = jnp.zeros((rows, 4 * Hp), w.dtype)
    for g in range(4):
        out = out.at[:, g * Hp:g * Hp + H].set(w[:, g * H:(g + 1) * H])
    return out


def _pad_rows(w, rows_p):
    return jnp.pad(w, ((0, rows_p - w.shape[0]), (0, 0)))


def prepare_kernel_params(params, hidden_size, hidden_pad):
    """Pad weights once so every gate occupies a full 128-lane-aligned block.
    Padded rows/cols/biases are zero, so padded hidden units stay exactly 0 in h/c."""
    H, Hp = hidden_size, hidden_pad
    w1i = _pad_gate_cols(params["w1i"], H, Hp)                      # (I, 4Hp)
    b1 = _pad_gate_cols(params["b1"], H, Hp)                        # (1, 4Hp)
    w1h = _pad_rows(_pad_gate_cols(params["w1h"], H, Hp), Hp)       # (Hp, 4Hp)
    w2i = _pad_rows(_pad_gate_cols(params["w2i"], H, Hp), Hp)       # (Hp, 4Hp)
    w2h = _pad_rows(_pad_gate_cols(params["w2h"], H, Hp), Hp)       # (Hp, 4Hp)
    w2 = jnp.concatenate([w2i, w2h], axis=0)                        # (2Hp, 4Hp)
    b2 = _pad_gate_cols(params["b2"], H, Hp)                        # (1, 4Hp)
    return {"w1i": w1i, "b1": b1, "w1h": w1h, "w2": w2, "b2": b2}


# ---------------------------------------------------------------------------
# Forward wrapper
# ---------------------------------------------------------------------------
def stock_lstm_forward(x, params, hidden_size):
    """x: (B, T, I) float32 (batch_first, like PyTorch). Returns (B, 1)."""
    B, T, I = x.shape
    H = hidden_size
    Hp = _round_up(H, 128)     # lane-aligned hidden size
    Bp = _round_up(B, 8)       # sublane-aligned batch

    kp = prepare_kernel_params(params, H, Hp)

    # Time-major, batch-padded, flattened to (T*Bp, I) so the layer-0 input projection
    # is one big matmul and each timestep's row block is sublane-aligned.
    x_tm = jnp.transpose(x, (1, 0, 2))                       # (T, B, I)
    x_tm = jnp.pad(x_tm, ((0, 0), (0, Bp - B), (0, 0)))      # (T, Bp, I)
    x_flat = x_tm.reshape(T * Bp, I)

    vmem = pl.BlockSpec(memory_space=pltpu.MemorySpace.VMEM)
    h2_last = pl.pallas_call(
        _make_lstm_kernel(T, Bp, Hp),
        out_shape=jax.ShapeDtypeStruct((Bp, Hp), jnp.float32),
        in_specs=[vmem] * 6,
        out_specs=vmem,
    )(x_flat, kp["w1i"], kp["b1"], kp["w1h"], kp["w2"], kp["b2"])

    h2 = h2_last[:B, :H]
    # Eval-mode dropout = identity; final Linear(H, 1) is lane-sparse -> do it in XLA.
    return h2 @ params["wfc"] + params["bfc"]


# ---------------------------------------------------------------------------
# Pure-JAX reference (matches PyTorch eval-mode forward)
# ---------------------------------------------------------------------------
def _ref_cell(x_in, h, c, wi, wh, b):
    gates = x_in @ wi + h @ wh + b
    H = h.shape[-1]
    i = jax.nn.sigmoid(gates[:, 0 * H:1 * H])
    f = jax.nn.sigmoid(gates[:, 1 * H:2 * H])
    g = jnp.tanh(gates[:, 2 * H:3 * H])
    o = jax.nn.sigmoid(gates[:, 3 * H:4 * H])
    c_new = f * c + i * g
    return o * jnp.tanh(c_new), c_new


def reference_forward(x, params):
    B, T, I = x.shape
    H = params["w1h"].shape[0]
    h1 = jnp.zeros((B, H), jnp.float32)
    c1 = jnp.zeros((B, H), jnp.float32)
    h2 = jnp.zeros((B, H), jnp.float32)
    c2 = jnp.zeros((B, H), jnp.float32)
    for t in range(T):
        h1, c1 = _ref_cell(x[:, t, :], h1, c1,
                           params["w1i"], params["w1h"], params["b1"])
        h2, c2 = _ref_cell(h1, h2, c2,
                           params["w2i"], params["w2h"], params["b2"])
    return h2 @ params["wfc"] + params["bfc"]


if __name__ == "__main__":
    B, T, I, H = 2, 8, 8, 32  # small shapes: batch=2, seq=8, input_size=8, hidden=32

    key = jax.random.PRNGKey(0)
    kx, kparam = jax.random.split(key)
    x = jax.random.normal(kx, (B, T, I), dtype=jnp.float32)
    params = init_params(kparam, I, H)

    # jit the wrapper so the pad/transpose/fc ops fuse into one XLA program around
    # the pallas_call instead of dispatching op-by-op.
    fwd = jax.jit(stock_lstm_forward, static_argnums=2)

    out = fwd(x, params, H)
    out = jax.block_until_ready(out)

    ref = reference_forward(x, params)
    assert out.shape == (B, 1)
    np.testing.assert_allclose(np.asarray(out), np.asarray(ref), rtol=1e-5, atol=1e-5)

    print("KERNEL_OK")
</pallas_src>

<mosaic_0001>
module attributes {stable_mosaic.version = 11 : i64} {
  func.func @kernel(%arg0: memref<64x8xf32, #tpu.memory_space<vmem>>, %arg1: memref<8x512xf32, #tpu.memory_space<vmem>>, %arg2: memref<1x512xf32, #tpu.memory_space<vmem>>, %arg3: memref<128x512xf32, #tpu.memory_space<vmem>>, %arg4: memref<256x512xf32, #tpu.memory_space<vmem>>, %arg5: memref<1x512xf32, #tpu.memory_space<vmem>>, %arg6: memref<8x128xf32, #tpu.memory_space<vmem>>) attributes {dimension_semantics = [], scalar_prefetch = 0 : i64, scratch_operands = 0 : i64, tpu.core_type = #tpu.core_type<tc>} {
    %c0 = arith.constant 0 : index
    %c0_0 = arith.constant 0 : index
    %0 = vector.load %arg0[%c0, %c0_0] : memref<64x8xf32, #tpu.memory_space<vmem>>, vector<64x8xf32>
    %c0_1 = arith.constant 0 : index
    %c0_2 = arith.constant 0 : index
    %1 = vector.load %arg1[%c0_1, %c0_2] : memref<8x512xf32, #tpu.memory_space<vmem>>, vector<8x512xf32>
    %cst = arith.constant dense<0.000000e+00> : vector<64x512xf32>
    %2 = tpu.matmul %0, %1, %cst {dimension_numbers = #tpu.dot_dimension_numbers<[1], [0], [0], [1], [0, 0, 1, 1], [], []>} : vector<64x8xf32>, vector<8x512xf32>, vector<64x512xf32> -> vector<64x512xf32>
    %c0_3 = arith.constant 0 : index
    %c0_4 = arith.constant 0 : index
    %3 = vector.load %arg2[%c0_3, %c0_4] : memref<1x512xf32, #tpu.memory_space<vmem>>, vector<1x512xf32>
    %4 = vector.broadcast %3 : vector<1x512xf32> to vector<64x512xf32>
    %5 = arith.addf %2, %4 : vector<64x512xf32>
    %c0_5 = arith.constant 0 : index
    %c0_6 = arith.constant 0 : index
    %6 = vector.load %arg3[%c0_5, %c0_6] : memref<128x512xf32, #tpu.memory_space<vmem>>, vector<128x512xf32>
    %c0_7 = arith.constant 0 : index
    %c0_8 = arith.constant 0 : index
    %7 = vector.load %arg4[%c0_7, %c0_8] : memref<256x512xf32, #tpu.memory_space<vmem>>, vector<256x512xf32>
    %c0_9 = arith.constant 0 : index
    %c0_10 = arith.constant 0 : index
    %8 = vector.load %arg5[%c0_9, %c0_10] : memref<1x512xf32, #tpu.memory_space<vmem>>, vector<1x512xf32>
    %cst_11 = arith.constant 0.000000e+00 : f32
    %9 = vector.broadcast %cst_11 : f32 to vector<8x128xf32>
    %cst_12 = arith.constant 0.000000e+00 : f32
    %10 = vector.broadcast %cst_12 : f32 to vector<8x128xf32>
    %cst_13 = arith.constant 0.000000e+00 : f32
    %11 = vector.broadcast %cst_13 : f32 to vector<8x128xf32>
    %cst_14 = arith.constant 0.000000e+00 : f32
    %12 = vector.broadcast %cst_14 : f32 to vector<8x128xf32>
    %13 = vector.extract_strided_slice %5 {offsets = [0, 0], sizes = [8, 512], strides = [1, 1]} : vector<64x512xf32> to vector<8x512xf32>
    %cst_15 = arith.constant dense<0.000000e+00> : vector<8x512xf32>
    %14 = tpu.matmul %9, %6, %cst_15 {dimension_numbers = #tpu.dot_dimension_numbers<[1], [0], [0], [1], [0, 0, 1, 1], [], []>} : vector<8x128xf32>, vector<128x512xf32>, vector<8x512xf32> -> vector<8x512xf32>
    %15 = arith.addf %13, %14 : vector<8x512xf32>
    %16 = vector.extract_strided_slice %15 {offsets = [0, 0], sizes = [8, 128], strides = [1, 1]} : vector<8x512xf32> to vector<8x128xf32>
    %17 = arith.negf %16 : vector<8x128xf32>
    %18 = math.exp %17 : vector<8x128xf32>
    %cst_16 = arith.constant 1.000000e+00 : f32
    %19 = vector.broadcast %cst_16 : f32 to vector<8x128xf32>
    %20 = arith.addf %19, %18 : vector<8x128xf32>
    %21 = arith.divf %19, %20 : vector<8x128xf32>
    %22 = vector.extract_strided_slice %15 {offsets = [0, 128], sizes = [8, 128], strides = [1, 1]} : vector<8x512xf32> to vector<8x128xf32>
    %23 = arith.negf %22 : vector<8x128xf32>
    %24 = math.exp %23 : vector<8x128xf32>
    %cst_17 = arith.constant 1.000000e+00 : f32
    %25 = vector.broadcast %cst_17 : f32 to vector<8x128xf32>
    %26 = arith.addf %25, %24 : vector<8x128xf32>
    %27 = arith.divf %25, %26 : vector<8x128xf32>
    %28 = vector.extract_strided_slice %15 {offsets = [0, 256], sizes = [8, 128], strides = [1, 1]} : vector<8x512xf32> to vector<8x128xf32>
    %29 = math.tanh %28 : vector<8x128xf32>
    %30 = vector.extract_strided_slice %15 {offsets = [0, 384], sizes = [8, 128], strides = [1, 1]} : vector<8x512xf32> to vector<8x128xf32>
    %31 = arith.negf %30 : vector<8x128xf32>
    %32 = math.exp %31 : vector<8x128xf32>
    %cst_18 = arith.constant 1.000000e+00 : f32
    %33 = vector.broadcast %cst_18 : f32 to vector<8x128xf32>
    %34 = arith.addf %33, %32 : vector<8x128xf32>
    %35 = arith.divf %33, %34 : vector<8x128xf32>
    %36 = arith.mulf %27, %10 : vector<8x128xf32>
    %37 = arith.mulf %21, %29 : vector<8x128xf32>
    %38 = arith.addf %36, %37 : vector<8x128xf32>
    %39 = math.tanh %38 : vector<8x128xf32>
    %40 = arith.mulf %35, %39 : vector<8x128xf32>
    %41 = tpu.concatenate %40, %11 in 1 : vector<8x128xf32>, vector<8x128xf32> -> vector<8x256xf32>
    %cst_19 = arith.constant dense<0.000000e+00> : vector<8x512xf32>
    %42 = tpu.matmul %41, %7, %cst_19 {dimension_numbers = #tpu.dot_dimension_numbers<[1], [0], [0], [1], [0, 0, 1, 1], [], []>} : vector<8x256xf32>, vector<256x512xf32>, vector<8x512xf32> -> vector<8x512xf32>
    %43 = vector.broadcast %8 : vector<1x512xf32> to vector<8x512xf32>
    %44 = arith.addf %42, %43 : vector<8x512xf32>
    %45 = vector.extract_strided_slice %44 {offsets = [0, 0], sizes = [8, 128], strides = [1, 1]} : vector<8x512xf32> to vector<8x128xf32>
    %46 = arith.negf %45 : vector<8x128xf32>
    %47 = math.exp %46 : vector<8x128xf32>
    %cst_20 = arith.constant 1.000000e+00 : f32
    %48 = vector.broadcast %cst_20 : f32 to vector<8x128xf32>
    %49 = arith.addf %48, %47 : vector<8x128xf32>
    %50 = arith.divf %48, %49 : vector<8x128xf32>
    %51 = vector.extract_strided_slice %44 {offsets = [0, 128], sizes = [8, 128], strides = [1, 1]} : vector<8x512xf32> to vector<8x128xf32>
    %52 = arith.negf %51 : vector<8x128xf32>
    %53 = math.exp %52 : vector<8x128xf32>
    %cst_21 = arith.constant 1.000000e+00 : f32
    %54 = vector.broadcast %cst_21 : f32 to vector<8x128xf32>
    %55 = arith.addf %54, %53 : vector<8x128xf32>
    %56 = arith.divf %54, %55 : vector<8x128xf32>
    %57 = vector.extract_strided_slice %44 {offsets = [0, 256], sizes = [8, 128], strides = [1, 1]} : vector<8x512xf32> to vector<8x128xf32>
    %58 = math.tanh %57 : vector<8x128xf32>
    %59 = vector.extract_strided_slice %44 {offsets = [0, 384], sizes = [8, 128], strides = [1, 1]} : vector<8x512xf32> to vector<8x128xf32>
    %60 = arith.negf %59 : vector<8x128xf32>
    %61 = math.exp %60 : vector<8x128xf32>
    %cst_22 = arith.constant 1.000000e+00 : f32
    %62 = vector.broadcast %cst_22 : f32 to vector<8x128xf32>
    %63 = arith.addf %62, %61 : vector<8x128xf32>
    %64 = arith.divf %62, %63 : vector<8x128xf32>
    %65 = arith.mulf %56, %12 : vector<8x128xf32>
    %66 = arith.mulf %50, %58 : vector<8x128xf32>
    %67 = arith.addf %65, %66 : vector<8x128xf32>
    %68 = math.tanh %67 : vector<8x128xf32>
    %69 = arith.mulf %64, %68 : vector<8x128xf32>
    %70 = vector.extract_strided_slice %5 {offsets = [8, 0], sizes = [8, 512], strides = [1, 1]} : vector<64x512xf32> to vector<8x512xf32>
    %cst_23 = arith.constant dense<0.000000e+00> : vector<8x512xf32>
    %71 = tpu.matmul %40, %6, %cst_23 {dimension_numbers = #tpu.dot_dimension_numbers<[1], [0], [0], [1], [0, 0, 1, 1], [], []>} : vector<8x128xf32>, vector<128x512xf32>, vector<8x512xf32> -> vector<8x512xf32>
    %72 = arith.addf %70, %71 : vector<8x512xf32>
    %73 = vector.extract_strided_slice %72 {offsets = [0, 0], sizes = [8, 128], strides = [1, 1]} : vector<8x512xf32> to vector<8x128xf32>
    %74 = arith.negf %73 : vector<8x128xf32>
    %75 = math.exp %74 : vector<8x128xf32>
    %cst_24 = arith.constant 1.000000e+00 : f32
    %76 = vector.broadcast %cst_24 : f32 to vector<8x128xf32>
    %77 = arith.addf %76, %75 : vector<8x128xf32>
    %78 = arith.divf %76, %77 : vector<8x128xf32>
    %79 = vector.extract_strided_slice %72 {offsets = [0, 128], sizes = [8, 128], strides = [1, 1]} : vector<8x512xf32> to vector<8x128xf32>
    %80 = arith.negf %79 : vector<8x128xf32>
    %81 = math.exp %80 : vector<8x128xf32>
    %cst_25 = arith.constant 1.000000e+00 : f32
    %82 = vector.broadcast %cst_25 : f32 to vector<8x128xf32>
    %83 = arith.addf %82, %81 : vector<8x128xf32>
    %84 = arith.divf %82, %83 : vector<8x128xf32>
    %85 = vector.extract_strided_slice %72 {offsets = [0, 256], sizes = [8, 128], strides = [1, 1]} : vector<8x512xf32> to vector<8x128xf32>
    %86 = math.tanh %85 : vector<8x128xf32>
    %87 = vector.extract_strided_slice %72 {offsets = [0, 384], sizes = [8, 128], strides = [1, 1]} : vector<8x512xf32> to vector<8x128xf32>
    %88 = arith.negf %87 : vector<8x128xf32>
    %89 = math.exp %88 : vector<8x128xf32>
    %cst_26 = arith.constant 1.000000e+00 : f32
    %90 = vector.broadcast %cst_26 : f32 to vector<8x128xf32>
    %91 = arith.addf %90, %89 : vector<8x128xf32>
    %92 = arith.divf %90, %91 : vector<8x128xf32>
    %93 = arith.mulf %84, %38 : vector<8x128xf32>
    %94 = arith.mulf %78, %86 : vector<8x128xf32>
    %95 = arith.addf %93, %94 : vector<8x128xf32>
    %96 = math.tanh %95 : vector<8x128xf32>
    %97 = arith.mulf %92, %96 : vector<8x128xf32>
    %98 = tpu.concatenate %97, %69 in 1 : vector<8x128xf32>, vector<8x128xf32> -> vector<8x256xf32>
    %cst_27 = arith.constant dense<0.000000e+00> : vector<8x512xf32>
    %99 = tpu.matmul %98, %7, %cst_27 {dimension_numbers = #tpu.dot_dimension_numbers<[1], [0], [0], [1], [0, 0, 1, 1], [], []>} : vector<8x256xf32>, vector<256x512xf32>, vector<8x512xf32> -> vector<8x512xf32>
    %100 = vector.broadcast %8 : vector<1x512xf32> to vector<8x512xf32>
    %101 = arith.addf %99, %100 : vector<8x512xf32>
    %102 = vector.extract_strided_slice %101 {offsets = [0, 0], sizes = [8, 128], strides = [1, 1]} : vector<8x512xf32> to vector<8x128xf32>
    %103 = arith.negf %102 : vector<8x128xf32>
    %104 = math.exp %103 : vector<8x128xf32>
    %cst_28 = arith.constant 1.000000e+00 : f32
    %105 = vector.broadcast %cst_28 : f32 to vector<8x128xf32>
    %106 = arith.addf %105, %104 : vector<8x128xf32>
    %107 = arith.divf %105, %106 : vector<8x128xf32>
    %108 = vector.extract_strided_slice %101 {offsets = [0, 128], sizes = [8, 128], strides = [1, 1]} : vector<8x512xf32> to vector<8x128xf32>
    %109 = arith.negf %108 : vector<8x128xf32>
    %110 = math.exp %109 : vector<8x128xf32>
    %cst_29 = arith.constant 1.000000e+00 : f32
    %111 = vector.broadcast %cst_29 : f32 to vector<8x128xf32>
    %112 = arith.addf %111, %110 : vector<8x128xf32>
    %113 = arith.divf %111, %112 : vector<8x128xf32>
    %114 = vector.extract_strided_slice %101 {offsets = [0, 256], sizes = [8, 128], strides = [1, 1]} : vector<8x512xf32> to vector<8x128xf32>
    %115 = math.tanh %114 : vector<8x128xf32>
    %116 = vector.extract_strided_slice %101 {offsets = [0, 384], sizes = [8, 128], strides = [1, 1]} : vector<8x512xf32> to vector<8x128xf32>
    %117 = arith.negf %116 : vector<8x128xf32>
    %118 = math.exp %117 : vector<8x128xf32>
    %cst_30 = arith.constant 1.000000e+00 : f32
    %119 = vector.broadcast %cst_30 : f32 to vector<8x128xf32>
    %120 = arith.addf %119, %118 : vector<8x128xf32>
    %121 = arith.divf %119, %120 : vector<8x128xf32>
    %122 = arith.mulf %113, %67 : vector<8x128xf32>
    %123 = arith.mulf %107, %115 : vector<8x128xf32>
    %124 = arith.addf %122, %123 : vector<8x128xf32>
    %125 = math.tanh %124 : vector<8x128xf32>
    %126 = arith.mulf %121, %125 : vector<8x128xf32>
    %127 = vector.extract_strided_slice %5 {offsets = [16, 0], sizes = [8, 512], strides = [1, 1]} : vector<64x512xf32> to vector<8x512xf32>
    %cst_31 = arith.constant dense<0.000000e+00> : vector<8x512xf32>
    %128 = tpu.matmul %97, %6, %cst_31 {dimension_numbers = #tpu.dot_dimension_numbers<[1], [0], [0], [1], [0, 0, 1, 1], [], []>} : vector<8x128xf32>, vector<128x512xf32>, vector<8x512xf32> -> vector<8x512xf32>
    %129 = arith.addf %127, %128 : vector<8x512xf32>
    %130 = vector.extract_strided_slice %129 {offsets = [0, 0], sizes = [8, 128], strides = [1, 1]} : vector<8x512xf32> to vector<8x128xf32>
    %131 = arith.negf %130 : vector<8x128xf32>
    %132 = math.exp %131 : vector<8x128xf32>
    %cst_32 = arith.constant 1.000000e+00 : f32
    %133 = vector.broadcast %cst_32 : f32 to vector<8x128xf32>
    %134 = arith.addf %133, %132 : vector<8x128xf32>
    %135 = arith.divf %133, %134 : vector<8x128xf32>
    %136 = vector.extract_strided_slice %129 {offsets = [0, 128], sizes = [8, 128], strides = [1, 1]} : vector<8x512xf32> to vector<8x128xf32>
    %137 = arith.negf %136 : vector<8x128xf32>
    %138 = math.exp %137 : vector<8x128xf32>
    %cst_33 = arith.constant 1.000000e+00 : f32
    %139 = vector.broadcast %cst_33 : f32 to vector<8x128xf32>
    %140 = arith.addf %139, %138 : vector<8x128xf32>
    %141 = arith.divf %139, %140 : vector<8x128xf32>
    %142 = vector.extract_strided_slice %129 {offsets = [0, 256], sizes = [8, 128], strides = [1, 1]} : vector<8x512xf32> to vector<8x128xf32>
    %143 = math.tanh %142 : vector<8x128xf32>
    %144 = vector.extract_strided_slice %129 {offsets = [0, 384], sizes = [8, 128], strides = [1, 1]} : vector<8x512xf32> to vector<8x128xf32>
    %145 = arith.negf %144 : vector<8x128xf32>
    %146 = math.exp %145 : vector<8x128xf32>
    %cst_34 = arith.constant 1.000000e+00 : f32
    %147 = vector.broadcast %cst_34 : f32 to vector<8x128xf32>
    %148 = arith.addf %147, %146 : vector<8x128xf32>
    %149 = arith.divf %147, %148 : vector<8x128xf32>
    %150 = arith.mulf %141, %95 : vector<8x128xf32>
    %151 = arith.mulf %135, %143 : vector<8x128xf32>
    %152 = arith.addf %150, %151 : vector<8x128xf32>
    %153 = math.tanh %152 : vector<8x128xf32>
    %154 = arith.mulf %149, %153 : vector<8x128xf32>
    %155 = tpu.concatenate %154, %126 in 1 : vector<8x128xf32>, vector<8x128xf32> -> vector<8x256xf32>
    %cst_35 = arith.constant dense<0.000000e+00> : vector<8x512xf32>
    %156 = tpu.matmul %155, %7, %cst_35 {dimension_numbers = #tpu.dot_dimension_numbers<[1], [0], [0], [1], [0, 0, 1, 1], [], []>} : vector<8x256xf32>, vector<256x512xf32>, vector<8x512xf32> -> vector<8x512xf32>
    %157 = vector.broadcast %8 : vector<1x512xf32> to vector<8x512xf32>
    %158 = arith.addf %156, %157 : vector<8x512xf32>
    %159 = vector.extract_strided_slice %158 {offsets = [0, 0], sizes = [8, 128], strides = [1, 1]} : vector<8x512xf32> to vector<8x128xf32>
    %160 = arith.negf %159 : vector<8x128xf32>
    %161 = math.exp %160 : vector<8x128xf32>
    %cst_36 = arith.constant 1.000000e+00 : f32
    %162 = vector.broadcast %cst_36 : f32 to vector<8x128xf32>
    %163 = arith.addf %162, %161 : vector<8x128xf32>
    %164 = arith.divf %162, %163 : vector<8x128xf32>
    %165 = vector.extract_strided_slice %158 {offsets = [0, 128], sizes = [8, 128], strides = [1, 1]} : vector<8x512xf32> to vector<8x128xf32>
    %166 = arith.negf %165 : vector<8x128xf32>
    %167 = math.exp %166 : vector<8x128xf32>
    %cst_37 = arith.constant 1.000000e+00 : f32
    %168 = vector.broadcast %cst_37 : f32 to vector<8x128xf32>
    %169 = arith.addf %168, %167 : vector<8x128xf32>
    %170 = arith.divf %168, %169 : vector<8x128xf32>
    %171 = vector.extract_strided_slice %158 {offsets = [0, 256], sizes = [8, 128], strides = [1, 1]} : vector<8x512xf32> to vector<8x128xf32>
    %172 = math.tanh %171 : vector<8x128xf32>
    %173 = vector.extract_strided_slice %158 {offsets = [0, 384], sizes = [8, 128], strides = [1, 1]} : vector<8x512xf32> to vector<8x128xf32>
    %174 = arith.negf %173 : vector<8x128xf32>
    %175 = math.exp %174 : vector<8x128xf32>
    %cst_38 = arith.constant 1.000000e+00 : f32
    %176 = vector.broadcast %cst_38 : f32 to vector<8x128xf32>
    %177 = arith.addf %176, %175 : vector<8x128xf32>
    %178 = arith.divf %176, %177 : vector<8x128xf32>
    %179 = arith.mulf %170, %124 : vector<8x128xf32>
    %180 = arith.mulf %164, %172 : vector<8x128xf32>
    %181 = arith.addf %179, %180 : vector<8x128xf32>
    %182 = math.tanh %181 : vector<8x128xf32>
    %183 = arith.mulf %178, %182 : vector<8x128xf32>
    %184 = vector.extract_strided_slice %5 {offsets = [24, 0], sizes = [8, 512], strides = [1, 1]} : vector<64x512xf32> to vector<8x512xf32>
    %cst_39 = arith.constant dense<0.000000e+00> : vector<8x512xf32>
    %185 = tpu.matmul %154, %6, %cst_39 {dimension_numbers = #tpu.dot_dimension_numbers<[1], [0], [0], [1], [0, 0, 1, 1], [], []>} : vector<8x128xf32>, vector<128x512xf32>, vector<8x512xf32> -> vector<8x512xf32>
    %186 = arith.addf %184, %185 : vector<8x512xf32>
    %187 = vector.extract_strided_slice %186 {offsets = [0, 0], sizes = [8, 128], strides = [1, 1]} : vector<8x512xf32> to vector<8x128xf32>
    %188 = arith.negf %187 : vector<8x128xf32>
    %189 = math.exp %188 : vector<8x128xf32>
    %cst_40 = arith.constant 1.000000e+00 : f32
    %190 = vector.broadcast %cst_40 : f32 to vector<8x128xf32>
    %191 = arith.addf %190, %189 : vector<8x128xf32>
    %192 = arith.divf %190, %191 : vector<8x128xf32>
    %193 = vector.extract_strided_slice %186 {offsets = [0, 128], sizes = [8, 128], strides = [1, 1]} : vector<8x512xf32> to vector<8x128xf32>
    %194 = arith.negf %193 : vector<8x128xf32>
    %195 = math.exp %194 : vector<8x128xf32>
    %cst_41 = arith.constant 1.000000e+00 : f32
    %196 = vector.broadcast %cst_41 : f32 to vector<8x128xf32>
    %197 = arith.addf %196, %195 : vector<8x128xf32>
    %198 = arith.divf %196, %197 : vector<8x128xf32>
    %199 = vector.extract_strided_slice %186 {offsets = [0, 256], sizes = [8, 128], strides = [1, 1]} : vector<8x512xf32> to vector<8x128xf32>
    %200 = math.tanh %199 : vector<8x128xf32>
    %201 = vector.extract_strided_slice %186 {offsets = [0, 384], sizes = [8, 128], strides = [1, 1]} : vector<8x512xf32> to vector<8x128xf32>
    %202 = arith.negf %201 : vector<8x128xf32>
    %203 = math.exp %202 : vector<8x128xf32>
    %cst_42 = arith.constant 1.000000e+00 : f32
    %204 = vector.broadcast %cst_42 : f32 to vector<8x128xf32>
    %205 = arith.addf %204, %203 : vector<8x128xf32>
    %206 = arith.divf %204, %205 : vector<8x128xf32>
    %207 = arith.mulf %198, %152 : vector<8x128xf32>
    %208 = arith.mulf %192, %200 : vector<8x128xf32>
    %209 = arith.addf %207, %208 : vector<8x128xf32>
    %210 = math.tanh %209 : vector<8x128xf32>
    %211 = arith.mulf %206, %210 : vector<8x128xf32>
    %212 = tpu.concatenate %211, %183 in 1 : vector<8x128xf32>, vector<8x128xf32> -> vector<8x256xf32>
    %cst_43 = arith.constant dense<0.000000e+00> : vector<8x512xf32>
    %213 = tpu.matmul %212, %7, %cst_43 {dimension_numbers = #tpu.dot_dimension_numbers<[1], [0], [0], [1], [0, 0, 1, 1], [], []>} : vector<8x256xf32>, vector<256x512xf32>, vector<8x512xf32> -> vector<8x512xf32>
    %214 = vector.broadcast %8 : vector<1x512xf32> to vector<8x512xf32>
    %215 = arith.addf %213, %214 : vector<8x512xf32>
    %216 = vector.extract_strided_slice %215 {offsets = [0, 0], sizes = [8, 128], strides = [1, 1]} : vector<8x512xf32> to vector<8x128xf32>
    %217 = arith.negf %216 : vector<8x128xf32>
    %218 = math.exp %217 : vector<8x128xf32>
    %cst_44 = arith.constant 1.000000e+00 : f32
    %219 = vector.broadcast %cst_44 : f32 to vector<8x128xf32>
    %220 = arith.addf %219, %218 : vector<8x128xf32>
    %221 = arith.divf %219, %220 : vector<8x128xf32>
    %222 = vector.extract_strided_slice %215 {offsets = [0, 128], sizes = [8, 128], strides = [1, 1]} : vector<8x512xf32> to vector<8x128xf32>
    %223 = arith.negf %222 : vector<8x128xf32>
    %224 = math.exp %223 : vector<8x128xf32>
    %cst_45 = arith.constant 1.000000e+00 : f32
    %225 = vector.broadcast %cst_45 : f32 to vector<8x128xf32>
    %226 = arith.addf %225, %224 : vector<8x128xf32>
    %227 = arith.divf %225, %226 : vector<8x128xf32>
    %228 = vector.extract_strided_slice %215 {offsets = [0, 256], sizes = [8, 128], strides = [1, 1]} : vector<8x512xf32> to vector<8x128xf32>
    %229 = math.tanh %228 : vector<8x128xf32>
    %230 = vector.extract_strided_slice %215 {offsets = [0, 384], sizes = [8, 128], strides = [1, 1]} : vector<8x512xf32> to vector<8x128xf32>
    %231 = arith.negf %230 : vector<8x128xf32>
    %232 = math.exp %231 : vector<8x128xf32>
    %cst_46 = arith.constant 1.000000e+00 : f32
    %233 = vector.broadcast %cst_46 : f32 to vector<8x128xf32>
    %234 = arith.addf %233, %232 : vector<8x128xf32>
    %235 = arith.divf %233, %234 : vector<8x128xf32>
    %236 = arith.mulf %227, %181 : vector<8x128xf32>
    %237 = arith.mulf %221, %229 : vector<8x128xf32>
    %238 = arith.addf %236, %237 : vector<8x128xf32>
    %239 = math.tanh %238 : vector<8x128xf32>
    %240 = arith.mulf %235, %239 : vector<8x128xf32>
    %241 = vector.extract_strided_slice %5 {offsets = [32, 0], sizes = [8, 512], strides = [1, 1]} : vector<64x512xf32> to vector<8x512xf32>
    %cst_47 = arith.constant dense<0.000000e+00> : vector<8x512xf32>
    %242 = tpu.matmul %211, %6, %cst_47 {dimension_numbers = #tpu.dot_dimension_numbers<[1], [0], [0], [1], [0, 0, 1, 1], [], []>} : vector<8x128xf32>, vector<128x512xf32>, vector<8x512xf32> -> vector<8x512xf32>
    %243 = arith.addf %241, %242 : vector<8x512xf32>
    %244 = vector.extract_strided_slice %243 {offsets = [0, 0], sizes = [8, 128], strides = [1, 1]} : vector<8x512xf32> to vector<8x128xf32>
    %245 = arith.negf %244 : vector<8x128xf32>
    %246 = math.exp %245 : vector<8x128xf32>
    %cst_48 = arith.constant 1.000000e+00 : f32
    %247 = vector.broadcast %cst_48 : f32 to vector<8x128xf32>
    %248 = arith.addf %247, %246 : vector<8x128xf32>
    %249 = arith.divf %247, %248 : vector<8x128xf32>
    %250 = vector.extract_strided_slice %243 {offsets = [0, 128], sizes = [8, 128], strides = [1, 1]} : vector<8x512xf32> to vector<8x128xf32>
    %251 = arith.negf %250 : vector<8x128xf32>
    %252 = math.exp %251 : vector<8x128xf32>
    %cst_49 = arith.constant 1.000000e+00 : f32
    %253 = vector.broadcast %cst_49 : f32 to vector<8x128xf32>
    %254 = arith.addf %253, %252 : vector<8x128xf32>
    %255 = arith.divf %253, %254 : vector<8x128xf32>
    %256 = vector.extract_strided_slice %243 {offsets = [0, 256], sizes = [8, 128], strides = [1, 1]} : vector<8x512xf32> to vector<8x128xf32>
    %257 = math.tanh %256 : vector<8x128xf32>
    %258 = vector.extract_strided_slice %243 {offsets = [0, 384], sizes = [8, 128], strides = [1, 1]} : vector<8x512xf32> to vector<8x128xf32>
    %259 = arith.negf %258 : vector<8x128xf32>
    %260 = math.exp %259 : vector<8x128xf32>
    %cst_50 = arith.constant 1.000000e+00 : f32
    %261 = vector.broadcast %cst_50 : f32 to vector<8x128xf32>
    %262 = arith.addf %261, %260 : vector<8x128xf32>
    %263 = arith.divf %261, %262 : vector<8x128xf32>
    %264 = arith.mulf %255, %209 : vector<8x128xf32>
    %265 = arith.mulf %249, %257 : vector<8x128xf32>
    %266 = arith.addf %264, %265 : vector<8x128xf32>
    %267 = math.tanh %266 : vector<8x128xf32>
    %268 = arith.mulf %263, %267 : vector<8x128xf32>
    %269 = tpu.concatenate %268, %240 in 1 : vector<8x128xf32>, vector<8x128xf32> -> vector<8x256xf32>
    %cst_51 = arith.constant dense<0.000000e+00> : vector<8x512xf32>
    %270 = tpu.matmul %269, %7, %cst_51 {dimension_numbers = #tpu.dot_dimension_numbers<[1], [0], [0], [1], [0, 0, 1, 1], [], []>} : vector<8x256xf32>, vector<256x512xf32>, vector<8x512xf32> -> vector<8x512xf32>
    %271 = vector.broadcast %8 : vector<1x512xf32> to vector<8x512xf32>
    %272 = arith.addf %270, %271 : vector<8x512xf32>
    %273 = vector.extract_strided_slice %272 {offsets = [0, 0], sizes = [8, 128], strides = [1, 1]} : vector<8x512xf32> to vector<8x128xf32>
    %274 = arith.negf %273 : vector<8x128xf32>
    %275 = math.exp %274 : vector<8x128xf32>
    %cst_52 = arith.constant 1.000000e+00 : f32
    %276 = vector.broadcast %cst_52 : f32 to vector<8x128xf32>
    %277 = arith.addf %276, %275 : vector<8x128xf32>
    %278 = arith.divf %276, %277 : vector<8x128xf32>
    %279 = vector.extract_strided_slice %272 {offsets = [0, 128], sizes = [8, 128], strides = [1, 1]} : vector<8x512xf32> to vector<8x128xf32>
    %280 = arith.negf %279 : vector<8x128xf32>
    %281 = math.exp %280 : vector<8x128xf32>
    %cst_53 = arith.constant 1.000000e+00 : f32
    %282 = vector.broadcast %cst_53 : f32 to vector<8x128xf32>
    %283 = arith.addf %282, %281 : vector<8x128xf32>
    %284 = arith.divf %282, %283 : vector<8x128xf32>
    %285 = vector.extract_strided_slice %272 {offsets = [0, 256], sizes = [8, 128], strides = [1, 1]} : vector<8x512xf32> to vector<8x128xf32>
    %286 = math.tanh %285 : vector<8x128xf32>
    %287 = vector.extract_strided_slice %272 {offsets = [0, 384], sizes = [8, 128], strides = [1, 1]} : vector<8x512xf32> to vector<8x128xf32>
    %288 = arith.negf %287 : vector<8x128xf32>
    %289 = math.exp %288 : vector<8x128xf32>
    %cst_54 = arith.constant 1.000000e+00 : f32
    %290 = vector.broadcast %cst_54 : f32 to vector<8x128xf32>
    %291 = arith.addf %290, %289 : vector<8x128xf32>
    %292 = arith.divf %290, %291 : vector<8x128xf32>
    %293 = arith.mulf %284, %238 : vector<8x128xf32>
    %294 = arith.mulf %278, %286 : vector<8x128xf32>
    %295 = arith.addf %293, %294 : vector<8x128xf32>
    %296 = math.tanh %295 : vector<8x128xf32>
    %297 = arith.mulf %292, %296 : vector<8x128xf32>
    %298 = vector.extract_strided_slice %5 {offsets = [40, 0], sizes = [8, 512], strides = [1, 1]} : vector<64x512xf32> to vector<8x512xf32>
    %cst_55 = arith.constant dense<0.000000e+00> : vector<8x512xf32>
    %299 = tpu.matmul %268, %6, %cst_55 {dimension_numbers = #tpu.dot_dimension_numbers<[1], [0], [0], [1], [0, 0, 1, 1], [], []>} : vector<8x128xf32>, vector<128x512xf32>, vector<8x512xf32> -> vector<8x512xf32>
    %300 = arith.addf %298, %299 : vector<8x512xf32>
    %301 = vector.extract_strided_slice %300 {offsets = [0, 0], sizes = [8, 128], strides = [1, 1]} : vector<8x512xf32> to vector<8x128xf32>
    %302 = arith.negf %301 : vector<8x128xf32>
    %303 = math.exp %302 : vector<8x128xf32>
    %cst_56 = arith.constant 1.000000e+00 : f32
    %304 = vector.broadcast %cst_56 : f32 to vector<8x128xf32>
    %305 = arith.addf %304, %303 : vector<8x128xf32>
    %306 = arith.divf %304, %305 : vector<8x128xf32>
    %307 = vector.extract_strided_slice %300 {offsets = [0, 128], sizes = [8, 128], strides = [1, 1]} : vector<8x512xf32> to vector<8x128xf32>
    %308 = arith.negf %307 : vector<8x128xf32>
    %309 = math.exp %308 : vector<8x128xf32>
    %cst_57 = arith.constant 1.000000e+00 : f32
    %310 = vector.broadcast %cst_57 : f32 to vector<8x128xf32>
    %311 = arith.addf %310, %309 : vector<8x128xf32>
    %312 = arith.divf %310, %311 : vector<8x128xf32>
    %313 = vector.extract_strided_slice %300 {offsets = [0, 256], sizes = [8, 128], strides = [1, 1]} : vector<8x512xf32> to vector<8x128xf32>
    %314 = math.tanh %313 : vector<8x128xf32>
    %315 = vector.extract_strided_slice %300 {offsets = [0, 384], sizes = [8, 128], strides = [1, 1]} : vector<8x512xf32> to vector<8x128xf32>
    %316 = arith.negf %315 : vector<8x128xf32>
    %317 = math.exp %316 : vector<8x128xf32>
    %cst_58 = arith.constant 1.000000e+00 : f32
    %318 = vector.broadcast %cst_58 : f32 to vector<8x128xf32>
    %319 = arith.addf %318, %317 : vector<8x128xf32>
    %320 = arith.divf %318, %319 : vector<8x128xf32>
    %321 = arith.mulf %312, %266 : vector<8x128xf32>
    %322 = arith.mulf %306, %314 : vector<8x128xf32>
    %323 = arith.addf %321, %322 : vector<8x128xf32>
    %324 = math.tanh %323 : vector<8x128xf32>
    %325 = arith.mulf %320, %324 : vector<8x128xf32>
    %326 = tpu.concatenate %325, %297 in 1 : vector<8x128xf32>, vector<8x128xf32> -> vector<8x256xf32>
    %cst_59 = arith.constant dense<0.000000e+00> : vector<8x512xf32>
    %327 = tpu.matmul %326, %7, %cst_59 {dimension_numbers = #tpu.dot_dimension_numbers<[1], [0], [0], [1], [0, 0, 1, 1], [], []>} : vector<8x256xf32>, vector<256x512xf32>, vector<8x512xf32> -> vector<8x512xf32>
    %328 = vector.broadcast %8 : vector<1x512xf32> to vector<8x512xf32>
    %329 = arith.addf %327, %328 : vector<8x512xf32>
    %330 = vector.extract_strided_slice %329 {offsets = [0, 0], sizes = [8, 128], strides = [1, 1]} : vector<8x512xf32> to vector<8x128xf32>
    %331 = arith.negf %330 : vector<8x128xf32>
    %332 = math.exp %331 : vector<8x128xf32>
    %cst_60 = arith.constant 1.000000e+00 : f32
    %333 = vector.broadcast %cst_60 : f32 to vector<8x128xf32>
    %334 = arith.addf %333, %332 : vector<8x128xf32>
    %335 = arith.divf %333, %334 : vector<8x128xf32>
    %336 = vector.extract_strided_slice %329 {offsets = [0, 128], sizes = [8, 128], strides = [1, 1]} : vector<8x512xf32> to vector<8x128xf32>
    %337 = arith.negf %336 : vector<8x128xf32>
    %338 = math.exp %337 : vector<8x128xf32>
    %cst_61 = arith.constant 1.000000e+00 : f32
    %339 = vector.broadcast %cst_61 : f32 to vector<8x128xf32>
    %340 = arith.addf %339, %338 : vector<8x128xf32>
    %341 = arith.divf %339, %340 : vector<8x128xf32>
    %342 = vector.extract_strided_slice %329 {offsets = [0, 256], sizes = [8, 128], strides = [1, 1]} : vector<8x512xf32> to vector<8x128xf32>
    %343 = math.tanh %342 : vector<8x128xf32>
    %344 = vector.extract_strided_slice %329 {offsets = [0, 384], sizes = [8, 128], strides = [1, 1]} : vector<8x512xf32> to vector<8x128xf32>
    %345 = arith.negf %344 : vector<8x128xf32>
    %346 = math.exp %345 : vector<8x128xf32>
    %cst_62 = arith.constant 1.000000e+00 : f32
    %347 = vector.broadcast %cst_62 : f32 to vector<8x128xf32>
    %348 = arith.addf %347, %346 : vector<8x128xf32>
    %349 = arith.divf %347, %348 : vector<8x128xf32>
    %350 = arith.mulf %341, %295 : vector<8x128xf32>
    %351 = arith.mulf %335, %343 : vector<8x128xf32>
    %352 = arith.addf %350, %351 : vector<8x128xf32>
    %353 = math.tanh %352 : vector<8x128xf32>
    %354 = arith.mulf %349, %353 : vector<8x128xf32>
    %355 = vector.extract_strided_slice %5 {offsets = [48, 0], sizes = [8, 512], strides = [1, 1]} : vector<64x512xf32> to vector<8x512xf32>
    %cst_63 = arith.constant dense<0.000000e+00> : vector<8x512xf32>
    %356 = tpu.matmul %325, %6, %cst_63 {dimension_numbers = #tpu.dot_dimension_numbers<[1], [0], [0], [1], [0, 0, 1, 1], [], []>} : vector<8x128xf32>, vector<128x512xf32>, vector<8x512xf32> -> vector<8x512xf32>
    %357 = arith.addf %355, %356 : vector<8x512xf32>
    %358 = vector.extract_strided_slice %357 {offsets = [0, 0], sizes = [8, 128], strides = [1, 1]} : vector<8x512xf32> to vector<8x128xf32>
    %359 = arith.negf %358 : vector<8x128xf32>
    %360 = math.exp %359 : vector<8x128xf32>
    %cst_64 = arith.constant 1.000000e+00 : f32
    %361 = vector.broadcast %cst_64 : f32 to vector<8x128xf32>
    %362 = arith.addf %361, %360 : vector<8x128xf32>
    %363 = arith.divf %361, %362 : vector<8x128xf32>
    %364 = vector.extract_strided_slice %357 {offsets = [0, 128], sizes = [8, 128], strides = [1, 1]} : vector<8x512xf32> to vector<8x128xf32>
    %365 = arith.negf %364 : vector<8x128xf32>
    %366 = math.exp %365 : vector<8x128xf32>
    %cst_65 = arith.constant 1.000000e+00 : f32
    %367 = vector.broadcast %cst_65 : f32 to vector<8x128xf32>
    %368 = arith.addf %367, %366 : vector<8x128xf32>
    %369 = arith.divf %367, %368 : vector<8x128xf32>
    %370 = vector.extract_strided_slice %357 {offsets = [0, 256], sizes = [8, 128], strides = [1, 1]} : vector<8x512xf32> to vector<8x128xf32>
    %371 = math.tanh %370 : vector<8x128xf32>
    %372 = vector.extract_strided_slice %357 {offsets = [0, 384], sizes = [8, 128], strides = [1, 1]} : vector<8x512xf32> to vector<8x128xf32>
    %373 = arith.negf %372 : vector<8x128xf32>
    %374 = math.exp %373 : vector<8x128xf32>
    %cst_66 = arith.constant 1.000000e+00 : f32
    %375 = vector.broadcast %cst_66 : f32 to vector<8x128xf32>
    %376 = arith.addf %375, %374 : vector<8x128xf32>
    %377 = arith.divf %375, %376 : vector<8x128xf32>
    %378 = arith.mulf %369, %323 : vector<8x128xf32>
    %379 = arith.mulf %363, %371 : vector<8x128xf32>
    %380 = arith.addf %378, %379 : vector<8x128xf32>
    %381 = math.tanh %380 : vector<8x128xf32>
    %382 = arith.mulf %377, %381 : vector<8x128xf32>
    %383 = tpu.concatenate %382, %354 in 1 : vector<8x128xf32>, vector<8x128xf32> -> vector<8x256xf32>
    %cst_67 = arith.constant dense<0.000000e+00> : vector<8x512xf32>
    %384 = tpu.matmul %383, %7, %cst_67 {dimension_numbers = #tpu.dot_dimension_numbers<[1], [0], [0], [1], [0, 0, 1, 1], [], []>} : vector<8x256xf32>, vector<256x512xf32>, vector<8x512xf32> -> vector<8x512xf32>
    %385 = vector.broadcast %8 : vector<1x512xf32> to vector<8x512xf32>
    %386 = arith.addf %384, %385 : vector<8x512xf32>
    %387 = vector.extract_strided_slice %386 {offsets = [0, 0], sizes = [8, 128], strides = [1, 1]} : vector<8x512xf32> to vector<8x128xf32>
    %388 = arith.negf %387 : vector<8x128xf32>
    %389 = math.exp %388 : vector<8x128xf32>
    %cst_68 = arith.constant 1.000000e+00 : f32
    %390 = vector.broadcast %cst_68 : f32 to vector<8x128xf32>
    %391 = arith.addf %390, %389 : vector<8x128xf32>
    %392 = arith.divf %390, %391 : vector<8x128xf32>
    %393 = vector.extract_strided_slice %386 {offsets = [0, 128], sizes = [8, 128], strides = [1, 1]} : vector<8x512xf32> to vector<8x128xf32>
    %394 = arith.negf %393 : vector<8x128xf32>
    %395 = math.exp %394 : vector<8x128xf32>
    %cst_69 = arith.constant 1.000000e+00 : f32
    %396 = vector.broadcast %cst_69 : f32 to vector<8x128xf32>
    %397 = arith.addf %396, %395 : vector<8x128xf32>
    %398 = arith.divf %396, %397 : vector<8x128xf32>
    %399 = vector.extract_strided_slice %386 {offsets = [0, 256], sizes = [8, 128], strides = [1, 1]} : vector<8x512xf32> to vector<8x128xf32>
    %400 = math.tanh %399 : vector<8x128xf32>
    %401 = vector.extract_strided_slice %386 {offsets = [0, 384], sizes = [8, 128], strides = [1, 1]} : vector<8x512xf32> to vector<8x128xf32>
    %402 = arith.negf %401 : vector<8x128xf32>
    %403 = math.exp %402 : vector<8x128xf32>
    %cst_70 = arith.constant 1.000000e+00 : f32
    %404 = vector.broadcast %cst_70 : f32 to vector<8x128xf32>
    %405 = arith.addf %404, %403 : vector<8x128xf32>
    %406 = arith.divf %404, %405 : vector<8x128xf32>
    %407 = arith.mulf %398, %352 : vector<8x128xf32>
    %408 = arith.mulf %392, %400 : vector<8x128xf32>
    %409 = arith.addf %407, %408 : vector<8x128xf32>
    %410 = math.tanh %409 : vector<8x128xf32>
    %411 = arith.mulf %406, %410 : vector<8x128xf32>
    %412 = vector.extract_strided_slice %5 {offsets = [56, 0], sizes = [8, 512], strides = [1, 1]} : vector<64x512xf32> to vector<8x512xf32>
    %cst_71 = arith.constant dense<0.000000e+00> : vector<8x512xf32>
    %413 = tpu.matmul %382, %6, %cst_71 {dimension_numbers = #tpu.dot_dimension_numbers<[1], [0], [0], [1], [0, 0, 1, 1], [], []>} : vector<8x128xf32>, vector<128x512xf32>, vector<8x512xf32> -> vector<8x512xf32>
    %414 = arith.addf %412, %413 : vector<8x512xf32>
    %415 = vector.extract_strided_slice %414 {offsets = [0, 0], sizes = [8, 128], strides = [1, 1]} : vector<8x512xf32> to vector<8x128xf32>
    %416 = arith.negf %415 : vector<8x128xf32>
    %417 = math.exp %416 : vector<8x128xf32>
    %cst_72 = arith.constant 1.000000e+00 : f32
    %418 = vector.broadcast %cst_72 : f32 to vector<8x128xf32>
    %419 = arith.addf %418, %417 : vector<8x128xf32>
    %420 = arith.divf %418, %419 : vector<8x128xf32>
    %421 = vector.extract_strided_slice %414 {offsets = [0, 128], sizes = [8, 128], strides = [1, 1]} : vector<8x512xf32> to vector<8x128xf32>
    %422 = arith.negf %421 : vector<8x128xf32>
    %423 = math.exp %422 : vector<8x128xf32>
    %cst_73 = arith.constant 1.000000e+00 : f32
    %424 = vector.broadcast %cst_73 : f32 to vector<8x128xf32>
    %425 = arith.addf %424, %423 : vector<8x128xf32>
    %426 = arith.divf %424, %425 : vector<8x128xf32>
    %427 = vector.extract_strided_slice %414 {offsets = [0, 256], sizes = [8, 128], strides = [1, 1]} : vector<8x512xf32> to vector<8x128xf32>
    %428 = math.tanh %427 : vector<8x128xf32>
    %429 = vector.extract_strided_slice %414 {offsets = [0, 384], sizes = [8, 128], strides = [1, 1]} : vector<8x512xf32> to vector<8x128xf32>
    %430 = arith.negf %429 : vector<8x128xf32>
    %431 = math.exp %430 : vector<8x128xf32>
    %cst_74 = arith.constant 1.000000e+00 : f32
    %432 = vector.broadcast %cst_74 : f32 to vector<8x128xf32>
    %433 = arith.addf %432, %431 : vector<8x128xf32>
    %434 = arith.divf %432, %433 : vector<8x128xf32>
    %435 = arith.mulf %426, %380 : vector<8x128xf32>
    %436 = arith.mulf %420, %428 : vector<8x128xf32>
    %437 = arith.addf %435, %436 : vector<8x128xf32>
    %438 = math.tanh %437 : vector<8x128xf32>
    %439 = arith.mulf %434, %438 : vector<8x128xf32>
    %440 = tpu.concatenate %439, %411 in 1 : vector<8x128xf32>, vector<8x128xf32> -> vector<8x256xf32>
    %cst_75 = arith.constant dense<0.000000e+00> : vector<8x512xf32>
    %441 = tpu.matmul %440, %7, %cst_75 {dimension_numbers = #tpu.dot_dimension_numbers<[1], [0], [0], [1], [0, 0, 1, 1], [], []>} : vector<8x256xf32>, vector<256x512xf32>, vector<8x512xf32> -> vector<8x512xf32>
    %442 = vector.broadcast %8 : vector<1x512xf32> to vector<8x512xf32>
    %443 = arith.addf %441, %442 : vector<8x512xf32>
    %444 = vector.extract_strided_slice %443 {offsets = [0, 0], sizes = [8, 128], strides = [1, 1]} : vector<8x512xf32> to vector<8x128xf32>
    %445 = arith.negf %444 : vector<8x128xf32>
    %446 = math.exp %445 : vector<8x128xf32>
    %cst_76 = arith.constant 1.000000e+00 : f32
    %447 = vector.broadcast %cst_76 : f32 to vector<8x128xf32>
    %448 = arith.addf %447, %446 : vector<8x128xf32>
    %449 = arith.divf %447, %448 : vector<8x128xf32>
    %450 = vector.extract_strided_slice %443 {offsets = [0, 128], sizes = [8, 128], strides = [1, 1]} : vector<8x512xf32> to vector<8x128xf32>
    %451 = arith.negf %450 : vector<8x128xf32>
    %452 = math.exp %451 : vector<8x128xf32>
    %cst_77 = arith.constant 1.000000e+00 : f32
    %453 = vector.broadcast %cst_77 : f32 to vector<8x128xf32>
    %454 = arith.addf %453, %452 : vector<8x128xf32>
    %455 = arith.divf %453, %454 : vector<8x128xf32>
    %456 = vector.extract_strided_slice %443 {offsets = [0, 256], sizes = [8, 128], strides = [1, 1]} : vector<8x512xf32> to vector<8x128xf32>
    %457 = math.tanh %456 : vector<8x128xf32>
    %458 = vector.extract_strided_slice %443 {offsets = [0, 384], sizes = [8, 128], strides = [1, 1]} : vector<8x512xf32> to vector<8x128xf32>
    %459 = arith.negf %458 : vector<8x128xf32>
    %460 = math.exp %459 : vector<8x128xf32>
    %cst_78 = arith.constant 1.000000e+00 : f32
    %461 = vector.broadcast %cst_78 : f32 to vector<8x128xf32>
    %462 = arith.addf %461, %460 : vector<8x128xf32>
    %463 = arith.divf %461, %462 : vector<8x128xf32>
    %464 = arith.mulf %455, %409 : vector<8x128xf32>
    %465 = arith.mulf %449, %457 : vector<8x128xf32>
    %466 = arith.addf %464, %465 : vector<8x128xf32>
    %467 = math.tanh %466 : vector<8x128xf32>
    %468 = arith.mulf %463, %467 : vector<8x128xf32>
    %c0_79 = arith.constant 0 : index
    %c0_80 = arith.constant 0 : index
    %469 = vector.load %arg6[%c0_79, %c0_80] : memref<8x128xf32, #tpu.memory_space<vmem>>, vector<8x128xf32>
    tpu.vector_store %arg6[%c0_79, %c0_80], %468 {strides = array<i32>} : memref<8x128xf32, #tpu.memory_space<vmem>>, vector<8x128xf32>,
    return
  }
}

</mosaic_0001>

<llo_original>
// kernel: stock_lstm_forward.1
$region0: #{stock_lstm_forward.1}
  #allocation0 [shape = 'u32[]', space=smem, size = 0x4, offset = 0x4, fixed_abs, tag = 'smem constant byte address 0x4 - core index']
  #allocation1 [shape = 'u32[144,128]{1,0:T(1,128)}', space=vmem, size = 0x12000, scoped, tag = 'internal scratch']
  %s0 = inlined_call_operand.vmem [shape: f32[64,8], index: 0, kind: input, shape index: {}]
  %s1 = inlined_call_operand.vmem [shape: f32[8,512], index: 1, kind: input, shape index: {}]
  %s2 = inlined_call_operand.vmem [shape: f32[1,512], index: 2, kind: input, shape index: {}]
  %s3 = inlined_call_operand.vmem [shape: f32[128,512], index: 3, kind: input, shape index: {}]
  %s4 = inlined_call_operand.vmem [shape: f32[256,512], index: 4, kind: input, shape index: {}]
  %s5 = inlined_call_operand.vmem [shape: f32[1,512], index: 5, kind: input, shape index: {}]
  %s6 = inlined_call_operand.vmem [shape: f32[8,128], index: 6, kind: output, shape index: {}]
  %s7 = sld [smem:[#allocation0]]
  $region34: #{stock_lstm_forward.1} parent=0
    _
  %s9 = ssub.s32 1, %s7
  %s10 = scalar_select 0, %s9, %s7
  // Predicated region
  $region2: #{stock_lstm_forward.1} parent=0 // pred_check
    _
  $region3: #{stock_lstm_forward.1} parent=0 // pred_check_branch
    %12 = sbr.rel (0) target = $region5
  $region4: #{stock_lstm_forward.1} parent=0 // pred_region
    _
  $region5: #{stock_lstm_forward.1} parent=0 // pred_fallthru
    _
  // Predicated region
  $region6: #{stock_lstm_forward.1} parent=0 // pred_check
    _
  $region7: #{stock_lstm_forward.1} parent=0 // pred_check_branch
    %14 = sbr.rel (0) target = $region9
  $region8: #{stock_lstm_forward.1} parent=0 // pred_region
    _
  $region9: #{stock_lstm_forward.1} parent=0 // pred_fallthru
    _
  // Predicated region
  $region10: #{stock_lstm_forward.1} parent=0 // pred_check
    _
  $region11: #{stock_lstm_forward.1} parent=0 // pred_check_branch
    %16 = sbr.rel (0) target = $region13
  $region12: #{stock_lstm_forward.1} parent=0 // pred_region
    _
  $region13: #{stock_lstm_forward.1} parent=0 // pred_fallthru
    _
  // Predicated region
  $region14: #{stock_lstm_forward.1} parent=0 // pred_check
    _
  $region15: #{stock_lstm_forward.1} parent=0 // pred_check_branch
    %18 = sbr.rel (0) target = $region17
  $region16: #{stock_lstm_forward.1} parent=0 // pred_region
    _
  $region17: #{stock_lstm_forward.1} parent=0 // pred_fallthru
    _
  // Predicated region
  $region18: #{stock_lstm_forward.1} parent=0 // pred_check
    _
  $region19: #{stock_lstm_forward.1} parent=0 // pred_check_branch
    %20 = sbr.rel (0) target = $region21
  $region20: #{stock_lstm_forward.1} parent=0 // pred_region
    _
  $region21: #{stock_lstm_forward.1} parent=0 // pred_fallthru
    _
  // Predicated region
  $region22: #{stock_lstm_forward.1} parent=0 // pred_check
    _
  $region23: #{stock_lstm_forward.1} parent=0 // pred_check_branch
    %22 = sbr.rel (0) target = $region25
  $region24: #{stock_lstm_forward.1} parent=0 // pred_region
    _
  $region25: #{stock_lstm_forward.1} parent=0 // pred_fallthru
    _
  %v23 = vld [vmem:[%s0] sm:$0xff]
  %v24 = vld [vmem:[%s0 + $0x8] sm:$0xff]
  %v25 = vld [vmem:[%s0 + $0x10] sm:$0xff]
  %v26 = vld [vmem:[%s0 + $0x18] sm:$0xff]
  %v27 = vld [vmem:[%s0 + $0x20] sm:$0xff]
  %v28 = vld [vmem:[%s0 + $0x28] sm:$0xff]
  %v29 = vld [vmem:[%s0 + $0x30] sm:$0xff]
  %v30 = vld [vmem:[%s0 + $0x38] sm:$0xff]
  %v31 = vld [vmem:[%s1] sm:$0xff]
  %v32 = vld [vmem:[%s1 + $0x8] sm:$0xff]
  %v33 = vld [vmem:[%s1 + $0x10] sm:$0xff]
  %v34 = vld [vmem:[%s1 + $0x18] sm:$0xff]
  %v35 = vld [vmem:[%s2] sm:$0xf]
  %v37 = vlaneseq
  %v38 = vshrl.u32 %v37, 7
  %v39 = vsub.s32 0, %v38
  %v40 = vrot.slane %v35, %v39
  %v41 = vlaneseq
  %v42 = vshrl.u32 %v41, 7
  %v43 = vsub.s32 1, %v42
  %v44 = vrot.slane %v35, %v43
  %v45 = vlaneseq
  %v46 = vshrl.u32 %v45, 7
  %v47 = vsub.s32 2, %v46
  %v48 = vrot.slane %v35, %v47
  %v49 = vlaneseq
  %v50 = vshrl.u32 %v49, 7
  %v51 = vsub.s32 3, %v50
  %v52 = vrot.slane %v35, %v51
  %vm57 = vcmask 64512
  %v59 = vsel %vm57, %v23, 0
  %v62 = vsel %vm57, %v24, 0
  %v65 = vsel %vm57, %v25, 0
  %v68 = vsel %vm57, %v26, 0
  %v71 = vsel %vm57, %v27, 0
  %v74 = vsel %vm57, %v28, 0
  %v77 = vsel %vm57, %v29, 0
  %v80 = vsel %vm57, %v30, 0
  %82 = vmatprep.subr.mxu0 %v32
  %83 = vmatpush1.msra.mxu0 %v31
  %84 = vmatprep.subr.mxu0 0.0
  %85 = vmatpush1.msra.mxu0 0.0
  %86 = vmatprep.subr.mxu0 0.0
  %87 = vmatpush1.msra.mxu0 0.0
  %88 = vmatprep.subr.mxu0 0.0
  %89 = vmatpush1.msra.mxu0 0.0
  %90 = vmatprep.subr.mxu0 0.0
  %91 = vmatpush1.msra.mxu0 0.0
  %92 = vmatprep.subr.mxu0 0.0
  %93 = vmatpush1.msra.mxu0 0.0
  %94 = vmatprep.subr.mxu0 0.0
  %95 = vmatpush1.msra.mxu0 0.0
  %96 = vmatprep.subr.mxu0 0.0
  %97 = vmatpush1.msra.mxu0 0.0
  %98 = vmatprep.subr.mxu0 0.0
  %99 = vmatpush1.msra.mxu0 0.0
  %100 = vmatprep.subr.mxu0 0.0
  %101 = vmatpush1.msra.mxu0 0.0
  %102 = vmatprep.subr.mxu0 0.0
  %103 = vmatpush1.msra.mxu0 0.0
  %104 = vmatprep.subr.mxu0 0.0
  %105 = vmatpush1.msra.mxu0 0.0
  %106 = vmatprep.subr.mxu0 0.0
  %107 = vmatpush1.msra.mxu0 0.0
  %108 = vmatprep.subr.mxu0 0.0
  %109 = vmatpush1.msra.mxu0 0.0
  %110 = vmatprep.subr.mxu0 0.0
  %111 = vmatpush1.msra.mxu0 0.0
  %112 = vmatprep.subr.mxu0 0.0
  %113 = vmatpush1.msra.mxu0 0.0
  %114 = vmatprep.subr.mxu0 0.0
  %115 = vmatpush1.msra.mxu0 0.0
  %116 = vmatprep.subr.mxu0 0.0
  %117 = vmatpush1.msra.mxu0 0.0
  %118 = vmatprep.subr.mxu0 0.0
  %119 = vmatpush1.msra.mxu0 0.0
  %120 = vmatprep.subr.mxu0 0.0
  %121 = vmatpush1.msra.mxu0 0.0
  %122 = vmatprep.subr.mxu0 0.0
  %123 = vmatpush1.msra.mxu0 0.0
  %124 = vmatprep.subr.mxu0 0.0
  %125 = vmatpush1.msra.mxu0 0.0
  %126 = vmatprep.subr.mxu0 0.0
  %127 = vmatpush1.msra.mxu0 0.0
  %128 = vmatprep.subr.mxu0 0.0
  %129 = vmatpush1.msra.mxu0 0.0
  %130 = vmatprep.subr.mxu0 0.0
  %131 = vmatpush1.msra.mxu0 0.0
  %132 = vmatprep.subr.mxu0 0.0
  %133 = vmatpush1.msra.mxu0 0.0
  %134 = vmatprep.subr.mxu0 0.0
  %135 = vmatpush1.msra.mxu0 0.0
  %136 = vmatprep.subr.mxu0 0.0
  %137 = vmatpush1.msra.mxu0 0.0
  %138 = vmatprep.subr.mxu0 0.0
  %139 = vmatpush1.msra.mxu0 0.0
  %140 = vmatprep.subr.mxu0 0.0
  %141 = vmatpush1.msra.mxu0 0.0
  %142 = vmatprep.subr.mxu0 0.0
  %143 = vmatpush1.msra.mxu0 0.0
  %144 = vmatprep.subr.mxu0 0.0
  %145 = vmatpush1.msra.mxu0 0.0
  %146 = vmatprep.mubr.f32.mxu0 0.0
  %147 = vmatmul.mubr.f32.gmra.mrb[0].mxu0 %v59
  %v148 = vpop.f32.mrb[0].mxu0
  %v149 = vadd.f32 %v40, %v148
  %v150 = vpop.f32.mrb[0].mxu0
  %v151 = vadd.f32 %v44, %v150
  %152 = vmatprep.mubr.f32.mxu0 0.0
  %153 = vmatmul.mubr.f32.gmra.mrb[0].mxu0 %v62
  %v154 = vpop.f32.mrb[0].mxu0
  %v155 = vadd.f32 %v40, %v154
  %v156 = vpop.f32.mrb[0].mxu0
  %v157 = vadd.f32 %v44, %v156
  %158 = vmatprep.mubr.f32.mxu0 0.0
  %159 = vmatmul.mubr.f32.gmra.mrb[0].mxu0 %v65
  %v160 = vpop.f32.mrb[0].mxu0
  %v161 = vadd.f32 %v40, %v160
  %v162 = vpop.f32.mrb[0].mxu0
  %v163 = vadd.f32 %v44, %v162
  %164 = vmatprep.mubr.f32.mxu0 0.0
  %165 = vmatmul.mubr.f32.gmra.mrb[0].mxu0 %v68
  %v166 = vpop.f32.mrb[0].mxu0
  %v167 = vadd.f32 %v40, %v166
  %v168 = vpop.f32.mrb[0].mxu0
  %v169 = vadd.f32 %v44, %v168
  %170 = vmatprep.mubr.f32.mxu0 0.0
  %171 = vmatmul.mubr.f32.gmra.mrb[0].mxu0 %v71
  %v172 = vpop.f32.mrb[0].mxu0
  %v173 = vadd.f32 %v40, %v172
  %v174 = vpop.f32.mrb[0].mxu0
  %v175 = vadd.f32 %v44, %v174
  %176 = vmatprep.mubr.f32.mxu0 0.0
  %177 = vmatmul.mubr.f32.gmra.mrb[0].mxu0 %v74
  %v178 = vpop.f32.mrb[0].mxu0
  %v179 = vadd.f32 %v40, %v178
  %v180 = vpop.f32.mrb[0].mxu0
  %v181 = vadd.f32 %v44, %v180
  %182 = vmatprep.mubr.f32.mxu0 0.0
  %183 = vmatmul.mubr.f32.gmra.mrb[0].mxu0 %v77
  %v184 = vpop.f32.mrb[0].mxu0
  %v185 = vadd.f32 %v40, %v184
  %v186 = vpop.f32.mrb[0].mxu0
  %v187 = vadd.f32 %v44, %v186
  %188 = vmatprep.mubr.f32.mxu0 0.0
  %189 = vmatmul.mubr.f32.gmra.mrb[0].mxu0 %v80
  %v190 = vpop.f32.mrb[0].mxu0
  %v191 = vadd.f32 %v40, %v190
  %v192 = vpop.f32.mrb[0].mxu0
  %v193 = vadd.f32 %v44, %v192
  %194 = vdwg.mxu0
  %195 = vmatprep.subr.mxu0 %v34
  %196 = vmatpush1.msra.mxu0 %v33
  %197 = vmatprep.subr.mxu0 0.0
  %198 = vmatpush1.msra.mxu0 0.0
  %199 = vmatprep.subr.mxu0 0.0
  %200 = vmatpush1.msra.mxu0 0.0
  %201 = vmatprep.subr.mxu0 0.0
  %202 = vmatpush1.msra.mxu0 0.0
  %203 = vmatprep.subr.mxu0 0.0
  %204 = vmatpush1.msra.mxu0 0.0
  %205 = vmatprep.subr.mxu0 0.0
  %206 = vmatpush1.msra.mxu0 0.0
  %207 = vmatprep.subr.mxu0 0.0
  %208 = vmatpush1.msra.mxu0 0.0
  %209 = vmatprep.subr.mxu0 0.0
  %210 = vmatpush1.msra.mxu0 0.0
  %211 = vmatprep.subr.mxu0 0.0
  %212 = vmatpush1.msra.mxu0 0.0
  %213 = vmatprep.subr.mxu0 0.0
  %214 = vmatpush1.msra.mxu0 0.0
  %215 = vmatprep.subr.mxu0 0.0
  %216 = vmatpush1.msra.mxu0 0.0
  %217 = vmatprep.subr.mxu0 0.0
  %218 = vmatpush1.msra.mxu0 0.0
  %219 = vmatprep.subr.mxu0 0.0
  %220 = vmatpush1.msra.mxu0 0.0
  %221 = vmatprep.subr.mxu0 0.0
  %222 = vmatpush1.msra.mxu0 0.0
  %223 = vmatprep.subr.mxu0 0.0
  %224 = vmatpush1.msra.mxu0 0.0
  %225 = vmatprep.subr.mxu0 0.0
  %226 = vmatpush1.msra.mxu0 0.0
  %227 = vmatprep.subr.mxu0 0.0
  %228 = vmatpush1.msra.mxu0 0.0
  %229 = vmatprep.subr.mxu0 0.0
  %230 = vmatpush1.msra.mxu0 0.0
  %231 = vmatprep.subr.mxu0 0.0
  %232 = vmatpush1.msra.mxu0 0.0
  %233 = vmatprep.subr.mxu0 0.0
  %234 = vmatpush1.msra.mxu0 0.0
  %235 = vmatprep.subr.mxu0 0.0
  %236 = vmatpush1.msra.mxu0 0.0
  %237 = vmatprep.subr.mxu0 0.0
  %238 = vmatpush1.msra.mxu0 0.0
  %239 = vmatprep.subr.mxu0 0.0
  %240 = vmatpush1.msra.mxu0 0.0
  %241 = vmatprep.subr.mxu0 0.0
  %242 = vmatpush1.msra.mxu0 0.0
  %243 = vmatprep.subr.mxu0 0.0
  %244 = vmatpush1.msra.mxu0 0.0
  %245 = vmatprep.subr.mxu0 0.0
  %246 = vmatpush1.msra.mxu0 0.0
  %247 = vmatprep.subr.mxu0 0.0
  %248 = vmatpush1.msra.mxu0 0.0
  %249 = vmatprep.subr.mxu0 0.0
  %250 = vmatpush1.msra.mxu0 0.0
  %251 = vmatprep.subr.mxu0 0.0
  %252 = vmatpush1.msra.mxu0 0.0
  %253 = vmatprep.subr.mxu0 0.0
  %254 = vmatpush1.msra.mxu0 0.0
  %255 = vmatprep.subr.mxu0 0.0
  %256 = vmatpush1.msra.mxu0 0.0
  %257 = vmatprep.subr.mxu0 0.0
  %258 = vmatpush1.msra.mxu0 0.0
  %259 = vmatprep.mubr.f32.mxu0 0.0
  %260 = vmatmul.mubr.f32.gmra.mrb[0].mxu0 %v59
  %v261 = vpop.f32.mrb[0].mxu0
  %v262 = vadd.f32 %v48, %v261
  %v263 = vpop.f32.mrb[0].mxu0
  %v264 = vadd.f32 %v52, %v263
  %265 = vmatprep.mubr.f32.mxu0 0.0
  %266 = vmatmul.mubr.f32.gmra.mrb[0].mxu0 %v62
  %v267 = vpop.f32.mrb[0].mxu0
  %v268 = vadd.f32 %v48, %v267
  %v269 = vpop.f32.mrb[0].mxu0
  %v270 = vadd.f32 %v52, %v269
  %271 = vmatprep.mubr.f32.mxu0 0.0
  %272 = vmatmul.mubr.f32.gmra.mrb[0].mxu0 %v65
  %v273 = vpop.f32.mrb[0].mxu0
  %v274 = vadd.f32 %v48, %v273
  %v275 = vpop.f32.mrb[0].mxu0
  %v276 = vadd.f32 %v52, %v275
  %277 = vmatprep.mubr.f32.mxu0 0.0
  %278 = vmatmul.mubr.f32.gmra.mrb[0].mxu0 %v68
  %v279 = vpop.f32.mrb[0].mxu0
  %v280 = vadd.f32 %v48, %v279
  %v281 = vpop.f32.mrb[0].mxu0
  %v282 = vadd.f32 %v52, %v281
  %283 = vmatprep.mubr.f32.mxu0 0.0
  %284 = vmatmul.mubr.f32.gmra.mrb[0].mxu0 %v71
  %v285 = vpop.f32.mrb[0].mxu0
  %v286 = vadd.f32 %v48, %v285
  %v287 = vpop.f32.mrb[0].mxu0
  %v288 = vadd.f32 %v52, %v287
  %289 = vmatprep.mubr.f32.mxu0 0.0
  %290 = vmatmul.mubr.f32.gmra.mrb[0].mxu0 %v74
  %v291 = vpop.f32.mrb[0].mxu0
  %v292 = vadd.f32 %v48, %v291
  %v293 = vpop.f32.mrb[0].mxu0
  %v294 = vadd.f32 %v52, %v293
  %295 = vmatprep.mubr.f32.mxu0 0.0
  %296 = vmatmul.mubr.f32.gmra.mrb[0].mxu0 %v77
  %v297 = vpop.f32.mrb[0].mxu0
  %v298 = vadd.f32 %v48, %v297
  %v299 = vpop.f32.mrb[0].mxu0
  %v300 = vadd.f32 %v52, %v299
  %301 = vmatprep.mubr.f32.mxu0 0.0
  %302 = vmatmul.mubr.f32.gmra.mrb[0].mxu0 %v80
  %v303 = vpop.f32.mrb[0].mxu0
  %v304 = vadd.f32 %v48, %v303
  %v305 = vpop.f32.mrb[0].mxu0
  %v306 = vadd.f32 %v52, %v305
  %307 = vdwg.mxu0
  %v308 = vld [vmem:[%s3] sm:$0xff]
  %v309 = vld [vmem:[%s3 + $0x8] sm:$0xff]
  %v310 = vld [vmem:[%s3 + $0x10] sm:$0xff]
  %v311 = vld [vmem:[%s3 + $0x18] sm:$0xff]
  %v312 = vld [vmem:[%s3 + $0x20] sm:$0xff]
  %v313 = vld [vmem:[%s3 + $0x28] sm:$0xff]
  %v314 = vld [vmem:[%s3 + $0x30] sm:$0xff]
  %v315 = vld [vmem:[%s3 + $0x38] sm:$0xff]
  %v316 = vld [vmem:[%s3 + $0x40] sm:$0xff]
  %v317 = vld [vmem:[%s3 + $0x48] sm:$0xff]
  %v318 = vld [vmem:[%s3 + $0x50] sm:$0xff]
  %v319 = vld [vmem:[%s3 + $0x58] sm:$0xff]
  %v320 = vld [vmem:[%s3 + $0x60] sm:$0xff]
  %v321 = vld [vmem:[%s3 + $0x68] sm:$0xff]
  %v322 = vld [vmem:[%s3 + $0x70] sm:$0xff]
  %v323 = vld [vmem:[%s3 + $0x78] sm:$0xff]
  %v324 = vld [vmem:[%s3 + $0x80] sm:$0xff]
  %v325 = vld [vmem:[%s3 + $0x88] sm:$0xff]
  %v326 = vld [vmem:[%s3 + $0x90] sm:$0xff]
  %v327 = vld [vmem:[%s3 + $0x98] sm:$0xff]
  %v328 = vld [vmem:[%s3 + $0xa0] sm:$0xff]
  %v329 = vld [vmem:[%s3 + $0xa8] sm:$0xff]
  %v330 = vld [vmem:[%s3 + $0xb0] sm:$0xff]
  %v331 = vld [vmem:[%s3 + $0xb8] sm:$0xff]
  %v332 = vld [vmem:[%s3 + $0xc0] sm:$0xff]
  %v333 = vld [vmem:[%s3 + $0xc8] sm:$0xff]
  %v334 = vld [vmem:[%s3 + $0xd0] sm:$0xff]
  %v335 = vld [vmem:[%s3 + $0xd8] sm:$0xff]
  %v336 = vld [vmem:[%s3 + $0xe0] sm:$0xff]
  %v337 = vld [vmem:[%s3 + $0xe8] sm:$0xff]
  %v338 = vld [vmem:[%s3 + $0xf0] sm:$0xff]
  %v339 = vld [vmem:[%s3 + $0xf8] sm:$0xff]
  %v340 = vld [vmem:[%s3 + $0x100] sm:$0xff]
  %v341 = vld [vmem:[%s3 + $0x108] sm:$0xff]
  %v342 = vld [vmem:[%s3 + $0x110] sm:$0xff]
  %v343 = vld [vmem:[%s3 + $0x118] sm:$0xff]
  %v344 = vld [vmem:[%s3 + $0x120] sm:$0xff]
  %v345 = vld [vmem:[%s3 + $0x128] sm:$0xff]
  %v346 = vld [vmem:[%s3 + $0x130] sm:$0xff]
  %v347 = vld [vmem:[%s3 + $0x138] sm:$0xff]
  %v348 = vld [vmem:[%s3 + $0x140] sm:$0xff]
  %v349 = vld [vmem:[%s3 + $0x148] sm:$0xff]
  %v350 = vld [vmem:[%s3 + $0x150] sm:$0xff]
  %v351 = vld [vmem:[%s3 + $0x158] sm:$0xff]
  %v352 = vld [vmem:[%s3 + $0x160] sm:$0xff]
  %v353 = vld [vmem:[%s3 + $0x168] sm:$0xff]
  %v354 = vld [vmem:[%s3 + $0x170] sm:$0xff]
  %v355 = vld [vmem:[%s3 + $0x178] sm:$0xff]
  %v356 = vld [vmem:[%s3 + $0x180] sm:$0xff]
  %v357 = vld [vmem:[%s3 + $0x188] sm:$0xff]
  %v358 = vld [vmem:[%s3 + $0x190] sm:$0xff]
  %v359 = vld [vmem:[%s3 + $0x198] sm:$0xff]
  %v360 = vld [vmem:[%s3 + $0x1a0] sm:$0xff]
  %v361 = vld [vmem:[%s3 + $0x1a8] sm:$0xff]
  %v362 = vld [vmem:[%s3 + $0x1b0] sm:$0xff]
  %v363 = vld [vmem:[%s3 + $0x1b8] sm:$0xff]
  %v364 = vld [vmem:[%s3 + $0x1c0] sm:$0xff]
  %v365 = vld [vmem:[%s3 + $0x1c8] sm:$0xff]
  %v366 = vld [vmem:[%s3 + $0x1d0] sm:$0xff]
  %v367 = vld [vmem:[%s3 + $0x1d8] sm:$0xff]
  %v368 = vld [vmem:[%s3 + $0x1e0] sm:$0xff]
  %v369 = vld [vmem:[%s3 + $0x1e8] sm:$0xff]
  %v370 = vld [vmem:[%s3 + $0x1f0] sm:$0xff]
  %v371 = vld [vmem:[%s3 + $0x1f8] sm:$0xff]
  %v372 = vld [vmem:[%s4] sm:$0xff]
  %v373 = vld [vmem:[%s4 + $0x8] sm:$0xff]
  %v374 = vld [vmem:[%s4 + $0x10] sm:$0xff]
  %v375 = vld [vmem:[%s4 + $0x18] sm:$0xff]
  %v376 = vld [vmem:[%s4 + $0x20] sm:$0xff]
  %v377 = vld [vmem:[%s4 + $0x28] sm:$0xff]
  %v378 = vld [vmem:[%s4 + $0x30] sm:$0xff]
  %v379 = vld [vmem:[%s4 + $0x38] sm:$0xff]
  %v380 = vld [vmem:[%s4 + $0x40] sm:$0xff]
  %v381 = vld [vmem:[%s4 + $0x48] sm:$0xff]
  %v382 = vld [vmem:[%s4 + $0x50] sm:$0xff]
  %v383 = vld [vmem:[%s4 + $0x58] sm:$0xff]
  %v384 = vld [vmem:[%s4 + $0x60] sm:$0xff]
  %v385 = vld [vmem:[%s4 + $0x68] sm:$0xff]
  %v386 = vld [vmem:[%s4 + $0x70] sm:$0xff]
  %v387 = vld [vmem:[%s4 + $0x78] sm:$0xff]
  %v388 = vld [vmem:[%s4 + $0x80] sm:$0xff]
  %v389 = vld [vmem:[%s4 + $0x88] sm:$0xff]
  %v390 = vld [vmem:[%s4 + $0x90] sm:$0xff]
  %v391 = vld [vmem:[%s4 + $0x98] sm:$0xff]
  %v392 = vld [vmem:[%s4 + $0xa0] sm:$0xff]
  %v393 = vld [vmem:[%s4 + $0xa8] sm:$0xff]
  %v394 = vld [vmem:[%s4 + $0xb0] sm:$0xff]
  %v395 = vld [vmem:[%s4 + $0xb8] sm:$0xff]
  %v396 = vld [vmem:[%s4 + $0xc0] sm:$0xff]
  %v397 = vld [vmem:[%s4 + $0xc8] sm:$0xff]
  %v398 = vld [vmem:[%s4 + $0xd0] sm:$0xff]
  %v399 = vld [vmem:[%s4 + $0xd8] sm:$0xff]
  %v400 = vld [vmem:[%s4 + $0xe0] sm:$0xff]
  %v401 = vld [vmem:[%s4 + $0xe8] sm:$0xff]
  %v402 = vld [vmem:[%s4 + $0xf0] sm:$0xff]
  %v403 = vld [vmem:[%s4 + $0xf8] sm:$0xff]
  %v404 = vld [vmem:[%s4 + $0x100] sm:$0xff]
  %v405 = vld [vmem:[%s4 + $0x108] sm:$0xff]
  %v406 = vld [vmem:[%s4 + $0x110] sm:$0xff]
  %v407 = vld [vmem:[%s4 + $0x118] sm:$0xff]
  %v408 = vld [vmem:[%s4 + $0x120] sm:$0xff]
  %v409 = vld [vmem:[%s4 + $0x128] sm:$0xff]
  %v410 = vld [vmem:[%s4 + $0x130] sm:$0xff]
  %v411 = vld [vmem:[%s4 + $0x138] sm:$0xff]
  %v412 = vld [vmem:[%s4 + $0x140] sm:$0xff]
  %v413 = vld [vmem:[%s4 + $0x148] sm:$0xff]
  %v414 = vld [vmem:[%s4 + $0x150] sm:$0xff]
  %v415 = vld [vmem:[%s4 + $0x158] sm:$0xff]
  %v416 = vld [vmem:[%s4 + $0x160] sm:$0xff]
  %v417 = vld [vmem:[%s4 + $0x168] sm:$0xff]
  %v418 = vld [vmem:[%s4 + $0x170] sm:$0xff]
  %v419 = vld [vmem:[%s4 + $0x178] sm:$0xff]
  %v420 = vld [vmem:[%s4 + $0x180] sm:$0xff]
  %v421 = vld [vmem:[%s4 + $0x188] sm:$0xff]
  %v422 = vld [vmem:[%s4 + $0x190] sm:$0xff]
  %v423 = vld [vmem:[%s4 + $0x198] sm:$0xff]
  %v424 = vld [vmem:[%s4 + $0x1a0] sm:$0xff]
  %v425 = vld [vmem:[%s4 + $0x1a8] sm:$0xff]
  %v426 = vld [vmem:[%s4 + $0x1b0] sm:$0xff]
  %v427 = vld [vmem:[%s4 + $0x1b8] sm:$0xff]
  %v428 = vld [vmem:[%s4 + $0x1c0] sm:$0xff]
  %v429 = vld [vmem:[%s4 + $0x1c8] sm:$0xff]
  %v430 = vld [vmem:[%s4 + $0x1d0] sm:$0xff]
  %v431 = vld [vmem:[%s4 + $0x1d8] sm:$0xff]
  %v432 = vld [vmem:[%s4 + $0x1e0] sm:$0xff]
  %v433 = vld [vmem:[%s4 + $0x1e8] sm:$0xff]
  %v434 = vld [vmem:[%s4 + $0x1f0] sm:$0xff]
  %v435 = vld [vmem:[%s4 + $0x1f8] sm:$0xff]
  %v436 = vld [vmem:[%s4 + $0x200] sm:$0xff]
  %v437 = vld [vmem:[%s4 + $0x208] sm:$0xff]
  %v438 = vld [vmem:[%s4 + $0x210] sm:$0xff]
  %v439 = vld [vmem:[%s4 + $0x218] sm:$0xff]
  %v440 = vld [vmem:[%s4 + $0x220] sm:$0xff]
  %v441 = vld [vmem:[%s4 + $0x228] sm:$0xff]
  %v442 = vld [vmem:[%s4 + $0x230] sm:$0xff]
  %v443 = vld [vmem:[%s4 + $0x238] sm:$0xff]
  %v444 = vld [vmem:[%s4 + $0x240] sm:$0xff]
  %v445 = vld [vmem:[%s4 + $0x248] sm:$0xff]
  %v446 = vld [vmem:[%s4 + $0x250] sm:$0xff]
  %v447 = vld [vmem:[%s4 + $0x258] sm:$0xff]
  %v448 = vld [vmem:[%s4 + $0x260] sm:$0xff]
  %v449 = vld [vmem:[%s4 + $0x268] sm:$0xff]
  %v450 = vld [vmem:[%s4 + $0x270] sm:$0xff]
  %v451 = vld [vmem:[%s4 + $0x278] sm:$0xff]
  %v452 = vld [vmem:[%s4 + $0x280] sm:$0xff]
  %v453 = vld [vmem:[%s4 + $0x288] sm:$0xff]
  %v454 = vld [vmem:[%s4 + $0x290] sm:$0xff]
  %v455 = vld [vmem:[%s4 + $0x298] sm:$0xff]
  %v456 = vld [vmem:[%s4 + $0x2a0] sm:$0xff]
  %v457 = vld [vmem:[%s4 + $0x2a8] sm:$0xff]
  %v458 = vld [vmem:[%s4 + $0x2b0] sm:$0xff]
  %v459 = vld [vmem:[%s4 + $0x2b8] sm:$0xff]
  %v460 = vld [vmem:[%s4 + $0x2c0] sm:$0xff]
  %v461 = vld [vmem:[%s4 + $0x2c8] sm:$0xff]
  %v462 = vld [vmem:[%s4 + $0x2d0] sm:$0xff]
  %v463 = vld [vmem:[%s4 + $0x2d8] sm:$0xff]
  %v464 = vld [vmem:[%s4 + $0x2e0] sm:$0xff]
  %v465 = vld [vmem:[%s4 + $0x2e8] sm:$0xff]
  %v466 = vld [vmem:[%s4 + $0x2f0] sm:$0xff]
  %v467 = vld [vmem:[%s4 + $0x2f8] sm:$0xff]
  %v468 = vld [vmem:[%s4 + $0x300] sm:$0xff]
  %v469 = vld [vmem:[%s4 + $0x308] sm:$0xff]
  %v470 = vld [vmem:[%s4 + $0x310] sm:$0xff]
  %v471 = vld [vmem:[%s4 + $0x318] sm:$0xff]
  %v472 = vld [vmem:[%s4 + $0x320] sm:$0xff]
  %v473 = vld [vmem:[%s4 + $0x328] sm:$0xff]
  %v474 = vld [vmem:[%s4 + $0x330] sm:$0xff]
  %v475 = vld [vmem:[%s4 + $0x338] sm:$0xff]
  %v476 = vld [vmem:[%s4 + $0x340] sm:$0xff]
  %v477 = vld [vmem:[%s4 + $0x348] sm:$0xff]
  %v478 = vld [vmem:[%s4 + $0x350] sm:$0xff]
  %v479 = vld [vmem:[%s4 + $0x358] sm:$0xff]
  %v480 = vld [vmem:[%s4 + $0x360] sm:$0xff]
  %v481 = vld [vmem:[%s4 + $0x368] sm:$0xff]
  %v482 = vld [vmem:[%s4 + $0x370] sm:$0xff]
  %v483 = vld [vmem:[%s4 + $0x378] sm:$0xff]
  %v484 = vld [vmem:[%s4 + $0x380] sm:$0xff]
  %v485 = vld [vmem:[%s4 + $0x388] sm:$0xff]
  %v486 = vld [vmem:[%s4 + $0x390] sm:$0xff]
  %v487 = vld [vmem:[%s4 + $0x398] sm:$0xff]
  %v488 = vld [vmem:[%s4 + $0x3a0] sm:$0xff]
  %v489 = vld [vmem:[%s4 + $0x3a8] sm:$0xff]
  %v490 = vld [vmem:[%s4 + $0x3b0] sm:$0xff]
  %v491 = vld [vmem:[%s4 + $0x3b8] sm:$0xff]
  %v492 = vld [vmem:[%s4 + $0x3c0] sm:$0xff]
  %v493 = vld [vmem:[%s4 + $0x3c8] sm:$0xff]
  %v494 = vld [vmem:[%s4 + $0x3d0] sm:$0xff]
  %v495 = vld [vmem:[%s4 + $0x3d8] sm:$0xff]
  %v496 = vld [vmem:[%s4 + $0x3e0] sm:$0xff]
  %v497 = vld [vmem:[%s4 + $0x3e8] sm:$0xff]
  %v498 = vld [vmem:[%s4 + $0x3f0] sm:$0xff]
  %v499 = vld [vmem:[%s4 + $0x3f8] sm:$0xff]
  %v500 = vld [vmem:[%s5] sm:$0xf]
  %501 = vmatprep.subr.mxu0 %v309
  %502 = vmatpush1.msra.mxu0 %v308
  %503 = vmatprep.subr.mxu0 %v313
  %504 = vmatpush1.msra.mxu0 %v312
  %505 = vmatprep.subr.mxu0 %v317
  %506 = vmatpush1.msra.mxu0 %v316
  %507 = vmatprep.subr.mxu0 %v321
  %508 = vmatpush1.msra.mxu0 %v320
  %509 = vmatprep.subr.mxu0 %v325
  %510 = vmatpush1.msra.mxu0 %v324
  %511 = vmatprep.subr.mxu0 %v329
  %512 = vmatpush1.msra.mxu0 %v328
  %513 = vmatprep.subr.mxu0 %v333
  %514 = vmatpush1.msra.mxu0 %v332
  %515 = vmatprep.subr.mxu0 %v337
  %516 = vmatpush1.msra.mxu0 %v336
  %517 = vmatprep.subr.mxu0 %v341
  %518 = vmatpush1.msra.mxu0 %v340
  %519 = vmatprep.subr.mxu0 %v345
  %520 = vmatpush1.msra.mxu0 %v344
  %521 = vmatprep.subr.mxu0 %v349
  %522 = vmatpush1.msra.mxu0 %v348
  %523 = vmatprep.subr.mxu0 %v353
  %524 = vmatpush1.msra.mxu0 %v352
  %525 = vmatprep.subr.mxu0 %v357
  %526 = vmatpush1.msra.mxu0 %v356
  %527 = vmatprep.subr.mxu0 %v361
  %528 = vmatpush1.msra.mxu0 %v360
  %529 = vmatprep.subr.mxu0 %v365
  %530 = vmatpush1.msra.mxu0 %v364
  %531 = vmatprep.subr.mxu0 %v369
  %532 = vmatpush1.msra.mxu0 %v368
  %533 = vmatprep.subr.mxu0 0.0
  %534 = vmatpush1.msra.mxu0 0.0
  %535 = vmatprep.subr.mxu0 0.0
  %536 = vmatpush1.msra.mxu0 0.0
  %537 = vmatprep.subr.mxu0 0.0
  %538 = vmatpush1.msra.mxu0 0.0
  %539 = vmatprep.subr.mxu0 0.0
  %540 = vmatpush1.msra.mxu0 0.0
  %541 = vmatprep.subr.mxu0 0.0
  %542 = vmatpush1.msra.mxu0 0.0
  %543 = vmatprep.subr.mxu0 0.0
  %544 = vmatpush1.msra.mxu0 0.0
  %545 = vmatprep.subr.mxu0 0.0
  %546 = vmatpush1.msra.mxu0 0.0
  %547 = vmatprep.subr.mxu0 0.0
  %548 = vmatpush1.msra.mxu0 0.0
  %549 = vmatprep.subr.mxu0 0.0
  %550 = vmatpush1.msra.mxu0 0.0
  %551 = vmatprep.subr.mxu0 0.0
  %552 = vmatpush1.msra.mxu0 0.0
  %553 = vmatprep.subr.mxu0 0.0
  %554 = vmatpush1.msra.mxu0 0.0
  %555 = vmatprep.subr.mxu0 0.0
  %556 = vmatpush1.msra.mxu0 0.0
  %557 = vmatprep.subr.mxu0 0.0
  %558 = vmatpush1.msra.mxu0 0.0
  %559 = vmatprep.subr.mxu0 0.0
  %560 = vmatpush1.msra.mxu0 0.0
  %561 = vmatprep.subr.mxu0 0.0
  %562 = vmatpush1.msra.mxu0 0.0
  %563 = vmatprep.subr.mxu0 0.0
  %564 = vmatpush1.msra.mxu0 0.0
  %565 = vmatprep.mubr.f32.mxu0 0.0
  %566 = vmatmul.mubr.f32.gmra.mrb[0].mxu0 0.0
  %v567 = vpop.f32.mrb[0].mxu0
  %v568 = vadd.f32 0.0, %v567
  %v569 = vpop.f32.mrb[0].mxu0
  %v570 = vadd.f32 0.0, %v569
  %571 = vdwg.mxu0
  %572 = vmatprep.subr.mxu0 %v311
  %573 = vmatpush1.msra.mxu0 %v310
  %574 = vmatprep.subr.mxu0 %v315
  %575 = vmatpush1.msra.mxu0 %v314
  %576 = vmatprep.subr.mxu0 %v319
  %577 = vmatpush1.msra.mxu0 %v318
  %578 = vmatprep.subr.mxu0 %v323
  %579 = vmatpush1.msra.mxu0 %v322
  %580 = vmatprep.subr.mxu0 %v327
  %581 = vmatpush1.msra.mxu0 %v326
  %582 = vmatprep.subr.mxu0 %v331
  %583 = vmatpush1.msra.mxu0 %v330
  %584 = vmatprep.subr.mxu0 %v335
  %585 = vmatpush1.msra.mxu0 %v334
  %586 = vmatprep.subr.mxu0 %v339
  %587 = vmatpush1.msra.mxu0 %v338
  %588 = vmatprep.subr.mxu0 %v343
  %589 = vmatpush1.msra.mxu0 %v342
  %590 = vmatprep.subr.mxu0 %v347
  %591 = vmatpush1.msra.mxu0 %v346
  %592 = vmatprep.subr.mxu0 %v351
  %593 = vmatpush1.msra.mxu0 %v350
  %594 = vmatprep.subr.mxu0 %v355
  %595 = vmatpush1.msra.mxu0 %v354
  %596 = vmatprep.subr.mxu0 %v359
  %597 = vmatpush1.msra.mxu0 %v358
  %598 = vmatprep.subr.mxu0 %v363
  %599 = vmatpush1.msra.mxu0 %v362
  %600 = vmatprep.subr.mxu0 %v367
  %601 = vmatpush1.msra.mxu0 %v366
  %602 = vmatprep.subr.mxu0 %v371
  %603 = vmatpush1.msra.mxu0 %v370
  %604 = vmatprep.subr.mxu0 0.0
  %605 = vmatpush1.msra.mxu0 0.0
  %606 = vmatprep.subr.mxu0 0.0
  %607 = vmatpush1.msra.mxu0 0.0
  %608 = vmatprep.subr.mxu0 0.0
  %609 = vmatpush1.msra.mxu0 0.0
  %610 = vmatprep.subr.mxu0 0.0
  %611 = vmatpush1.msra.mxu0 0.0
  %612 = vmatprep.subr.mxu0 0.0
  %613 = vmatpush1.msra.mxu0 0.0
  %614 = vmatprep.subr.mxu0 0.0
  %615 = vmatpush1.msra.mxu0 0.0
  %616 = vmatprep.subr.mxu0 0.0
  %617 = vmatpush1.msra.mxu0 0.0
  %618 = vmatprep.subr.mxu0 0.0
  %619 = vmatpush1.msra.mxu0 0.0
  %620 = vmatprep.subr.mxu0 0.0
  %621 = vmatpush1.msra.mxu0 0.0
  %622 = vmatprep.subr.mxu0 0.0
  %623 = vmatpush1.msra.mxu0 0.0
  %624 = vmatprep.subr.mxu0 0.0
  %625 = vmatpush1.msra.mxu0 0.0
  %626 = vmatprep.subr.mxu0 0.0
  %627 = vmatpush1.msra.mxu0 0.0
  %628 = vmatprep.subr.mxu0 0.0
  %629 = vmatpush1.msra.mxu0 0.0
  %630 = vmatprep.subr.mxu0 0.0
  %631 = vmatpush1.msra.mxu0 0.0
  %632 = vmatprep.subr.mxu0 0.0
  %633 = vmatpush1.msra.mxu0 0.0
  %634 = vmatprep.subr.mxu0 0.0
  %635 = vmatpush1.msra.mxu0 0.0
  %636 = vmatprep.mubr.f32.mxu0 0.0
  %637 = vmatmul.mubr.f32.gmra.mrb[0].mxu0 0.0
  %v638 = vpop.f32.mrb[0].mxu0
  %v639 = vadd.f32 0.0, %v638
  %v640 = vpop.f32.mrb[0].mxu0
  %v641 = vadd.f32 0.0, %v640
  %642 = vdwg.mxu0
  %v643 = vadd.f32 %v149, %v568
  %v644 = vadd.f32 %v151, %v570
  %v645 = vadd.f32 %v262, %v639
  %v646 = vadd.f32 %v264, %v641
  %v647 = vxor.u32 %v643, 2147483648
  %v648 = vmul.f32 %v647, 1.442695
  %v649 = vpow.pop %v648
  %v650 = vadd.f32 %v649, 1.0
  %v651 = vrcp.pop %v650
  %v652 = vmul.f32 1.0, %v651
  %v653 = vxor.u32 %v644, 2147483648
  %v654 = vmul.f32 %v653, 1.442695
  %v655 = vpow.pop %v654
  %v656 = vadd.f32 %v655, 1.0
  %v657 = vrcp.pop %v656
  %v658 = vmul.f32 1.0, %v657
  %v659 = vtanh.pop %v645
  %v660 = vxor.u32 %v646, 2147483648
  %v661 = vmul.f32 %v660, 1.442695
  %v662 = vpow.pop %v661
  %v663 = vadd.f32 %v662, 1.0
  %v664 = vrcp.pop %v663
  %v665 = vmul.f32 1.0, %v664
  %v666 = vmul.f32 %v658, 0.0
  %v667 = vmul.f32 %v652, %v659
  %v668 = vadd.f32 %v666, %v667
  %v669 = vtanh.pop %v668
  %v670 = vmul.f32 %v665, %v669
  %v672 = vlaneseq
  %v673 = vshrl.u32 %v672, 7
  %v674 = vsub.s32 0, %v673
  %v675 = vrot.slane %v500, %v674
  %v676 = vlaneseq
  %v677 = vshrl.u32 %v676, 7
  %v678 = vsub.s32 1, %v677
  %v679 = vrot.slane %v500, %v678
  %v680 = vlaneseq
  %v681 = vshrl.u32 %v680, 7
  %v682 = vsub.s32 2, %v681
  %v683 = vrot.slane %v500, %v682
  %v684 = vlaneseq
  %v685 = vshrl.u32 %v684, 7
  %v686 = vsub.s32 3, %v685
  %v687 = vrot.slane %v500, %v686
  %692 = vmatprep.subr.mxu0 %v373
  %693 = vmatpush1.msra.mxu0 %v372
  %694 = vmatprep.subr.mxu0 %v377
  %695 = vmatpush1.msra.mxu0 %v376
  %696 = vmatprep.subr.mxu0 %v381
  %697 = vmatpush1.msra.mxu0 %v380
  %698 = vmatprep.subr.mxu0 %v385
  %699 = vmatpush1.msra.mxu0 %v384
  %700 = vmatprep.subr.mxu0 %v389
  %701 = vmatpush1.msra.mxu0 %v388
  %702 = vmatprep.subr.mxu0 %v393
  %703 = vmatpush1.msra.mxu0 %v392
  %704 = vmatprep.subr.mxu0 %v397
  %705 = vmatpush1.msra.mxu0 %v396
  %706 = vmatprep.subr.mxu0 %v401
  %707 = vmatpush1.msra.mxu0 %v400
  %708 = vmatprep.subr.mxu0 %v405
  %709 = vmatpush1.msra.mxu0 %v404
  %710 = vmatprep.subr.mxu0 %v409
  %711 = vmatpush1.msra.mxu0 %v408
  %712 = vmatprep.subr.mxu0 %v413
  %713 = vmatpush1.msra.mxu0 %v412
  %714 = vmatprep.subr.mxu0 %v417
  %715 = vmatpush1.msra.mxu0 %v416
  %716 = vmatprep.subr.mxu0 %v421
  %717 = vmatpush1.msra.mxu0 %v420
  %718 = vmatprep.subr.mxu0 %v425
  %719 = vmatpush1.msra.mxu0 %v424
  %720 = vmatprep.subr.mxu0 %v429
  %721 = vmatpush1.msra.mxu0 %v428
  %722 = vmatprep.subr.mxu0 %v433
  %723 = vmatpush1.msra.mxu0 %v432
  %724 = vmatprep.subr.mxu0 %v437
  %725 = vmatpush1.msra.mxu0 %v436
  %726 = vmatprep.subr.mxu0 %v441
  %727 = vmatpush1.msra.mxu0 %v440
  %728 = vmatprep.subr.mxu0 %v445
  %729 = vmatpush1.msra.mxu0 %v444
  %730 = vmatprep.subr.mxu0 %v449
  %731 = vmatpush1.msra.mxu0 %v448
  %732 = vmatprep.subr.mxu0 %v453
  %733 = vmatpush1.msra.mxu0 %v452
  %734 = vmatprep.subr.mxu0 %v457
  %735 = vmatpush1.msra.mxu0 %v456
  %736 = vmatprep.subr.mxu0 %v461
  %737 = vmatpush1.msra.mxu0 %v460
  %738 = vmatprep.subr.mxu0 %v465
  %739 = vmatpush1.msra.mxu0 %v464
  %740 = vmatprep.subr.mxu0 %v469
  %741 = vmatpush1.msra.mxu0 %v468
  %742 = vmatprep.subr.mxu0 %v473
  %743 = vmatpush1.msra.mxu0 %v472
  %744 = vmatprep.subr.mxu0 %v477
  %745 = vmatpush1.msra.mxu0 %v476
  %746 = vmatprep.subr.mxu0 %v481
  %747 = vmatpush1.msra.mxu0 %v480
  %748 = vmatprep.subr.mxu0 %v485
  %749 = vmatpush1.msra.mxu0 %v484
  %750 = vmatprep.subr.mxu0 %v489
  %751 = vmatpush1.msra.mxu0 %v488
  %752 = vmatprep.subr.mxu0 %v493
  %753 = vmatpush1.msra.mxu0 %v492
  %754 = vmatprep.subr.mxu0 %v497
  %755 = vmatpush1.msra.mxu0 %v496
  %756 = vmatprep.mubr.f32.mxu0 0.0
  %757 = vmatmul.mubr.f32.gmra.mrb[0].mxu0 %v670
  %v758 = vpop.f32.mrb[0].mxu0
  %v759 = vadd.f32 %v675, %v758
  %v760 = vpop.f32.mrb[0].mxu0
  %v761 = vadd.f32 %v679, %v760
  %762 = vdwg.mxu0
  %763 = vmatprep.subr.mxu0 %v375
  %764 = vmatpush1.msra.mxu0 %v374
  %765 = vmatprep.subr.mxu0 %v379
  %766 = vmatpush1.msra.mxu0 %v378
  %767 = vmatprep.subr.mxu0 %v383
  %768 = vmatpush1.msra.mxu0 %v382
  %769 = vmatprep.subr.mxu0 %v387
  %770 = vmatpush1.msra.mxu0 %v386
  %771 = vmatprep.subr.mxu0 %v391
  %772 = vmatpush1.msra.mxu0 %v390
  %773 = vmatprep.subr.mxu0 %v395
  %774 = vmatpush1.msra.mxu0 %v394
  %775 = vmatprep.subr.mxu0 %v399
  %776 = vmatpush1.msra.mxu0 %v398
  %777 = vmatprep.subr.mxu0 %v403
  %778 = vmatpush1.msra.mxu0 %v402
  %779 = vmatprep.subr.mxu0 %v407
  %780 = vmatpush1.msra.mxu0 %v406
  %781 = vmatprep.subr.mxu0 %v411
  %782 = vmatpush1.msra.mxu0 %v410
  %783 = vmatprep.subr.mxu0 %v415
  %784 = vmatpush1.msra.mxu0 %v414
  %785 = vmatprep.subr.mxu0 %v419
  %786 = vmatpush1.msra.mxu0 %v418
  %787 = vmatprep.subr.mxu0 %v423
  %788 = vmatpush1.msra.mxu0 %v422
  %789 = vmatprep.subr.mxu0 %v427
  %790 = vmatpush1.msra.mxu0 %v426
  %791 = vmatprep.subr.mxu0 %v431
  %792 = vmatpush1.msra.mxu0 %v430
  %793 = vmatprep.subr.mxu0 %v435
  %794 = vmatpush1.msra.mxu0 %v434
  %795 = vmatprep.subr.mxu0 %v439
  %796 = vmatpush1.msra.mxu0 %v438
  %797 = vmatprep.subr.mxu0 %v443
  %798 = vmatpush1.msra.mxu0 %v442
  %799 = vmatprep.subr.mxu0 %v447
  %800 = vmatpush1.msra.mxu0 %v446
  %801 = vmatprep.subr.mxu0 %v451
  %802 = vmatpush1.msra.mxu0 %v450
  %803 = vmatprep.subr.mxu0 %v455
  %804 = vmatpush1.msra.mxu0 %v454
  %805 = vmatprep.subr.mxu0 %v459
  %806 = vmatpush1.msra.mxu0 %v458
  %807 = vmatprep.subr.mxu0 %v463
  %808 = vmatpush1.msra.mxu0 %v462
  %809 = vmatprep.subr.mxu0 %v467
  %810 = vmatpush1.msra.mxu0 %v466
  %811 = vmatprep.subr.mxu0 %v471
  %812 = vmatpush1.msra.mxu0 %v470
  %813 = vmatprep.subr.mxu0 %v475
  %814 = vmatpush1.msra.mxu0 %v474
  %815 = vmatprep.subr.mxu0 %v479
  %816 = vmatpush1.msra.mxu0 %v478
  %817 = vmatprep.subr.mxu0 %v483
  %818 = vmatpush1.msra.mxu0 %v482
  %819 = vmatprep.subr.mxu0 %v487
  %820 = vmatpush1.msra.mxu0 %v486
  %821 = vmatprep.subr.mxu0 %v491
  %822 = vmatpush1.msra.mxu0 %v490
  %823 = vmatprep.subr.mxu0 %v495
  %824 = vmatpush1.msra.mxu0 %v494
  %825 = vmatprep.subr.mxu0 %v499
  %826 = vmatpush1.msra.mxu0 %v498
  %827 = vmatprep.mubr.f32.mxu0 0.0
  %828 = vmatmul.mubr.f32.gmra.mrb[0].mxu0 %v670
  %v829 = vpop.f32.mrb[0].mxu0
  %v830 = vadd.f32 %v683, %v829
  %v831 = vpop.f32.mrb[0].mxu0
  %v832 = vadd.f32 %v687, %v831
  %833 = vdwg.mxu0
  %v834 = vxor.u32 %v759, 2147483648
  %v835 = vmul.f32 %v834, 1.442695
  %v836 = vpow.pop %v835
  %v837 = vadd.f32 %v836, 1.0
  %v838 = vrcp.pop %v837
  %v839 = vmul.f32 1.0, %v838
  %v840 = vxor.u32 %v761, 2147483648
  %v841 = vmul.f32 %v840, 1.442695
  %v842 = vpow.pop %v841
  %v843 = vadd.f32 %v842, 1.0
  %v844 = vrcp.pop %v843
  %v845 = vmul.f32 1.0, %v844
  %v846 = vtanh.pop %v830
  %v847 = vxor.u32 %v832, 2147483648
  %v848 = vmul.f32 %v847, 1.442695
  %v849 = vpow.pop %v848
  %v850 = vadd.f32 %v849, 1.0
  %v851 = vrcp.pop %v850
  %v852 = vmul.f32 1.0, %v851
  %v853 = vmul.f32 %v845, 0.0
  %v854 = vmul.f32 %v839, %v846
  %v855 = vadd.f32 %v853, %v854
  %v856 = vtanh.pop %v855
  %v857 = vmul.f32 %v852, %v856
  %858 = vmatprep.subr.mxu0 %v309
  %859 = vmatpush1.msra.mxu0 %v308
  %860 = vmatprep.subr.mxu0 %v313
  %861 = vmatpush1.msra.mxu0 %v312
  %862 = vmatprep.subr.mxu0 %v317
  %863 = vmatpush1.msra.mxu0 %v316
  %864 = vmatprep.subr.mxu0 %v321
  %865 = vmatpush1.msra.mxu0 %v320
  %866 = vmatprep.subr.mxu0 %v325
  %867 = vmatpush1.msra.mxu0 %v324
  %868 = vmatprep.subr.mxu0 %v329
  %869 = vmatpush1.msra.mxu0 %v328
  %870 = vmatprep.subr.mxu0 %v333
  %871 = vmatpush1.msra.mxu0 %v332
  %872 = vmatprep.subr.mxu0 %v337
  %873 = vmatpush1.msra.mxu0 %v336
  %874 = vmatprep.subr.mxu0 %v341
  %875 = vmatpush1.msra.mxu0 %v340
  %876 = vmatprep.subr.mxu0 %v345
  %877 = vmatpush1.msra.mxu0 %v344
  %878 = vmatprep.subr.mxu0 %v349
  %879 = vmatpush1.msra.mxu0 %v348
  %880 = vmatprep.subr.mxu0 %v353
  %881 = vmatpush1.msra.mxu0 %v352
  %882 = vmatprep.subr.mxu0 %v357
  %883 = vmatpush1.msra.mxu0 %v356
  %884 = vmatprep.subr.mxu0 %v361
  %885 = vmatpush1.msra.mxu0 %v360
  %886 = vmatprep.subr.mxu0 %v365
  %887 = vmatpush1.msra.mxu0 %v364
  %888 = vmatprep.subr.mxu0 %v369
  %889 = vmatpush1.msra.mxu0 %v368
  %890 = vmatprep.subr.mxu0 0.0
  %891 = vmatpush1.msra.mxu0 0.0
  %892 = vmatprep.subr.mxu0 0.0
  %893 = vmatpush1.msra.mxu0 0.0
  %894 = vmatprep.subr.mxu0 0.0
  %895 = vmatpush1.msra.mxu0 0.0
  %896 = vmatprep.subr.mxu0 0.0
  %897 = vmatpush1.msra.mxu0 0.0
  %898 = vmatprep.subr.mxu0 0.0
  %899 = vmatpush1.msra.mxu0 0.0
  %900 = vmatprep.subr.mxu0 0.0
  %901 = vmatpush1.msra.mxu0 0.0
  %902 = vmatprep.subr.mxu0 0.0
  %903 = vmatpush1.msra.mxu0 0.0
  %904 = vmatprep.subr.mxu0 0.0
  %905 = vmatpush1.msra.mxu0 0.0
  %906 = vmatprep.subr.mxu0 0.0
  %907 = vmatpush1.msra.mxu0 0.0
  %908 = vmatprep.subr.mxu0 0.0
  %909 = vmatpush1.msra.mxu0 0.0
  %910 = vmatprep.subr.mxu0 0.0
  %911 = vmatpush1.msra.mxu0 0.0
  %912 = vmatprep.subr.mxu0 0.0
  %913 = vmatpush1.msra.mxu0 0.0
  %914 = vmatprep.subr.mxu0 0.0
  %915 = vmatpush1.msra.mxu0 0.0
  %916 = vmatprep.subr.mxu0 0.0
  %917 = vmatpush1.msra.mxu0 0.0
  %918 = vmatprep.subr.mxu0 0.0
  %919 = vmatpush1.msra.mxu0 0.0
  %920 = vmatprep.subr.mxu0 0.0
  %921 = vmatpush1.msra.mxu0 0.0
  %922 = vmatprep.mubr.f32.mxu0 0.0
  %923 = vmatmul.mubr.f32.gmra.mrb[0].mxu0 %v670
  %v924 = vpop.f32.mrb[0].mxu0
  %v925 = vadd.f32 0.0, %v924
  %v926 = vpop.f32.mrb[0].mxu0
  %v927 = vadd.f32 0.0, %v926
  %928 = vdwg.mxu0
  %929 = vmatprep.subr.mxu0 %v311
  %930 = vmatpush1.msra.mxu0 %v310
  %931 = vmatprep.subr.mxu0 %v315
  %932 = vmatpush1.msra.mxu0 %v314
  %933 = vmatprep.subr.mxu0 %v319
  %934 = vmatpush1.msra.mxu0 %v318
  %935 = vmatprep.subr.mxu0 %v323
  %936 = vmatpush1.msra.mxu0 %v322
  %937 = vmatprep.subr.mxu0 %v327
  %938 = vmatpush1.msra.mxu0 %v326
  %939 = vmatprep.subr.mxu0 %v331
  %940 = vmatpush1.msra.mxu0 %v330
  %941 = vmatprep.subr.mxu0 %v335
  %942 = vmatpush1.msra.mxu0 %v334
  %943 = vmatprep.subr.mxu0 %v339
  %944 = vmatpush1.msra.mxu0 %v338
  %945 = vmatprep.subr.mxu0 %v343
  %946 = vmatpush1.msra.mxu0 %v342
  %947 = vmatprep.subr.mxu0 %v347
  %948 = vmatpush1.msra.mxu0 %v346
  %949 = vmatprep.subr.mxu0 %v351
  %950 = vmatpush1.msra.mxu0 %v350
  %951 = vmatprep.subr.mxu0 %v355
  %952 = vmatpush1.msra.mxu0 %v354
  %953 = vmatprep.subr.mxu0 %v359
  %954 = vmatpush1.msra.mxu0 %v358
  %955 = vmatprep.subr.mxu0 %v363
  %956 = vmatpush1.msra.mxu0 %v362
  %957 = vmatprep.subr.mxu0 %v367
  %958 = vmatpush1.msra.mxu0 %v366
  %959 = vmatprep.subr.mxu0 %v371
  %960 = vmatpush1.msra.mxu0 %v370
  %961 = vmatprep.subr.mxu0 0.0
  %962 = vmatpush1.msra.mxu0 0.0
  %963 = vmatprep.subr.mxu0 0.0
  %964 = vmatpush1.msra.mxu0 0.0
  %965 = vmatprep.subr.mxu0 0.0
  %966 = vmatpush1.msra.mxu0 0.0
  %967 = vmatprep.subr.mxu0 0.0
  %968 = vmatpush1.msra.mxu0 0.0
  %969 = vmatprep.subr.mxu0 0.0
  %970 = vmatpush1.msra.mxu0 0.0
  %971 = vmatprep.subr.mxu0 0.0
  %972 = vmatpush1.msra.mxu0 0.0
  %973 = vmatprep.subr.mxu0 0.0
  %974 = vmatpush1.msra.mxu0 0.0
  %975 = vmatprep.subr.mxu0 0.0
  %976 = vmatpush1.msra.mxu0 0.0
  %977 = vmatprep.subr.mxu0 0.0
  %978 = vmatpush1.msra.mxu0 0.0
  %979 = vmatprep.subr.mxu0 0.0
  %980 = vmatpush1.msra.mxu0 0.0
  %981 = vmatprep.subr.mxu0 0.0
  %982 = vmatpush1.msra.mxu0 0.0
  %983 = vmatprep.subr.mxu0 0.0
  %984 = vmatpush1.msra.mxu0 0.0
  %985 = vmatprep.subr.mxu0 0.0
  %986 = vmatpush1.msra.mxu0 0.0
  %987 = vmatprep.subr.mxu0 0.0
  %988 = vmatpush1.msra.mxu0 0.0
  %989 = vmatprep.subr.mxu0 0.0
  %990 = vmatpush1.msra.mxu0 0.0
  %991 = vmatprep.subr.mxu0 0.0
  %992 = vmatpush1.msra.mxu0 0.0
  %993 = vmatprep.mubr.f32.mxu0 0.0
  %994 = vmatmul.mubr.f32.gmra.mrb[0].mxu0 %v670
  %v995 = vpop.f32.mrb[0].mxu0
  %v996 = vadd.f32 0.0, %v995
  %v997 = vpop.f32.mrb[0].mxu0
  %v998 = vadd.f32 0.0, %v997
  %999 = vdwg.mxu0
  %v1000 = vadd.f32 %v155, %v925
  %v1001 = vadd.f32 %v157, %v927
  %v1002 = vadd.f32 %v268, %v996
  %v1003 = vadd.f32 %v270, %v998
  %v1004 = vxor.u32 %v1000, 2147483648
  %v1005 = vmul.f32 %v1004, 1.442695
  %v1006 = vpow.pop %v1005
  %v1007 = vadd.f32 %v1006, 1.0
  %v1008 = vrcp.pop %v1007
  %v1009 = vmul.f32 1.0, %v1008
  %v1010 = vxor.u32 %v1001, 2147483648
  %v1011 = vmul.f32 %v1010, 1.442695
  %v1012 = vpow.pop %v1011
  %v1013 = vadd.f32 %v1012, 1.0
  %v1014 = vrcp.pop %v1013
  %v1015 = vmul.f32 1.0, %v1014
  %v1016 = vtanh.pop %v1002
  %v1017 = vxor.u32 %v1003, 2147483648
  %v1018 = vmul.f32 %v1017, 1.442695
  %v1019 = vpow.pop %v1018
  %v1020 = vadd.f32 %v1019, 1.0
  %v1021 = vrcp.pop %v1020
  %v1022 = vmul.f32 1.0, %v1021
  %v1023 = vmul.f32 %v1015, %v668
  %v1024 = vmul.f32 %v1009, %v1016
  %v1025 = vadd.f32 %v1023, %v1024
  %v1026 = vtanh.pop %v1025
  %v1027 = vmul.f32 %v1022, %v1026
  %1028 = vmatprep.subr.mxu0 %v373
  %1029 = vmatpush1.msra.mxu0 %v372
  %1030 = vmatprep.subr.mxu0 %v377
  %1031 = vmatpush1.msra.mxu0 %v376
  %1032 = vmatprep.subr.mxu0 %v381
  %1033 = vmatpush1.msra.mxu0 %v380
  %1034 = vmatprep.subr.mxu0 %v385
  %1035 = vmatpush1.msra.mxu0 %v384
  %1036 = vmatprep.subr.mxu0 %v389
  %1037 = vmatpush1.msra.mxu0 %v388
  %1038 = vmatprep.subr.mxu0 %v393
  %1039 = vmatpush1.msra.mxu0 %v392
  %1040 = vmatprep.subr.mxu0 %v397
  %1041 = vmatpush1.msra.mxu0 %v396
  %1042 = vmatprep.subr.mxu0 %v401
  %1043 = vmatpush1.msra.mxu0 %v400
  %1044 = vmatprep.subr.mxu0 %v405
  %1045 = vmatpush1.msra.mxu0 %v404
  %1046 = vmatprep.subr.mxu0 %v409
  %1047 = vmatpush1.msra.mxu0 %v408
  %1048 = vmatprep.subr.mxu0 %v413
  %1049 = vmatpush1.msra.mxu0 %v412
  %1050 = vmatprep.subr.mxu0 %v417
  %1051 = vmatpush1.msra.mxu0 %v416
  %1052 = vmatprep.subr.mxu0 %v421
  %1053 = vmatpush1.msra.mxu0 %v420
  %1054 = vmatprep.subr.mxu0 %v425
  %1055 = vmatpush1.msra.mxu0 %v424
  %1056 = vmatprep.subr.mxu0 %v429
  %1057 = vmatpush1.msra.mxu0 %v428
  %1058 = vmatprep.subr.mxu0 %v433
  %1059 = vmatpush1.msra.mxu0 %v432
  %1060 = vmatprep.subr.mxu0 %v437
  %1061 = vmatpush1.msra.mxu0 %v436
  %1062 = vmatprep.subr.mxu0 %v441
  %1063 = vmatpush1.msra.mxu0 %v440
  %1064 = vmatprep.subr.mxu0 %v445
  %1065 = vmatpush1.msra.mxu0 %v444
  %1066 = vmatprep.subr.mxu0 %v449
  %1067 = vmatpush1.msra.mxu0 %v448
  %1068 = vmatprep.subr.mxu0 %v453
  %1069 = vmatpush1.msra.mxu0 %v452
  %1070 = vmatprep.subr.mxu0 %v457
  %1071 = vmatpush1.msra.mxu0 %v456
  %1072 = vmatprep.subr.mxu0 %v461
  %1073 = vmatpush1.msra.mxu0 %v460
  %1074 = vmatprep.subr.mxu0 %v465
  %1075 = vmatpush1.msra.mxu0 %v464
  %1076 = vmatprep.subr.mxu0 %v469
  %1077 = vmatpush1.msra.mxu0 %v468
  %1078 = vmatprep.subr.mxu0 %v473
  %1079 = vmatpush1.msra.mxu0 %v472
  %1080 = vmatprep.subr.mxu0 %v477
  %1081 = vmatpush1.msra.mxu0 %v476
  %1082 = vmatprep.subr.mxu0 %v481
  %1083 = vmatpush1.msra.mxu0 %v480
  %1084 = vmatprep.subr.mxu0 %v485
  %1085 = vmatpush1.msra.mxu0 %v484
  %1086 = vmatprep.subr.mxu0 %v489
  %1087 = vmatpush1.msra.mxu0 %v488
  %1088 = vmatprep.subr.mxu0 %v493
  %1089 = vmatpush1.msra.mxu0 %v492
  %1090 = vmatprep.subr.mxu0 %v497
  %1091 = vmatpush1.msra.mxu0 %v496
  %1092 = vmatprep.mubr.f32.mxu0 %v857
  %1093 = vmatmul.mubr.f32.gmra.mrb[0].mxu0 %v1027
  %v1094 = vpop.f32.mrb[0].mxu0
  %v1095 = vadd.f32 %v675, %v1094
  %v1096 = vpop.f32.mrb[0].mxu0
  %v1097 = vadd.f32 %v679, %v1096
  %1098 = vdwg.mxu0
  %1099 = vmatprep.subr.mxu0 %v375
  %1100 = vmatpush1.msra.mxu0 %v374
  %1101 = vmatprep.subr.mxu0 %v379
  %1102 = vmatpush1.msra.mxu0 %v378
  %1103 = vmatprep.subr.mxu0 %v383
  %1104 = vmatpush1.msra.mxu0 %v382
  %1105 = vmatprep.subr.mxu0 %v387
  %1106 = vmatpush1.msra.mxu0 %v386
  %1107 = vmatprep.subr.mxu0 %v391
  %1108 = vmatpush1.msra.mxu0 %v390
  %1109 = vmatprep.subr.mxu0 %v395
  %1110 = vmatpush1.msra.mxu0 %v394
  %1111 = vmatprep.subr.mxu0 %v399
  %1112 = vmatpush1.msra.mxu0 %v398
  %1113 = vmatprep.subr.mxu0 %v403
  %1114 = vmatpush1.msra.mxu0 %v402
  %1115 = vmatprep.subr.mxu0 %v407
  %1116 = vmatpush1.msra.mxu0 %v406
  %1117 = vmatprep.subr.mxu0 %v411
  %1118 = vmatpush1.msra.mxu0 %v410
  %1119 = vmatprep.subr.mxu0 %v415
  %1120 = vmatpush1.msra.mxu0 %v414
  %1121 = vmatprep.subr.mxu0 %v419
  %1122 = vmatpush1.msra.mxu0 %v418
  %1123 = vmatprep.subr.mxu0 %v423
  %1124 = vmatpush1.msra.mxu0 %v422
  %1125 = vmatprep.subr.mxu0 %v427
  %1126 = vmatpush1.msra.mxu0 %v426
  %1127 = vmatprep.subr.mxu0 %v431
  %1128 = vmatpush1.msra.mxu0 %v430
  %1129 = vmatprep.subr.mxu0 %v435
  %1130 = vmatpush1.msra.mxu0 %v434
  %1131 = vmatprep.subr.mxu0 %v439
  %1132 = vmatpush1.msra.mxu0 %v438
  %1133 = vmatprep.subr.mxu0 %v443
  %1134 = vmatpush1.msra.mxu0 %v442
  %1135 = vmatprep.subr.mxu0 %v447
  %1136 = vmatpush1.msra.mxu0 %v446
  %1137 = vmatprep.subr.mxu0 %v451
  %1138 = vmatpush1.msra.mxu0 %v450
  %1139 = vmatprep.subr.mxu0 %v455
  %1140 = vmatpush1.msra.mxu0 %v454
  %1141 = vmatprep.subr.mxu0 %v459
  %1142 = vmatpush1.msra.mxu0 %v458
  %1143 = vmatprep.subr.mxu0 %v463
  %1144 = vmatpush1.msra.mxu0 %v462
  %1145 = vmatprep.subr.mxu0 %v467
  %1146 = vmatpush1.msra.mxu0 %v466
  %1147 = vmatprep.subr.mxu0 %v471
  %1148 = vmatpush1.msra.mxu0 %v470
  %1149 = vmatprep.subr.mxu0 %v475
  %1150 = vmatpush1.msra.mxu0 %v474
  %1151 = vmatprep.subr.mxu0 %v479
  %1152 = vmatpush1.msra.mxu0 %v478
  %1153 = vmatprep.subr.mxu0 %v483
  %1154 = vmatpush1.msra.mxu0 %v482
  %1155 = vmatprep.subr.mxu0 %v487
  %1156 = vmatpush1.msra.mxu0 %v486
  %1157 = vmatprep.subr.mxu0 %v491
  %1158 = vmatpush1.msra.mxu0 %v490
  %1159 = vmatprep.subr.mxu0 %v495
  %1160 = vmatpush1.msra.mxu0 %v494
  %1161 = vmatprep.subr.mxu0 %v499
  %1162 = vmatpush1.msra.mxu0 %v498
  %1163 = vmatprep.mubr.f32.mxu0 %v857
  %1164 = vmatmul.mubr.f32.gmra.mrb[0].mxu0 %v1027
  %v1165 = vpop.f32.mrb[0].mxu0
  %v1166 = vadd.f32 %v683, %v1165
  %v1167 = vpop.f32.mrb[0].mxu0
  %v1168 = vadd.f32 %v687, %v1167
  %1169 = vdwg.mxu0
  %v1170 = vxor.u32 %v1095, 2147483648
  %v1171 = vmul.f32 %v1170, 1.442695
  %v1172 = vpow.pop %v1171
  %v1173 = vadd.f32 %v1172, 1.0
  %v1174 = vrcp.pop %v1173
  %v1175 = vmul.f32 1.0, %v1174
  %v1176 = vxor.u32 %v1097, 2147483648
  %v1177 = vmul.f32 %v1176, 1.442695
  %v1178 = vpow.pop %v1177
  %v1179 = vadd.f32 %v1178, 1.0
  %v1180 = vrcp.pop %v1179
  %v1181 = vmul.f32 1.0, %v1180
  %v1182 = vtanh.pop %v1166
  %v1183 = vxor.u32 %v1168, 2147483648
  %v1184 = vmul.f32 %v1183, 1.442695
  %v1185 = vpow.pop %v1184
  %v1186 = vadd.f32 %v1185, 1.0
  %v1187 = vrcp.pop %v1186
  %v1188 = vmul.f32 1.0, %v1187
  %v1189 = vmul.f32 %v1181, %v855
  %v1190 = vmul.f32 %v1175, %v1182
  %v1191 = vadd.f32 %v1189, %v1190
  %v1192 = vtanh.pop %v1191
  %v1193 = vmul.f32 %v1188, %v1192
  %1194 = vmatprep.subr.mxu0 %v309
  %1195 = vmatpush1.msra.mxu0 %v308
  %1196 = vmatprep.subr.mxu0 %v313
  %1197 = vmatpush1.msra.mxu0 %v312
  %1198 = vmatprep.subr.mxu0 %v317
  %1199 = vmatpush1.msra.mxu0 %v316
  %1200 = vmatprep.subr.mxu0 %v321
  %1201 = vmatpush1.msra.mxu0 %v320
  %1202 = vmatprep.subr.mxu0 %v325
  %1203 = vmatpush1.msra.mxu0 %v324
  %1204 = vmatprep.subr.mxu0 %v329
  %1205 = vmatpush1.msra.mxu0 %v328
  %1206 = vmatprep.subr.mxu0 %v333
  %1207 = vmatpush1.msra.mxu0 %v332
  %1208 = vmatprep.subr.mxu0 %v337
  %1209 = vmatpush1.msra.mxu0 %v336
  %1210 = vmatprep.subr.mxu0 %v341
  %1211 = vmatpush1.msra.mxu0 %v340
  %1212 = vmatprep.subr.mxu0 %v345
  %1213 = vmatpush1.msra.mxu0 %v344
  %1214 = vmatprep.subr.mxu0 %v349
  %1215 = vmatpush1.msra.mxu0 %v348
  %1216 = vmatprep.subr.mxu0 %v353
  %1217 = vmatpush1.msra.mxu0 %v352
  %1218 = vmatprep.subr.mxu0 %v357
  %1219 = vmatpush1.msra.mxu0 %v356
  %1220 = vmatprep.subr.mxu0 %v361
  %1221 = vmatpush1.msra.mxu0 %v360
  %1222 = vmatprep.subr.mxu0 %v365
  %1223 = vmatpush1.msra.mxu0 %v364
  %1224 = vmatprep.subr.mxu0 %v369
  %1225 = vmatpush1.msra.mxu0 %v368
  %1226 = vmatprep.subr.mxu0 0.0
  %1227 = vmatpush1.msra.mxu0 0.0
  %1228 = vmatprep.subr.mxu0 0.0
  %1229 = vmatpush1.msra.mxu0 0.0
  %1230 = vmatprep.subr.mxu0 0.0
  %1231 = vmatpush1.msra.mxu0 0.0
  %1232 = vmatprep.subr.mxu0 0.0
  %1233 = vmatpush1.msra.mxu0 0.0
  %1234 = vmatprep.subr.mxu0 0.0
  %1235 = vmatpush1.msra.mxu0 0.0
  %1236 = vmatprep.subr.mxu0 0.0
  %1237 = vmatpush1.msra.mxu0 0.0
  %1238 = vmatprep.subr.mxu0 0.0
  %1239 = vmatpush1.msra.mxu0 0.0
  %1240 = vmatprep.subr.mxu0 0.0
  %1241 = vmatpush1.msra.mxu0 0.0
  %1242 = vmatprep.subr.mxu0 0.0
  %1243 = vmatpush1.msra.mxu0 0.0
  %1244 = vmatprep.subr.mxu0 0.0
  %1245 = vmatpush1.msra.mxu0 0.0
  %1246 = vmatprep.subr.mxu0 0.0
  %1247 = vmatpush1.msra.mxu0 0.0
  %1248 = vmatprep.subr.mxu0 0.0
  %1249 = vmatpush1.msra.mxu0 0.0
  %1250 = vmatprep.subr.mxu0 0.0
  %1251 = vmatpush1.msra.mxu0 0.0
  %1252 = vmatprep.subr.mxu0 0.0
  %1253 = vmatpush1.msra.mxu0 0.0
  %1254 = vmatprep.subr.mxu0 0.0
  %1255 = vmatpush1.msra.mxu0 0.0
  %1256 = vmatprep.subr.mxu0 0.0
  %1257 = vmatpush1.msra.mxu0 0.0
  %1258 = vmatprep.mubr.f32.mxu0 0.0
  %1259 = vmatmul.mubr.f32.gmra.mrb[0].mxu0 %v1027
  %v1260 = vpop.f32.mrb[0].mxu0
  %v1261 = vadd.f32 0.0, %v1260
  %v1262 = vpop.f32.mrb[0].mxu0
  %v1263 = vadd.f32 0.0, %v1262
  %1264 = vdwg.mxu0
  %1265 = vmatprep.subr.mxu0 %v311
  %1266 = vmatpush1.msra.mxu0 %v310
  %1267 = vmatprep.subr.mxu0 %v315
  %1268 = vmatpush1.msra.mxu0 %v314
  %1269 = vmatprep.subr.mxu0 %v319
  %1270 = vmatpush1.msra.mxu0 %v318
  %1271 = vmatprep.subr.mxu0 %v323
  %1272 = vmatpush1.msra.mxu0 %v322
  %1273 = vmatprep.subr.mxu0 %v327
  %1274 = vmatpush1.msra.mxu0 %v326
  %1275 = vmatprep.subr.mxu0 %v331
  %1276 = vmatpush1.msra.mxu0 %v330
  %1277 = vmatprep.subr.mxu0 %v335
  %1278 = vmatpush1.msra.mxu0 %v334
  %1279 = vmatprep.subr.mxu0 %v339
  %1280 = vmatpush1.msra.mxu0 %v338
  %1281 = vmatprep.subr.mxu0 %v343
  %1282 = vmatpush1.msra.mxu0 %v342
  %1283 = vmatprep.subr.mxu0 %v347
  %1284 = vmatpush1.msra.mxu0 %v346
  %1285 = vmatprep.subr.mxu0 %v351
  %1286 = vmatpush1.msra.mxu0 %v350
  %1287 = vmatprep.subr.mxu0 %v355
  %1288 = vmatpush1.msra.mxu0 %v354
  %1289 = vmatprep.subr.mxu0 %v359
  %1290 = vmatpush1.msra.mxu0 %v358
  %1291 = vmatprep.subr.mxu0 %v363
  %1292 = vmatpush1.msra.mxu0 %v362
  %1293 = vmatprep.subr.mxu0 %v367
  %1294 = vmatpush1.msra.mxu0 %v366
  %1295 = vmatprep.subr.mxu0 %v371
  %1296 = vmatpush1.msra.mxu0 %v370
  %1297 = vmatprep.subr.mxu0 0.0
  %1298 = vmatpush1.msra.mxu0 0.0
  %1299 = vmatprep.subr.mxu0 0.0
  %1300 = vmatpush1.msra.mxu0 0.0
  %1301 = vmatprep.subr.mxu0 0.0
  %1302 = vmatpush1.msra.mxu0 0.0
  %1303 = vmatprep.subr.mxu0 0.0
  %1304 = vmatpush1.msra.mxu0 0.0
  %1305 = vmatprep.subr.mxu0 0.0
  %1306 = vmatpush1.msra.mxu0 0.0
  %1307 = vmatprep.subr.mxu0 0.0
  %1308 = vmatpush1.msra.mxu0 0.0
  %1309 = vmatprep.subr.mxu0 0.0
  %1310 = vmatpush1.msra.mxu0 0.0
  %1311 = vmatprep.subr.mxu0 0.0
  %1312 = vmatpush1.msra.mxu0 0.0
  %1313 = vmatprep.subr.mxu0 0.0
  %1314 = vmatpush1.msra.mxu0 0.0
  %1315 = vmatprep.subr.mxu0 0.0
  %1316 = vmatpush1.msra.mxu0 0.0
  %1317 = vmatprep.subr.mxu0 0.0
  %1318 = vmatpush1.msra.mxu0 0.0
  %1319 = vmatprep.subr.mxu0 0.0
  %1320 = vmatpush1.msra.mxu0 0.0
  %1321 = vmatprep.subr.mxu0 0.0
  %1322 = vmatpush1.msra.mxu0 0.0
  %1323 = vmatprep.subr.mxu0 0.0
  %1324 = vmatpush1.msra.mxu0 0.0
  %1325 = vmatprep.subr.mxu0 0.0
  %1326 = vmatpush1.msra.mxu0 0.0
  %1327 = vmatprep.subr.mxu0 0.0
  %1328 = vmatpush1.msra.mxu0 0.0
  %1329 = vmatprep.mubr.f32.mxu0 0.0
  %1330 = vmatmul.mubr.f32.gmra.mrb[0].mxu0 %v1027
  %v1331 = vpop.f32.mrb[0].mxu0
  %v1332 = vadd.f32 0.0, %v1331
  %v1333 = vpop.f32.mrb[0].mxu0
  %v1334 = vadd.f32 0.0, %v1333
  %1335 = vdwg.mxu0
  %v1336 = vadd.f32 %v161, %v1261
  %v1337 = vadd.f32 %v163, %v1263
  %v1338 = vadd.f32 %v274, %v1332
  %v1339 = vadd.f32 %v276, %v1334
  %v1340 = vxor.u32 %v1336, 2147483648
  %v1341 = vmul.f32 %v1340, 1.442695
  %v1342 = vpow.pop %v1341
  %v1343 = vadd.f32 %v1342, 1.0
  %v1344 = vrcp.pop %v1343
  %v1345 = vmul.f32 1.0, %v1344
  %v1346 = vxor.u32 %v1337, 2147483648
  %v1347 = vmul.f32 %v1346, 1.442695
  %v1348 = vpow.pop %v1347
  %v1349 = vadd.f32 %v1348, 1.0
  %v1350 = vrcp.pop %v1349
  %v1351 = vmul.f32 1.0, %v1350
  %v1352 = vtanh.pop %v1338
  %v1353 = vxor.u32 %v1339, 2147483648
  %v1354 = vmul.f32 %v1353, 1.442695
  %v1355 = vpow.pop %v1354
  %v1356 = vadd.f32 %v1355, 1.0
  %v1357 = vrcp.pop %v1356
  %v1358 = vmul.f32 1.0, %v1357
  %v1359 = vmul.f32 %v1351, %v1025
  %v1360 = vmul.f32 %v1345, %v1352
  %v1361 = vadd.f32 %v1359, %v1360
  %v1362 = vtanh.pop %v1361
  %v1363 = vmul.f32 %v1358, %v1362
  %1364 = vmatprep.subr.mxu0 %v373
  %1365 = vmatpush1.msra.mxu0 %v372
  %1366 = vmatprep.subr.mxu0 %v377
  %1367 = vmatpush1.msra.mxu0 %v376
  %1368 = vmatprep.subr.mxu0 %v381
  %1369 = vmatpush1.msra.mxu0 %v380
  %1370 = vmatprep.subr.mxu0 %v385
  %1371 = vmatpush1.msra.mxu0 %v384
  %1372 = vmatprep.subr.mxu0 %v389
  %1373 = vmatpush1.msra.mxu0 %v388
  %1374 = vmatprep.subr.mxu0 %v393
  %1375 = vmatpush1.msra.mxu0 %v392
  %1376 = vmatprep.subr.mxu0 %v397
  %1377 = vmatpush1.msra.mxu0 %v396
  %1378 = vmatprep.subr.mxu0 %v401
  %1379 = vmatpush1.msra.mxu0 %v400
  %1380 = vmatprep.subr.mxu0 %v405
  %1381 = vmatpush1.msra.mxu0 %v404
  %1382 = vmatprep.subr.mxu0 %v409
  %1383 = vmatpush1.msra.mxu0 %v408
  %1384 = vmatprep.subr.mxu0 %v413
  %1385 = vmatpush1.msra.mxu0 %v412
  %1386 = vmatprep.subr.mxu0 %v417
  %1387 = vmatpush1.msra.mxu0 %v416
  %1388 = vmatprep.subr.mxu0 %v421
  %1389 = vmatpush1.msra.mxu0 %v420
  %1390 = vmatprep.subr.mxu0 %v425
  %1391 = vmatpush1.msra.mxu0 %v424
  %1392 = vmatprep.subr.mxu0 %v429
  %1393 = vmatpush1.msra.mxu0 %v428
  %1394 = vmatprep.subr.mxu0 %v433
  %1395 = vmatpush1.msra.mxu0 %v432
  %1396 = vmatprep.subr.mxu0 %v437
  %1397 = vmatpush1.msra.mxu0 %v436
  %1398 = vmatprep.subr.mxu0 %v441
  %1399 = vmatpush1.msra.mxu0 %v440
  %1400 = vmatprep.subr.mxu0 %v445
  %1401 = vmatpush1.msra.mxu0 %v444
  %1402 = vmatprep.subr.mxu0 %v449
  %1403 = vmatpush1.msra.mxu0 %v448
  %1404 = vmatprep.subr.mxu0 %v453
  %1405 = vmatpush1.msra.mxu0 %v452
  %1406 = vmatprep.subr.mxu0 %v457
  %1407 = vmatpush1.msra.mxu0 %v456
  %1408 = vmatprep.subr.mxu0 %v461
  %1409 = vmatpush1.msra.mxu0 %v460
  %1410 = vmatprep.subr.mxu0 %v465
  %1411 = vmatpush1.msra.mxu0 %v464
  %1412 = vmatprep.subr.mxu0 %v469
  %1413 = vmatpush1.msra.mxu0 %v468
  %1414 = vmatprep.subr.mxu0 %v473
  %1415 = vmatpush1.msra.mxu0 %v472
  %1416 = vmatprep.subr.mxu0 %v477
  %1417 = vmatpush1.msra.mxu0 %v476
  %1418 = vmatprep.subr.mxu0 %v481
  %1419 = vmatpush1.msra.mxu0 %v480
  %1420 = vmatprep.subr.mxu0 %v485
  %1421 = vmatpush1.msra.mxu0 %v484
  %1422 = vmatprep.subr.mxu0 %v489
  %1423 = vmatpush1.msra.mxu0 %v488
  %1424 = vmatprep.subr.mxu0 %v493
  %1425 = vmatpush1.msra.mxu0 %v492
  %1426 = vmatprep.subr.mxu0 %v497
  %1427 = vmatpush1.msra.mxu0 %v496
  %1428 = vmatprep.mubr.f32.mxu0 %v1193
  %1429 = vmatmul.mubr.f32.gmra.mrb[0].mxu0 %v1363
  %v1430 = vpop.f32.mrb[0].mxu0
  %v1431 = vadd.f32 %v675, %v1430
  %v1432 = vpop.f32.mrb[0].mxu0
  %v1433 = vadd.f32 %v679, %v1432
  %1434 = vdwg.mxu0
  %1435 = vmatprep.subr.mxu0 %v375
  %1436 = vmatpush1.msra.mxu0 %v374
  %1437 = vmatprep.subr.mxu0 %v379
  %1438 = vmatpush1.msra.mxu0 %v378
  %1439 = vmatprep.subr.mxu0 %v383
  %1440 = vmatpush1.msra.mxu0 %v382
  %1441 = vmatprep.subr.mxu0 %v387
  %1442 = vmatpush1.msra.mxu0 %v386
  %1443 = vmatprep.subr.mxu0 %v391
  %1444 = vmatpush1.msra.mxu0 %v390
  %1445 = vmatprep.subr.mxu0 %v395
  %1446 = vmatpush1.msra.mxu0 %v394
  %1447 = vmatprep.subr.mxu0 %v399
  %1448 = vmatpush1.msra.mxu0 %v398
  %1449 = vmatprep.subr.mxu0 %v403
  %1450 = vmatpush1.msra.mxu0 %v402
  %1451 = vmatprep.subr.mxu0 %v407
  %1452 = vmatpush1.msra.mxu0 %v406
  %1453 = vmatprep.subr.mxu0 %v411
  %1454 = vmatpush1.msra.mxu0 %v410
  %1455 = vmatprep.subr.mxu0 %v415
  %1456 = vmatpush1.msra.mxu0 %v414
  %1457 = vmatprep.subr.mxu0 %v419
  %1458 = vmatpush1.msra.mxu0 %v418
  %1459 = vmatprep.subr.mxu0 %v423
  %1460 = vmatpush1.msra.mxu0 %v422
  %1461 = vmatprep.subr.mxu0 %v427
  %1462 = vmatpush1.msra.mxu0 %v426
  %1463 = vmatprep.subr.mxu0 %v431
  %1464 = vmatpush1.msra.mxu0 %v430
  %1465 = vmatprep.subr.mxu0 %v435
  %1466 = vmatpush1.msra.mxu0 %v434
  %1467 = vmatprep.subr.mxu0 %v439
  %1468 = vmatpush1.msra.mxu0 %v438
  %1469 = vmatprep.subr.mxu0 %v443
  %1470 = vmatpush1.msra.mxu0 %v442
  %1471 = vmatprep.subr.mxu0 %v447
  %1472 = vmatpush1.msra.mxu0 %v446
  %1473 = vmatprep.subr.mxu0 %v451
  %1474 = vmatpush1.msra.mxu0 %v450
  %1475 = vmatprep.subr.mxu0 %v455
  %1476 = vmatpush1.msra.mxu0 %v454
  %1477 = vmatprep.subr.mxu0 %v459
  %1478 = vmatpush1.msra.mxu0 %v458
  %1479 = vmatprep.subr.mxu0 %v463
  %1480 = vmatpush1.msra.mxu0 %v462
  %1481 = vmatprep.subr.mxu0 %v467
  %1482 = vmatpush1.msra.mxu0 %v466
  %1483 = vmatprep.subr.mxu0 %v471
  %1484 = vmatpush1.msra.mxu0 %v470
  %1485 = vmatprep.subr.mxu0 %v475
  %1486 = vmatpush1.msra.mxu0 %v474
  %1487 = vmatprep.subr.mxu0 %v479
  %1488 = vmatpush1.msra.mxu0 %v478
  %1489 = vmatprep.subr.mxu0 %v483
  %1490 = vmatpush1.msra.mxu0 %v482
  %1491 = vmatprep.subr.mxu0 %v487
  %1492 = vmatpush1.msra.mxu0 %v486
  %1493 = vmatprep.subr.mxu0 %v491
  %1494 = vmatpush1.msra.mxu0 %v490
  %1495 = vmatprep.subr.mxu0 %v495
  %1496 = vmatpush1.msra.mxu0 %v494
  %1497 = vmatprep.subr.mxu0 %v499
  %1498 = vmatpush1.msra.mxu0 %v498
  %1499 = vmatprep.mubr.f32.mxu0 %v1193
  %1500 = vmatmul.mubr.f32.gmra.mrb[0].mxu0 %v1363
  %v1501 = vpop.f32.mrb[0].mxu0
  %v1502 = vadd.f32 %v683, %v1501
  %v1503 = vpop.f32.mrb[0].mxu0
  %v1504 = vadd.f32 %v687, %v1503
  %1505 = vdwg.mxu0
  %v1506 = vxor.u32 %v1431, 2147483648
  %v1507 = vmul.f32 %v1506, 1.442695
  %v1508 = vpow.pop %v1507
  %v1509 = vadd.f32 %v1508, 1.0
  %v1510 = vrcp.pop %v1509
  %v1511 = vmul.f32 1.0, %v1510
  %v1512 = vxor.u32 %v1433, 2147483648
  %v1513 = vmul.f32 %v1512, 1.442695
  %v1514 = vpow.pop %v1513
  %v1515 = vadd.f32 %v1514, 1.0
  %v1516 = vrcp.pop %v1515
  %v1517 = vmul.f32 1.0, %v1516
  %v1518 = vtanh.pop %v1502
  %v1519 = vxor.u32 %v1504, 2147483648
  %v1520 = vmul.f32 %v1519, 1.442695
  %v1521 = vpow.pop %v1520
  %v1522 = vadd.f32 %v1521, 1.0
  %v1523 = vrcp.pop %v1522
  %v1524 = vmul.f32 1.0, %v1523
  %v1525 = vmul.f32 %v1517, %v1191
  %v1526 = vmul.f32 %v1511, %v1518
  %v1527 = vadd.f32 %v1525, %v1526
  %v1528 = vtanh.pop %v1527
  %v1529 = vmul.f32 %v1524, %v1528
  %1530 = vmatprep.subr.mxu0 %v309
  %1531 = vmatpush1.msra.mxu0 %v308
  %1532 = vmatprep.subr.mxu0 %v313
  %1533 = vmatpush1.msra.mxu0 %v312
  %1534 = vmatprep.subr.mxu0 %v317
  %1535 = vmatpush1.msra.mxu0 %v316
  %1536 = vmatprep.subr.mxu0 %v321
  %1537 = vmatpush1.msra.mxu0 %v320
  %1538 = vmatprep.subr.mxu0 %v325
  %1539 = vmatpush1.msra.mxu0 %v324
  %1540 = vmatprep.subr.mxu0 %v329
  %1541 = vmatpush1.msra.mxu0 %v328
  %1542 = vmatprep.subr.mxu0 %v333
  %1543 = vmatpush1.msra.mxu0 %v332
  %1544 = vmatprep.subr.mxu0 %v337
  %1545 = vmatpush1.msra.mxu0 %v336
  %1546 = vmatprep.subr.mxu0 %v341
  %1547 = vmatpush1.msra.mxu0 %v340
  %1548 = vmatprep.subr.mxu0 %v345
  %1549 = vmatpush1.msra.mxu0 %v344
  %1550 = vmatprep.subr.mxu0 %v349
  %1551 = vmatpush1.msra.mxu0 %v348
  %1552 = vmatprep.subr.mxu0 %v353
  %1553 = vmatpush1.msra.mxu0 %v352
  %1554 = vmatprep.subr.mxu0 %v357
  %1555 = vmatpush1.msra.mxu0 %v356
  %1556 = vmatprep.subr.mxu0 %v361
  %1557 = vmatpush1.msra.mxu0 %v360
  %1558 = vmatprep.subr.mxu0 %v365
  %1559 = vmatpush1.msra.mxu0 %v364
  %1560 = vmatprep.subr.mxu0 %v369
  %1561 = vmatpush1.msra.mxu0 %v368
  %1562 = vmatprep.subr.mxu0 0.0
  %1563 = vmatpush1.msra.mxu0 0.0
  %1564 = vmatprep.subr.mxu0 0.0
  %1565 = vmatpush1.msra.mxu0 0.0
  %1566 = vmatprep.subr.mxu0 0.0
  %1567 = vmatpush1.msra.mxu0 0.0
  %1568 = vmatprep.subr.mxu0 0.0
  %1569 = vmatpush1.msra.mxu0 0.0
  %1570 = vmatprep.subr.mxu0 0.0
  %1571 = vmatpush1.msra.mxu0 0.0
  %1572 = vmatprep.subr.mxu0 0.0
  %1573 = vmatpush1.msra.mxu0 0.0
  %1574 = vmatprep.subr.mxu0 0.0
  %1575 = vmatpush1.msra.mxu0 0.0
  %1576 = vmatprep.subr.mxu0 0.0
  %1577 = vmatpush1.msra.mxu0 0.0
  %1578 = vmatprep.subr.mxu0 0.0
  %1579 = vmatpush1.msra.mxu0 0.0
  %1580 = vmatprep.subr.mxu0 0.0
  %1581 = vmatpush1.msra.mxu0 0.0
  %1582 = vmatprep.subr.mxu0 0.0
  %1583 = vmatpush1.msra.mxu0 0.0
  %1584 = vmatprep.subr.mxu0 0.0
  %1585 = vmatpush1.msra.mxu0 0.0
  %1586 = vmatprep.subr.mxu0 0.0
  %1587 = vmatpush1.msra.mxu0 0.0
  %1588 = vmatprep.subr.mxu0 0.0
  %1589 = vmatpush1.msra.mxu0 0.0
  %1590 = vmatprep.subr.mxu0 0.0
  %1591 = vmatpush1.msra.mxu0 0.0
  %1592 = vmatprep.subr.mxu0 0.0
  %1593 = vmatpush1.msra.mxu0 0.0
  %1594 = vmatprep.mubr.f32.mxu0 0.0
  %1595 = vmatmul.mubr.f32.gmra.mrb[0].mxu0 %v1363
  %v1596 = vpop.f32.mrb[0].mxu0
  %v1597 = vadd.f32 0.0, %v1596
  %v1598 = vpop.f32.mrb[0].mxu0
  %v1599 = vadd.f32 0.0, %v1598
  %1600 = vdwg.mxu0
  %1601 = vmatprep.subr.mxu0 %v311
  %1602 = vmatpush1.msra.mxu0 %v310
  %1603 = vmatprep.subr.mxu0 %v315
  %1604 = vmatpush1.msra.mxu0 %v314
  %1605 = vmatprep.subr.mxu0 %v319
  %1606 = vmatpush1.msra.mxu0 %v318
  %1607 = vmatprep.subr.mxu0 %v323
  %1608 = vmatpush1.msra.mxu0 %v322
  %1609 = vmatprep.subr.mxu0 %v327
  %1610 = vmatpush1.msra.mxu0 %v326
  %1611 = vmatprep.subr.mxu0 %v331
  %1612 = vmatpush1.msra.mxu0 %v330
  %1613 = vmatprep.subr.mxu0 %v335
  %1614 = vmatpush1.msra.mxu0 %v334
  %1615 = vmatprep.subr.mxu0 %v339
  %1616 = vmatpush1.msra.mxu0 %v338
  %1617 = vmatprep.subr.mxu0 %v343
  %1618 = vmatpush1.msra.mxu0 %v342
  %1619 = vmatprep.subr.mxu0 %v347
  %1620 = vmatpush1.msra.mxu0 %v346
  %1621 = vmatprep.subr.mxu0 %v351
  %1622 = vmatpush1.msra.mxu0 %v350
  %1623 = vmatprep.subr.mxu0 %v355
  %1624 = vmatpush1.msra.mxu0 %v354
  %1625 = vmatprep.subr.mxu0 %v359
  %1626 = vmatpush1.msra.mxu0 %v358
  %1627 = vmatprep.subr.mxu0 %v363
  %1628 = vmatpush1.msra.mxu0 %v362
  %1629 = vmatprep.subr.mxu0 %v367
  %1630 = vmatpush1.msra.mxu0 %v366
  %1631 = vmatprep.subr.mxu0 %v371
  %1632 = vmatpush1.msra.mxu0 %v370
  %1633 = vmatprep.subr.mxu0 0.0
  %1634 = vmatpush1.msra.mxu0 0.0
  %1635 = vmatprep.subr.mxu0 0.0
  %1636 = vmatpush1.msra.mxu0 0.0
  %1637 = vmatprep.subr.mxu0 0.0
  %1638 = vmatpush1.msra.mxu0 0.0
  %1639 = vmatprep.subr.mxu0 0.0
  %1640 = vmatpush1.msra.mxu0 0.0
  %1641 = vmatprep.subr.mxu0 0.0
  %1642 = vmatpush1.msra.mxu0 0.0
  %1643 = vmatprep.subr.mxu0 0.0
  %1644 = vmatpush1.msra.mxu0 0.0
  %1645 = vmatprep.subr.mxu0 0.0
  %1646 = vmatpush1.msra.mxu0 0.0
  %1647 = vmatprep.subr.mxu0 0.0
  %1648 = vmatpush1.msra.mxu0 0.0
  %1649 = vmatprep.subr.mxu0 0.0
  %1650 = vmatpush1.msra.mxu0 0.0
  %1651 = vmatprep.subr.mxu0 0.0
  %1652 = vmatpush1.msra.mxu0 0.0
  %1653 = vmatprep.subr.mxu0 0.0
  %1654 = vmatpush1.msra.mxu0 0.0
  %1655 = vmatprep.subr.mxu0 0.0
  %1656 = vmatpush1.msra.mxu0 0.0
  %1657 = vmatprep.subr.mxu0 0.0
  %1658 = vmatpush1.msra.mxu0 0.0
  %1659 = vmatprep.subr.mxu0 0.0
  %1660 = vmatpush1.msra.mxu0 0.0
  %1661 = vmatprep.subr.mxu0 0.0
  %1662 = vmatpush1.msra.mxu0 0.0
  %1663 = vmatprep.subr.mxu0 0.0
  %1664 = vmatpush1.msra.mxu0 0.0
  %1665 = vmatprep.mubr.f32.mxu0 0.0
  %1666 = vmatmul.mubr.f32.gmra.mrb[0].mxu0 %v1363
  %v1667 = vpop.f32.mrb[0].mxu0
  %v1668 = vadd.f32 0.0, %v1667
  %v1669 = vpop.f32.mrb[0].mxu0
  %v1670 = vadd.f32 0.0, %v1669
  %1671 = vdwg.mxu0
  %v1672 = vadd.f32 %v167, %v1597
  %v1673 = vadd.f32 %v169, %v1599
  %v1674 = vadd.f32 %v280, %v1668
  %v1675 = vadd.f32 %v282, %v1670
  %v1676 = vxor.u32 %v1672, 2147483648
  %v1677 = vmul.f32 %v1676, 1.442695
  %v1678 = vpow.pop %v1677
  %v1679 = vadd.f32 %v1678, 1.0
  %v1680 = vrcp.pop %v1679
  %v1681 = vmul.f32 1.0, %v1680
  %v1682 = vxor.u32 %v1673, 2147483648
  %v1683 = vmul.f32 %v1682, 1.442695
  %v1684 = vpow.pop %v1683
  %v1685 = vadd.f32 %v1684, 1.0
  %v1686 = vrcp.pop %v1685
  %v1687 = vmul.f32 1.0, %v1686
  %v1688 = vtanh.pop %v1674
  %v1689 = vxor.u32 %v1675, 2147483648
  %v1690 = vmul.f32 %v1689, 1.442695
  %v1691 = vpow.pop %v1690
  %v1692 = vadd.f32 %v1691, 1.0
  %v1693 = vrcp.pop %v1692
  %v1694 = vmul.f32 1.0, %v1693
  %v1695 = vmul.f32 %v1687, %v1361
  %v1696 = vmul.f32 %v1681, %v1688
  %v1697 = vadd.f32 %v1695, %v1696
  %v1698 = vtanh.pop %v1697
  %v1699 = vmul.f32 %v1694, %v1698
  %1700 = vmatprep.subr.mxu0 %v373
  %1701 = vmatpush1.msra.mxu0 %v372
  %1702 = vmatprep.subr.mxu0 %v377
  %1703 = vmatpush1.msra.mxu0 %v376
  %1704 = vmatprep.subr.mxu0 %v381
  %1705 = vmatpush1.msra.mxu0 %v380
  %1706 = vmatprep.subr.mxu0 %v385
  %1707 = vmatpush1.msra.mxu0 %v384
  %1708 = vmatprep.subr.mxu0 %v389
  %1709 = vmatpush1.msra.mxu0 %v388
  %1710 = vmatprep.subr.mxu0 %v393
  %1711 = vmatpush1.msra.mxu0 %v392
  %1712 = vmatprep.subr.mxu0 %v397
  %1713 = vmatpush1.msra.mxu0 %v396
  %1714 = vmatprep.subr.mxu0 %v401
  %1715 = vmatpush1.msra.mxu0 %v400
  %1716 = vmatprep.subr.mxu0 %v405
  %1717 = vmatpush1.msra.mxu0 %v404
  %1718 = vmatprep.subr.mxu0 %v409
  %1719 = vmatpush1.msra.mxu0 %v408
  %1720 = vmatprep.subr.mxu0 %v413
  %1721 = vmatpush1.msra.mxu0 %v412
  %1722 = vmatprep.subr.mxu0 %v417
  %1723 = vmatpush1.msra.mxu0 %v416
  %1724 = vmatprep.subr.mxu0 %v421
  %1725 = vmatpush1.msra.mxu0 %v420
  %1726 = vmatprep.subr.mxu0 %v425
  %1727 = vmatpush1.msra.mxu0 %v424
  %1728 = vmatprep.subr.mxu0 %v429
  %1729 = vmatpush1.msra.mxu0 %v428
  %1730 = vmatprep.subr.mxu0 %v433
  %1731 = vmatpush1.msra.mxu0 %v432
  %1732 = vmatprep.subr.mxu0 %v437
  %1733 = vmatpush1.msra.mxu0 %v436
  %1734 = vmatprep.subr.mxu0 %v441
  %1735 = vmatpush1.msra.mxu0 %v440
  %1736 = vmatprep.subr.mxu0 %v445
  %1737 = vmatpush1.msra.mxu0 %v444
  %1738 = vmatprep.subr.mxu0 %v449
  %1739 = vmatpush1.msra.mxu0 %v448
  %1740 = vmatprep.subr.mxu0 %v453
  %1741 = vmatpush1.msra.mxu0 %v452
  %1742 = vmatprep.subr.mxu0 %v457
  %1743 = vmatpush1.msra.mxu0 %v456
  %1744 = vmatprep.subr.mxu0 %v461
  %1745 = vmatpush1.msra.mxu0 %v460
  %1746 = vmatprep.subr.mxu0 %v465
  %1747 = vmatpush1.msra.mxu0 %v464
  %1748 = vmatprep.subr.mxu0 %v469
  %1749 = vmatpush1.msra.mxu0 %v468
  %1750 = vmatprep.subr.mxu0 %v473
  %1751 = vmatpush1.msra.mxu0 %v472
  %1752 = vmatprep.subr.mxu0 %v477
  %1753 = vmatpush1.msra.mxu0 %v476
  %1754 = vmatprep.subr.mxu0 %v481
  %1755 = vmatpush1.msra.mxu0 %v480
  %1756 = vmatprep.subr.mxu0 %v485
  %1757 = vmatpush1.msra.mxu0 %v484
  %1758 = vmatprep.subr.mxu0 %v489
  %1759 = vmatpush1.msra.mxu0 %v488
  %1760 = vmatprep.subr.mxu0 %v493
  %1761 = vmatpush1.msra.mxu0 %v492
  %1762 = vmatprep.subr.mxu0 %v497
  %1763 = vmatpush1.msra.mxu0 %v496
  %1764 = vmatprep.mubr.f32.mxu0 %v1529
  %1765 = vmatmul.mubr.f32.gmra.mrb[0].mxu0 %v1699
  %v1766 = vpop.f32.mrb[0].mxu0
  %v1767 = vadd.f32 %v675, %v1766
  %v1768 = vpop.f32.mrb[0].mxu0
  %v1769 = vadd.f32 %v679, %v1768
  %1770 = vdwg.mxu0
  %1771 = vmatprep.subr.mxu0 %v375
  %1772 = vmatpush1.msra.mxu0 %v374
  %1773 = vmatprep.subr.mxu0 %v379
  %1774 = vmatpush1.msra.mxu0 %v378
  %1775 = vmatprep.subr.mxu0 %v383
  %1776 = vmatpush1.msra.mxu0 %v382
  %1777 = vmatprep.subr.mxu0 %v387
  %1778 = vmatpush1.msra.mxu0 %v386
  %1779 = vmatprep.subr.mxu0 %v391
  %1780 = vmatpush1.msra.mxu0 %v390
  %1781 = vmatprep.subr.mxu0 %v395
  %1782 = vmatpush1.msra.mxu0 %v394
  %1783 = vmatprep.subr.mxu0 %v399
  %1784 = vmatpush1.msra.mxu0 %v398
  %1785 = vmatprep.subr.mxu0 %v403
  %1786 = vmatpush1.msra.mxu0 %v402
  %1787 = vmatprep.subr.mxu0 %v407
  %1788 = vmatpush1.msra.mxu0 %v406
  %1789 = vmatprep.subr.mxu0 %v411
  %1790 = vmatpush1.msra.mxu0 %v410
  %1791 = vmatprep.subr.mxu0 %v415
  %1792 = vmatpush1.msra.mxu0 %v414
  %1793 = vmatprep.subr.mxu0 %v419
  %1794 = vmatpush1.msra.mxu0 %v418
  %1795 = vmatprep.subr.mxu0 %v423
  %1796 = vmatpush1.msra.mxu0 %v422
  %1797 = vmatprep.subr.mxu0 %v427
  %1798 = vmatpush1.msra.mxu0 %v426
  %1799 = vmatprep.subr.mxu0 %v431
  %1800 = vmatpush1.msra.mxu0 %v430
  %1801 = vmatprep.subr.mxu0 %v435
  %1802 = vmatpush1.msra.mxu0 %v434
  %1803 = vmatprep.subr.mxu0 %v439
  %1804 = vmatpush1.msra.mxu0 %v438
  %1805 = vmatprep.subr.mxu0 %v443
  %1806 = vmatpush1.msra.mxu0 %v442
  %1807 = vmatprep.subr.mxu0 %v447
  %1808 = vmatpush1.msra.mxu0 %v446
  %1809 = vmatprep.subr.mxu0 %v451
  %1810 = vmatpush1.msra.mxu0 %v450
  %1811 = vmatprep.subr.mxu0 %v455
  %1812 = vmatpush1.msra.mxu0 %v454
  %1813 = vmatprep.subr.mxu0 %v459
  %1814 = vmatpush1.msra.mxu0 %v458
  %1815 = vmatprep.subr.mxu0 %v463
  %1816 = vmatpush1.msra.mxu0 %v462
  %1817 = vmatprep.subr.mxu0 %v467
  %1818 = vmatpush1.msra.mxu0 %v466
  %1819 = vmatprep.subr.mxu0 %v471
  %1820 = vmatpush1.msra.mxu0 %v470
  %1821 = vmatprep.subr.mxu0 %v475
  %1822 = vmatpush1.msra.mxu0 %v474
  %1823 = vmatprep.subr.mxu0 %v479
  %1824 = vmatpush1.msra.mxu0 %v478
  %1825 = vmatprep.subr.mxu0 %v483
  %1826 = vmatpush1.msra.mxu0 %v482
  %1827 = vmatprep.subr.mxu0 %v487
  %1828 = vmatpush1.msra.mxu0 %v486
  %1829 = vmatprep.subr.mxu0 %v491
  %1830 = vmatpush1.msra.mxu0 %v490
  %1831 = vmatprep.subr.mxu0 %v495
  %1832 = vmatpush1.msra.mxu0 %v494
  %1833 = vmatprep.subr.mxu0 %v499
  %1834 = vmatpush1.msra.mxu0 %v498
  %1835 = vmatprep.mubr.f32.mxu0 %v1529
  %1836 = vmatmul.mubr.f32.gmra.mrb[0].mxu0 %v1699
  %v1837 = vpop.f32.mrb[0].mxu0
  %v1838 = vadd.f32 %v683, %v1837
  %v1839 = vpop.f32.mrb[0].mxu0
  %v1840 = vadd.f32 %v687, %v1839
  %1841 = vdwg.mxu0
  %v1842 = vxor.u32 %v1767, 2147483648
  %v1843 = vmul.f32 %v1842, 1.442695
  %v1844 = vpow.pop %v1843
  %v1845 = vadd.f32 %v1844, 1.0
  %v1846 = vrcp.pop %v1845
  %v1847 = vmul.f32 1.0, %v1846
  %v1848 = vxor.u32 %v1769, 2147483648
  %v1849 = vmul.f32 %v1848, 1.442695
  %v1850 = vpow.pop %v1849
  %v1851 = vadd.f32 %v1850, 1.0
  %v1852 = vrcp.pop %v1851
  %v1853 = vmul.f32 1.0, %v1852
  %v1854 = vtanh.pop %v1838
  %v1855 = vxor.u32 %v1840, 2147483648
  %v1856 = vmul.f32 %v1855, 1.442695
  %v1857 = vpow.pop %v1856
  %v1858 = vadd.f32 %v1857, 1.0
  %v1859 = vrcp.pop %v1858
  %v1860 = vmul.f32 1.0, %v1859
  %v1861 = vmul.f32 %v1853, %v1527
  %v1862 = vmul.f32 %v1847, %v1854
  %v1863 = vadd.f32 %v1861, %v1862
  %v1864 = vtanh.pop %v1863
  %v1865 = vmul.f32 %v1860, %v1864
  %1866 = vmatprep.subr.mxu0 %v309
  %1867 = vmatpush1.msra.mxu0 %v308
  %1868 = vmatprep.subr.mxu0 %v313
  %1869 = vmatpush1.msra.mxu0 %v312
  %1870 = vmatprep.subr.mxu0 %v317
  %1871 = vmatpush1.msra.mxu0 %v316
  %1872 = vmatprep.subr.mxu0 %v321
  %1873 = vmatpush1.msra.mxu0 %v320
  %1874 = vmatprep.subr.mxu0 %v325
  %1875 = vmatpush1.msra.mxu0 %v324
  %1876 = vmatprep.subr.mxu0 %v329
  %1877 = vmatpush1.msra.mxu0 %v328
  %1878 = vmatprep.subr.mxu0 %v333
  %1879 = vmatpush1.msra.mxu0 %v332
  %1880 = vmatprep.subr.mxu0 %v337
  %1881 = vmatpush1.msra.mxu0 %v336
  %1882 = vmatprep.subr.mxu0 %v341
  %1883 = vmatpush1.msra.mxu0 %v340
  %1884 = vmatprep.subr.mxu0 %v345
  %1885 = vmatpush1.msra.mxu0 %v344
  %1886 = vmatprep.subr.mxu0 %v349
  %1887 = vmatpush1.msra.mxu0 %v348
  %1888 = vmatprep.subr.mxu0 %v353
  %1889 = vmatpush1.msra.mxu0 %v352
  %1890 = vmatprep.subr.mxu0 %v357
  %1891 = vmatpush1.msra.mxu0 %v356
  %1892 = vmatprep.subr.mxu0 %v361
  %1893 = vmatpush1.msra.mxu0 %v360
  %1894 = vmatprep.subr.mxu0 %v365
  %1895 = vmatpush1.msra.mxu0 %v364
  %1896 = vmatprep.subr.mxu0 %v369
  %1897 = vmatpush1.msra.mxu0 %v368
  %1898 = vmatprep.subr.mxu0 0.0
  %1899 = vmatpush1.msra.mxu0 0.0
  %1900 = vmatprep.subr.mxu0 0.0
  %1901 = vmatpush1.msra.mxu0 0.0
  %1902 = vmatprep.subr.mxu0 0.0
  %1903 = vmatpush1.msra.mxu0 0.0
  %1904 = vmatprep.subr.mxu0 0.0
  %1905 = vmatpush1.msra.mxu0 0.0
  %1906 = vmatprep.subr.mxu0 0.0
  %1907 = vmatpush1.msra.mxu0 0.0
  %1908 = vmatprep.subr.mxu0 0.0
  %1909 = vmatpush1.msra.mxu0 0.0
  %1910 = vmatprep.subr.mxu0 0.0
  %1911 = vmatpush1.msra.mxu0 0.0
  %1912 = vmatprep.subr.mxu0 0.0
  %1913 = vmatpush1.msra.mxu0 0.0
  %1914 = vmatprep.subr.mxu0 0.0
  %1915 = vmatpush1.msra.mxu0 0.0
  %1916 = vmatprep.subr.mxu0 0.0
  %1917 = vmatpush1.msra.mxu0 0.0
  %1918 = vmatprep.subr.mxu0 0.0
  %1919 = vmatpush1.msra.mxu0 0.0
  %1920 = vmatprep.subr.mxu0 0.0
  %1921 = vmatpush1.msra.mxu0 0.0
  %1922 = vmatprep.subr.mxu0 0.0
  %1923 = vmatpush1.msra.mxu0 0.0
  %1924 = vmatprep.subr.mxu0 0.0
  %1925 = vmatpush1.msra.mxu0 0.0
  %1926 = vmatprep.subr.mxu0 0.0
  %1927 = vmatpush1.msra.mxu0 0.0
  %1928 = vmatprep.subr.mxu0 0.0
  %1929 = vmatpush1.msra.mxu0 0.0
  %1930 = vmatprep.mubr.f32.mxu0 0.0
  %1931 = vmatmul.mubr.f32.gmra.mrb[0].mxu0 %v1699
  %v1932 = vpop.f32.mrb[0].mxu0
  %v1933 = vadd.f32 0.0, %v1932
  %v1934 = vpop.f32.mrb[0].mxu0
  %v1935 = vadd.f32 0.0, %v1934
  %1936 = vdwg.mxu0
  %1937 = vmatprep.subr.mxu0 %v311
  %1938 = vmatpush1.msra.mxu0 %v310
  %1939 = vmatprep.subr.mxu0 %v315
  %1940 = vmatpush1.msra.mxu0 %v314
  %1941 = vmatprep.subr.mxu0 %v319
  %1942 = vmatpush1.msra.mxu0 %v318
  %1943 = vmatprep.subr.mxu0 %v323
  %1944 = vmatpush1.msra.mxu0 %v322
  %1945 = vmatprep.subr.mxu0 %v327
  %1946 = vmatpush1.msra.mxu0 %v326
  %1947 = vmatprep.subr.mxu0 %v331
  %1948 = vmatpush1.msra.mxu0 %v330
  %1949 = vmatprep.subr.mxu0 %v335
  %1950 = vmatpush1.msra.mxu0 %v334
  %1951 = vmatprep.subr.mxu0 %v339
  %1952 = vmatpush1.msra.mxu0 %v338
  %1953 = vmatprep.subr.mxu0 %v343
  %1954 = vmatpush1.msra.mxu0 %v342
  %1955 = vmatprep.subr.mxu0 %v347
  %1956 = vmatpush1.msra.mxu0 %v346
  %1957 = vmatprep.subr.mxu0 %v351
  %1958 = vmatpush1.msra.mxu0 %v350
  %1959 = vmatprep.subr.mxu0 %v355
  %1960 = vmatpush1.msra.mxu0 %v354
  %1961 = vmatprep.subr.mxu0 %v359
  %1962 = vmatpush1.msra.mxu0 %v358
  %1963 = vmatprep.subr.mxu0 %v363
  %1964 = vmatpush1.msra.mxu0 %v362
  %1965 = vmatprep.subr.mxu0 %v367
  %1966 = vmatpush1.msra.mxu0 %v366
  %1967 = vmatprep.subr.mxu0 %v371
  %1968 = vmatpush1.msra.mxu0 %v370
  %1969 = vmatprep.subr.mxu0 0.0
  %1970 = vmatpush1.msra.mxu0 0.0
  %1971 = vmatprep.subr.mxu0 0.0
  %1972 = vmatpush1.msra.mxu0 0.0
  %1973 = vmatprep.subr.mxu0 0.0
  %1974 = vmatpush1.msra.mxu0 0.0
  %1975 = vmatprep.subr.mxu0 0.0
  %1976 = vmatpush1.msra.mxu0 0.0
  %1977 = vmatprep.subr.mxu0 0.0
  %1978 = vmatpush1.msra.mxu0 0.0
  %1979 = vmatprep.subr.mxu0 0.0
  %1980 = vmatpush1.msra.mxu0 0.0
  %1981 = vmatprep.subr.mxu0 0.0
  %1982 = vmatpush1.msra.mxu0 0.0
  %1983 = vmatprep.subr.mxu0 0.0
  %1984 = vmatpush1.msra.mxu0 0.0
  %1985 = vmatprep.subr.mxu0 0.0
  %1986 = vmatpush1.msra.mxu0 0.0
  %1987 = vmatprep.subr.mxu0 0.0
  %1988 = vmatpush1.msra.mxu0 0.0
  %1989 = vmatprep.subr.mxu0 0.0
  %1990 = vmatpush1.msra.mxu0 0.0
  %1991 = vmatprep.subr.mxu0 0.0
  %1992 = vmatpush1.msra.mxu0 0.0
  %1993 = vmatprep.subr.mxu0 0.0
  %1994 = vmatpush1.msra.mxu0 0.0
  %1995 = vmatprep.subr.mxu0 0.0
  %1996 = vmatpush1.msra.mxu0 0.0
  %1997 = vmatprep.subr.mxu0 0.0
  %1998 = vmatpush1.msra.mxu0 0.0
  %1999 = vmatprep.subr.mxu0 0.0
  %2000 = vmatpush1.msra.mxu0 0.0
  %2001 = vmatprep.mubr.f32.mxu0 0.0
  %2002 = vmatmul.mubr.f32.gmra.mrb[0].mxu0 %v1699
  %v2003 = vpop.f32.mrb[0].mxu0
  %v2004 = vadd.f32 0.0, %v2003
  %v2005 = vpop.f32.mrb[0].mxu0
  %v2006 = vadd.f32 0.0, %v2005
  %2007 = vdwg.mxu0
  %v2008 = vadd.f32 %v173, %v1933
  %v2009 = vadd.f32 %v175, %v1935
  %v2010 = vadd.f32 %v286, %v2004
  %v2011 = vadd.f32 %v288, %v2006
  %v2012 = vxor.u32 %v2008, 2147483648
  %v2013 = vmul.f32 %v2012, 1.442695
  %v2014 = vpow.pop %v2013
  %v2015 = vadd.f32 %v2014, 1.0
  %v2016 = vrcp.pop %v2015
  %v2017 = vmul.f32 1.0, %v2016
  %v2018 = vxor.u32 %v2009, 2147483648
  %v2019 = vmul.f32 %v2018, 1.442695
  %v2020 = vpow.pop %v2019
  %v2021 = vadd.f32 %v2020, 1.0
  %v2022 = vrcp.pop %v2021
  %v2023 = vmul.f32 1.0, %v2022
  %v2024 = vtanh.pop %v2010
  %v2025 = vxor.u32 %v2011, 2147483648
  %v2026 = vmul.f32 %v2025, 1.442695
  %v2027 = vpow.pop %v2026
  %v2028 = vadd.f32 %v2027, 1.0
  %v2029 = vrcp.pop %v2028
  %v2030 = vmul.f32 1.0, %v2029
  %v2031 = vmul.f32 %v2023, %v1697
  %v2032 = vmul.f32 %v2017, %v2024
  %v2033 = vadd.f32 %v2031, %v2032
  %v2034 = vtanh.pop %v2033
  %v2035 = vmul.f32 %v2030, %v2034
  %2036 = vmatprep.subr.mxu0 %v373
  %2037 = vmatpush1.msra.mxu0 %v372
  %2038 = vmatprep.subr.mxu0 %v377
  %2039 = vmatpush1.msra.mxu0 %v376
  %2040 = vmatprep.subr.mxu0 %v381
  %2041 = vmatpush1.msra.mxu0 %v380
  %2042 = vmatprep.subr.mxu0 %v385
  %2043 = vmatpush1.msra.mxu0 %v384
  %2044 = vmatprep.subr.mxu0 %v389
  %2045 = vmatpush1.msra.mxu0 %v388
  %2046 = vmatprep.subr.mxu0 %v393
  %2047 = vmatpush1.msra.mxu0 %v392
  %2048 = vmatprep.subr.mxu0 %v397
  %2049 = vmatpush1.msra.mxu0 %v396
  %2050 = vmatprep.subr.mxu0 %v401
  %2051 = vmatpush1.msra.mxu0 %v400
  %2052 = vmatprep.subr.mxu0 %v405
  %2053 = vmatpush1.msra.mxu0 %v404
  %2054 = vmatprep.subr.mxu0 %v409
  %2055 = vmatpush1.msra.mxu0 %v408
  %2056 = vmatprep.subr.mxu0 %v413
  %2057 = vmatpush1.msra.mxu0 %v412
  %2058 = vmatprep.subr.mxu0 %v417
  %2059 = vmatpush1.msra.mxu0 %v416
  %2060 = vmatprep.subr.mxu0 %v421
  %2061 = vmatpush1.msra.mxu0 %v420
  %2062 = vmatprep.subr.mxu0 %v425
  %2063 = vmatpush1.msra.mxu0 %v424
  %2064 = vmatprep.subr.mxu0 %v429
  %2065 = vmatpush1.msra.mxu0 %v428
  %2066 = vmatprep.subr.mxu0 %v433
  %2067 = vmatpush1.msra.mxu0 %v432
  %2068 = vmatprep.subr.mxu0 %v437
  %2069 = vmatpush1.msra.mxu0 %v436
  %2070 = vmatprep.subr.mxu0 %v441
  %2071 = vmatpush1.msra.mxu0 %v440
  %2072 = vmatprep.subr.mxu0 %v445
  %2073 = vmatpush1.msra.mxu0 %v444
  %2074 = vmatprep.subr.mxu0 %v449
  %2075 = vmatpush1.msra.mxu0 %v448
  %2076 = vmatprep.subr.mxu0 %v453
  %2077 = vmatpush1.msra.mxu0 %v452
  %2078 = vmatprep.subr.mxu0 %v457
  %2079 = vmatpush1.msra.mxu0 %v456
  %2080 = vmatprep.subr.mxu0 %v461
  %2081 = vmatpush1.msra.mxu0 %v460
  %2082 = vmatprep.subr.mxu0 %v465
  %2083 = vmatpush1.msra.mxu0 %v464
  %2084 = vmatprep.subr.mxu0 %v469
  %2085 = vmatpush1.msra.mxu0 %v468
  %2086 = vmatprep.subr.mxu0 %v473
  %2087 = vmatpush1.msra.mxu0 %v472
  %2088 = vmatprep.subr.mxu0 %v477
  %2089 = vmatpush1.msra.mxu0 %v476
  %2090 = vmatprep.subr.mxu0 %v481
  %2091 = vmatpush1.msra.mxu0 %v480
  %2092 = vmatprep.subr.mxu0 %v485
  %2093 = vmatpush1.msra.mxu0 %v484
  %2094 = vmatprep.subr.mxu0 %v489
  %2095 = vmatpush1.msra.mxu0 %v488
  %2096 = vmatprep.subr.mxu0 %v493
  %2097 = vmatpush1.msra.mxu0 %v492
  %2098 = vmatprep.subr.mxu0 %v497
  %2099 = vmatpush1.msra.mxu0 %v496
  %2100 = vmatprep.mubr.f32.mxu0 %v1865
  %2101 = vmatmul.mubr.f32.gmra.mrb[0].mxu0 %v2035
  %v2102 = vpop.f32.mrb[0].mxu0
  %v2103 = vadd.f32 %v675, %v2102
  %v2104 = vpop.f32.mrb[0].mxu0
  %v2105 = vadd.f32 %v679, %v2104
  %2106 = vdwg.mxu0
  %2107 = vmatprep.subr.mxu0 %v375
  %2108 = vmatpush1.msra.mxu0 %v374
  %2109 = vmatprep.subr.mxu0 %v379
  %2110 = vmatpush1.msra.mxu0 %v378
  %2111 = vmatprep.subr.mxu0 %v383
  %2112 = vmatpush1.msra.mxu0 %v382
  %2113 = vmatprep.subr.mxu0 %v387
  %2114 = vmatpush1.msra.mxu0 %v386
  %2115 = vmatprep.subr.mxu0 %v391
  %2116 = vmatpush1.msra.mxu0 %v390
  %2117 = vmatprep.subr.mxu0 %v395
  %2118 = vmatpush1.msra.mxu0 %v394
  %2119 = vmatprep.subr.mxu0 %v399
  %2120 = vmatpush1.msra.mxu0 %v398
  %2121 = vmatprep.subr.mxu0 %v403
  %2122 = vmatpush1.msra.mxu0 %v402
  %2123 = vmatprep.subr.mxu0 %v407
  %2124 = vmatpush1.msra.mxu0 %v406
  %2125 = vmatprep.subr.mxu0 %v411
  %2126 = vmatpush1.msra.mxu0 %v410
  %2127 = vmatprep.subr.mxu0 %v415
  %2128 = vmatpush1.msra.mxu0 %v414
  %2129 = vmatprep.subr.mxu0 %v419
  %2130 = vmatpush1.msra.mxu0 %v418
  %2131 = vmatprep.subr.mxu0 %v423
  %2132 = vmatpush1.msra.mxu0 %v422
  %2133 = vmatprep.subr.mxu0 %v427
  %2134 = vmatpush1.msra.mxu0 %v426
  %2135 = vmatprep.subr.mxu0 %v431
  %2136 = vmatpush1.msra.mxu0 %v430
  %2137 = vmatprep.subr.mxu0 %v435
  %2138 = vmatpush1.msra.mxu0 %v434
  %2139 = vmatprep.subr.mxu0 %v439
  %2140 = vmatpush1.msra.mxu0 %v438
  %2141 = vmatprep.subr.mxu0 %v443
  %2142 = vmatpush1.msra.mxu0 %v442
  %2143 = vmatprep.subr.mxu0 %v447
  %2144 = vmatpush1.msra.mxu0 %v446
  %2145 = vmatprep.subr.mxu0 %v451
  %2146 = vmatpush1.msra.mxu0 %v450
  %2147 = vmatprep.subr.mxu0 %v455
  %2148 = vmatpush1.msra.mxu0 %v454
  %2149 = vmatprep.subr.mxu0 %v459
  %2150 = vmatpush1.msra.mxu0 %v458
  %2151 = vmatprep.subr.mxu0 %v463
  %2152 = vmatpush1.msra.mxu0 %v462
  %2153 = vmatprep.subr.mxu0 %v467
  %2154 = vmatpush1.msra.mxu0 %v466
  %2155 = vmatprep.subr.mxu0 %v471
  %2156 = vmatpush1.msra.mxu0 %v470
  %2157 = vmatprep.subr.mxu0 %v475
  %2158 = vmatpush1.msra.mxu0 %v474
  %2159 = vmatprep.subr.mxu0 %v479
  %2160 = vmatpush1.msra.mxu0 %v478
  %2161 = vmatprep.subr.mxu0 %v483
  %2162 = vmatpush1.msra.mxu0 %v482
  %2163 = vmatprep.subr.mxu0 %v487
  %2164 = vmatpush1.msra.mxu0 %v486
  %2165 = vmatprep.subr.mxu0 %v491
  %2166 = vmatpush1.msra.mxu0 %v490
  %2167 = vmatprep.subr.mxu0 %v495
  %2168 = vmatpush1.msra.mxu0 %v494
  %2169 = vmatprep.subr.mxu0 %v499
  %2170 = vmatpush1.msra.mxu0 %v498
  %2171 = vmatprep.mubr.f32.mxu0 %v1865
  %2172 = vmatmul.mubr.f32.gmra.mrb[0].mxu0 %v2035
  %v2173 = vpop.f32.mrb[0].mxu0
  %v2174 = vadd.f32 %v683, %v2173
  %v2175 = vpop.f32.mrb[0].mxu0
  %v2176 = vadd.f32 %v687, %v2175
  %2177 = vdwg.mxu0
  %v2178 = vxor.u32 %v2103, 2147483648
  %v2179 = vmul.f32 %v2178, 1.442695
  %v2180 = vpow.pop %v2179
  %v2181 = vadd.f32 %v2180, 1.0
  %v2182 = vrcp.pop %v2181
  %v2183 = vmul.f32 1.0, %v2182
  %v2184 = vxor.u32 %v2105, 2147483648
  %v2185 = vmul.f32 %v2184, 1.442695
  %v2186 = vpow.pop %v2185
  %v2187 = vadd.f32 %v2186, 1.0
  %v2188 = vrcp.pop %v2187
  %v2189 = vmul.f32 1.0, %v2188
  %v2190 = vtanh.pop %v2174
  %v2191 = vxor.u32 %v2176, 2147483648
  %v2192 = vmul.f32 %v2191, 1.442695
  %v2193 = vpow.pop %v2192
  %v2194 = vadd.f32 %v2193, 1.0
  %v2195 = vrcp.pop %v2194
  %v2196 = vmul.f32 1.0, %v2195
  %v2197 = vmul.f32 %v2189, %v1863
  %v2198 = vmul.f32 %v2183, %v2190
  %v2199 = vadd.f32 %v2197, %v2198
  %v2200 = vtanh.pop %v2199
  %v2201 = vmul.f32 %v2196, %v2200
  %2202 = vmatprep.subr.mxu0 %v309
  %2203 = vmatpush1.msra.mxu0 %v308
  %2204 = vmatprep.subr.mxu0 %v313
  %2205 = vmatpush1.msra.mxu0 %v312
  %2206 = vmatprep.subr.mxu0 %v317
  %2207 = vmatpush1.msra.mxu0 %v316
  %2208 = vmatprep.subr.mxu0 %v321
  %2209 = vmatpush1.msra.mxu0 %v320
  %2210 = vmatprep.subr.mxu0 %v325
  %2211 = vmatpush1.msra.mxu0 %v324
  %2212 = vmatprep.subr.mxu0 %v329
  %2213 = vmatpush1.msra.mxu0 %v328
  %2214 = vmatprep.subr.mxu0 %v333
  %2215 = vmatpush1.msra.mxu0 %v332
  %2216 = vmatprep.subr.mxu0 %v337
  %2217 = vmatpush1.msra.mxu0 %v336
  %2218 = vmatprep.subr.mxu0 %v341
  %2219 = vmatpush1.msra.mxu0 %v340
  %2220 = vmatprep.subr.mxu0 %v345
  %2221 = vmatpush1.msra.mxu0 %v344
  %2222 = vmatprep.subr.mxu0 %v349
  %2223 = vmatpush1.msra.mxu0 %v348
  %2224 = vmatprep.subr.mxu0 %v353
  %2225 = vmatpush1.msra.mxu0 %v352
  %2226 = vmatprep.subr.mxu0 %v357
  %2227 = vmatpush1.msra.mxu0 %v356
  %2228 = vmatprep.subr.mxu0 %v361
  %2229 = vmatpush1.msra.mxu0 %v360
  %2230 = vmatprep.subr.mxu0 %v365
  %2231 = vmatpush1.msra.mxu0 %v364
  %2232 = vmatprep.subr.mxu0 %v369
  %2233 = vmatpush1.msra.mxu0 %v368
  %2234 = vmatprep.subr.mxu0 0.0
  %2235 = vmatpush1.msra.mxu0 0.0
  %2236 = vmatprep.subr.mxu0 0.0
  %2237 = vmatpush1.msra.mxu0 0.0
  %2238 = vmatprep.subr.mxu0 0.0
  %2239 = vmatpush1.msra.mxu0 0.0
  %2240 = vmatprep.subr.mxu0 0.0
  %2241 = vmatpush1.msra.mxu0 0.0
  %2242 = vmatprep.subr.mxu0 0.0
  %2243 = vmatpush1.msra.mxu0 0.0
  %2244 = vmatprep.subr.mxu0 0.0
  %2245 = vmatpush1.msra.mxu0 0.0
  %2246 = vmatprep.subr.mxu0 0.0
  %2247 = vmatpush1.msra.mxu0 0.0
  %2248 = vmatprep.subr.mxu0 0.0
  %2249 = vmatpush1.msra.mxu0 0.0
  %2250 = vmatprep.subr.mxu0 0.0
  %2251 = vmatpush1.msra.mxu0 0.0
  %2252 = vmatprep.subr.mxu0 0.0
  %2253 = vmatpush1.msra.mxu0 0.0
  %2254 = vmatprep.subr.mxu0 0.0
  %2255 = vmatpush1.msra.mxu0 0.0
  %2256 = vmatprep.subr.mxu0 0.0
  %2257 = vmatpush1.msra.mxu0 0.0
  %2258 = vmatprep.subr.mxu0 0.0
  %2259 = vmatpush1.msra.mxu0 0.0
  %2260 = vmatprep.subr.mxu0 0.0
  %2261 = vmatpush1.msra.mxu0 0.0
  %2262 = vmatprep.subr.mxu0 0.0
  %2263 = vmatpush1.msra.mxu0 0.0
  %2264 = vmatprep.subr.mxu0 0.0
  %2265 = vmatpush1.msra.mxu0 0.0
  %2266 = vmatprep.mubr.f32.mxu0 0.0
  %2267 = vmatmul.mubr.f32.gmra.mrb[0].mxu0 %v2035
  %v2268 = vpop.f32.mrb[0].mxu0
  %v2269 = vadd.f32 0.0, %v2268
  %v2270 = vpop.f32.mrb[0].mxu0
  %v2271 = vadd.f32 0.0, %v2270
  %2272 = vdwg.mxu0
  %2273 = vmatprep.subr.mxu0 %v311
  %2274 = vmatpush1.msra.mxu0 %v310
  %2275 = vmatprep.subr.mxu0 %v315
  %2276 = vmatpush1.msra.mxu0 %v314
  %2277 = vmatprep.subr.mxu0 %v319
  %2278 = vmatpush1.msra.mxu0 %v318
  %2279 = vmatprep.subr.mxu0 %v323
  %2280 = vmatpush1.msra.mxu0 %v322
  %2281 = vmatprep.subr.mxu0 %v327
  %2282 = vmatpush1.msra.mxu0 %v326
  %2283 = vmatprep.subr.mxu0 %v331
  %2284 = vmatpush1.msra.mxu0 %v330
  %2285 = vmatprep.subr.mxu0 %v335
  %2286 = vmatpush1.msra.mxu0 %v334
  %2287 = vmatprep.subr.mxu0 %v339
  %2288 = vmatpush1.msra.mxu0 %v338
  %2289 = vmatprep.subr.mxu0 %v343
  %2290 = vmatpush1.msra.mxu0 %v342
  %2291 = vmatprep.subr.mxu0 %v347
  %2292 = vmatpush1.msra.mxu0 %v346
  %2293 = vmatprep.subr.mxu0 %v351
  %2294 = vmatpush1.msra.mxu0 %v350
  %2295 = vmatprep.subr.mxu0 %v355
  %2296 = vmatpush1.msra.mxu0 %v354
  %2297 = vmatprep.subr.mxu0 %v359
  %2298 = vmatpush1.msra.mxu0 %v358
  %2299 = vmatprep.subr.mxu0 %v363
  %2300 = vmatpush1.msra.mxu0 %v362
  %2301 = vmatprep.subr.mxu0 %v367
  %2302 = vmatpush1.msra.mxu0 %v366
  %2303 = vmatprep.subr.mxu0 %v371
  %2304 = vmatpush1.msra.mxu0 %v370
  %2305 = vmatprep.subr.mxu0 0.0
  %2306 = vmatpush1.msra.mxu0 0.0
  %2307 = vmatprep.subr.mxu0 0.0
  %2308 = vmatpush1.msra.mxu0 0.0
  %2309 = vmatprep.subr.mxu0 0.0
  %2310 = vmatpush1.msra.mxu0 0.0
  %2311 = vmatprep.subr.mxu0 0.0
  %2312 = vmatpush1.msra.mxu0 0.0
  %2313 = vmatprep.subr.mxu0 0.0
  %2314 = vmatpush1.msra.mxu0 0.0
  %2315 = vmatprep.subr.mxu0 0.0
  %2316 = vmatpush1.msra.mxu0 0.0
  %2317 = vmatprep.subr.mxu0 0.0
  %2318 = vmatpush1.msra.mxu0 0.0
  %2319 = vmatprep.subr.mxu0 0.0
  %2320 = vmatpush1.msra.mxu0 0.0
  %2321 = vmatprep.subr.mxu0 0.0
  %2322 = vmatpush1.msra.mxu0 0.0
  %2323 = vmatprep.subr.mxu0 0.0
  %2324 = vmatpush1.msra.mxu0 0.0
  %2325 = vmatprep.subr.mxu0 0.0
  %2326 = vmatpush1.msra.mxu0 0.0
  %2327 = vmatprep.subr.mxu0 0.0
  %2328 = vmatpush1.msra.mxu0 0.0
  %2329 = vmatprep.subr.mxu0 0.0
  %2330 = vmatpush1.msra.mxu0 0.0
  %2331 = vmatprep.subr.mxu0 0.0
  %2332 = vmatpush1.msra.mxu0 0.0
  %2333 = vmatprep.subr.mxu0 0.0
  %2334 = vmatpush1.msra.mxu0 0.0
  %2335 = vmatprep.subr.mxu0 0.0
  %2336 = vmatpush1.msra.mxu0 0.0
  %2337 = vmatprep.mubr.f32.mxu0 0.0
  %2338 = vmatmul.mubr.f32.gmra.mrb[0].mxu0 %v2035
  %v2339 = vpop.f32.mrb[0].mxu0
  %v2340 = vadd.f32 0.0, %v2339
  %v2341 = vpop.f32.mrb[0].mxu0
  %v2342 = vadd.f32 0.0, %v2341
  %2343 = vdwg.mxu0
  %v2344 = vadd.f32 %v179, %v2269
  %v2345 = vadd.f32 %v181, %v2271
  %v2346 = vadd.f32 %v292, %v2340
  %v2347 = vadd.f32 %v294, %v2342
  %v2348 = vxor.u32 %v2344, 2147483648
  %v2349 = vmul.f32 %v2348, 1.442695
  %v2350 = vpow.pop %v2349
  %v2351 = vadd.f32 %v2350, 1.0
  %v2352 = vrcp.pop %v2351
  %v2353 = vmul.f32 1.0, %v2352
  %v2354 = vxor.u32 %v2345, 2147483648
  %v2355 = vmul.f32 %v2354, 1.442695
  %v2356 = vpow.pop %v2355
  %v2357 = vadd.f32 %v2356, 1.0
  %v2358 = vrcp.pop %v2357
  %v2359 = vmul.f32 1.0, %v2358
  %v2360 = vtanh.pop %v2346
  %v2361 = vxor.u32 %v2347, 2147483648
  %v2362 = vmul.f32 %v2361, 1.442695
  %v2363 = vpow.pop %v2362
  %v2364 = vadd.f32 %v2363, 1.0
  %v2365 = vrcp.pop %v2364
  %v2366 = vmul.f32 1.0, %v2365
  %v2367 = vmul.f32 %v2359, %v2033
  %v2368 = vmul.f32 %v2353, %v2360
  %v2369 = vadd.f32 %v2367, %v2368
  %v2370 = vtanh.pop %v2369
  %v2371 = vmul.f32 %v2366, %v2370
  %2372 = vmatprep.subr.mxu0 %v373
  %2373 = vmatpush1.msra.mxu0 %v372
  %2374 = vmatprep.subr.mxu0 %v377
  %2375 = vmatpush1.msra.mxu0 %v376
  %2376 = vmatprep.subr.mxu0 %v381
  %2377 = vmatpush1.msra.mxu0 %v380
  %2378 = vmatprep.subr.mxu0 %v385
  %2379 = vmatpush1.msra.mxu0 %v384
  %2380 = vmatprep.subr.mxu0 %v389
  %2381 = vmatpush1.msra.mxu0 %v388
  %2382 = vmatprep.subr.mxu0 %v393
  %2383 = vmatpush1.msra.mxu0 %v392
  %2384 = vmatprep.subr.mxu0 %v397
  %2385 = vmatpush1.msra.mxu0 %v396
  %2386 = vmatprep.subr.mxu0 %v401
  %2387 = vmatpush1.msra.mxu0 %v400
  %2388 = vmatprep.subr.mxu0 %v405
  %2389 = vmatpush1.msra.mxu0 %v404
  %2390 = vmatprep.subr.mxu0 %v409
  %2391 = vmatpush1.msra.mxu0 %v408
  %2392 = vmatprep.subr.mxu0 %v413
  %2393 = vmatpush1.msra.mxu0 %v412
  %2394 = vmatprep.subr.mxu0 %v417
  %2395 = vmatpush1.msra.mxu0 %v416
  %2396 = vmatprep.subr.mxu0 %v421
  %2397 = vmatpush1.msra.mxu0 %v420
  %2398 = vmatprep.subr.mxu0 %v425
  %2399 = vmatpush1.msra.mxu0 %v424
  %2400 = vmatprep.subr.mxu0 %v429
  %2401 = vmatpush1.msra.mxu0 %v428
  %2402 = vmatprep.subr.mxu0 %v433
  %2403 = vmatpush1.msra.mxu0 %v432
  %2404 = vmatprep.subr.mxu0 %v437
  %2405 = vmatpush1.msra.mxu0 %v436
  %2406 = vmatprep.subr.mxu0 %v441
  %2407 = vmatpush1.msra.mxu0 %v440
  %2408 = vmatprep.subr.mxu0 %v445
  %2409 = vmatpush1.msra.mxu0 %v444
  %2410 = vmatprep.subr.mxu0 %v449
  %2411 = vmatpush1.msra.mxu0 %v448
  %2412 = vmatprep.subr.mxu0 %v453
  %2413 = vmatpush1.msra.mxu0 %v452
  %2414 = vmatprep.subr.mxu0 %v457
  %2415 = vmatpush1.msra.mxu0 %v456
  %2416 = vmatprep.subr.mxu0 %v461
  %2417 = vmatpush1.msra.mxu0 %v460
  %2418 = vmatprep.subr.mxu0 %v465
  %2419 = vmatpush1.msra.mxu0 %v464
  %2420 = vmatprep.subr.mxu0 %v469
  %2421 = vmatpush1.msra.mxu0 %v468
  %2422 = vmatprep.subr.mxu0 %v473
  %2423 = vmatpush1.msra.mxu0 %v472
  %2424 = vmatprep.subr.mxu0 %v477
  %2425 = vmatpush1.msra.mxu0 %v476
  %2426 = vmatprep.subr.mxu0 %v481
  %2427 = vmatpush1.msra.mxu0 %v480
  %2428 = vmatprep.subr.mxu0 %v485
  %2429 = vmatpush1.msra.mxu0 %v484
  %2430 = vmatprep.subr.mxu0 %v489
  %2431 = vmatpush1.msra.mxu0 %v488
  %2432 = vmatprep.subr.mxu0 %v493
  %2433 = vmatpush1.msra.mxu0 %v492
  %2434 = vmatprep.subr.mxu0 %v497
  %2435 = vmatpush1.msra.mxu0 %v496
  %2436 = vmatprep.mubr.f32.mxu0 %v2201
  %2437 = vmatmul.mubr.f32.gmra.mrb[0].mxu0 %v2371
  %v2438 = vpop.f32.mrb[0].mxu0
  %v2439 = vadd.f32 %v675, %v2438
  %v2440 = vpop.f32.mrb[0].mxu0
  %v2441 = vadd.f32 %v679, %v2440
  %2442 = vdwg.mxu0
  %2443 = vmatprep.subr.mxu0 %v375
  %2444 = vmatpush1.msra.mxu0 %v374
  %2445 = vmatprep.subr.mxu0 %v379
  %2446 = vmatpush1.msra.mxu0 %v378
  %2447 = vmatprep.subr.mxu0 %v383
  %2448 = vmatpush1.msra.mxu0 %v382
  %2449 = vmatprep.subr.mxu0 %v387
  %2450 = vmatpush1.msra.mxu0 %v386
  %2451 = vmatprep.subr.mxu0 %v391
  %2452 = vmatpush1.msra.mxu0 %v390
  %2453 = vmatprep.subr.mxu0 %v395
  %2454 = vmatpush1.msra.mxu0 %v394
  %2455 = vmatprep.subr.mxu0 %v399
  %2456 = vmatpush1.msra.mxu0 %v398
  %2457 = vmatprep.subr.mxu0 %v403
  %2458 = vmatpush1.msra.mxu0 %v402
  %2459 = vmatprep.subr.mxu0 %v407
  %2460 = vmatpush1.msra.mxu0 %v406
  %2461 = vmatprep.subr.mxu0 %v411
  %2462 = vmatpush1.msra.mxu0 %v410
  %2463 = vmatprep.subr.mxu0 %v415
  %2464 = vmatpush1.msra.mxu0 %v414
  %2465 = vmatprep.subr.mxu0 %v419
  %2466 = vmatpush1.msra.mxu0 %v418
  %2467 = vmatprep.subr.mxu0 %v423
  %2468 = vmatpush1.msra.mxu0 %v422
  %2469 = vmatprep.subr.mxu0 %v427
  %2470 = vmatpush1.msra.mxu0 %v426
  %2471 = vmatprep.subr.mxu0 %v431
  %2472 = vmatpush1.msra.mxu0 %v430
  %2473 = vmatprep.subr.mxu0 %v435
  %2474 = vmatpush1.msra.mxu0 %v434
  %2475 = vmatprep.subr.mxu0 %v439
  %2476 = vmatpush1.msra.mxu0 %v438
  %2477 = vmatprep.subr.mxu0 %v443
  %2478 = vmatpush1.msra.mxu0 %v442
  %2479 = vmatprep.subr.mxu0 %v447
  %2480 = vmatpush1.msra.mxu0 %v446
  %2481 = vmatprep.subr.mxu0 %v451
  %2482 = vmatpush1.msra.mxu0 %v450
  %2483 = vmatprep.subr.mxu0 %v455
  %2484 = vmatpush1.msra.mxu0 %v454
  %2485 = vmatprep.subr.mxu0 %v459
  %2486 = vmatpush1.msra.mxu0 %v458
  %2487 = vmatprep.subr.mxu0 %v463
  %2488 = vmatpush1.msra.mxu0 %v462
  %2489 = vmatprep.subr.mxu0 %v467
  %2490 = vmatpush1.msra.mxu0 %v466
  %2491 = vmatprep.subr.mxu0 %v471
  %2492 = vmatpush1.msra.mxu0 %v470
  %2493 = vmatprep.subr.mxu0 %v475
  %2494 = vmatpush1.msra.mxu0 %v474
  %2495 = vmatprep.subr.mxu0 %v479
  %2496 = vmatpush1.msra.mxu0 %v478
  %2497 = vmatprep.subr.mxu0 %v483
  %2498 = vmatpush1.msra.mxu0 %v482
  %2499 = vmatprep.subr.mxu0 %v487
  %2500 = vmatpush1.msra.mxu0 %v486
  %2501 = vmatprep.subr.mxu0 %v491
  %2502 = vmatpush1.msra.mxu0 %v490
  %2503 = vmatprep.subr.mxu0 %v495
  %2504 = vmatpush1.msra.mxu0 %v494
  %2505 = vmatprep.subr.mxu0 %v499
  %2506 = vmatpush1.msra.mxu0 %v498
  %2507 = vmatprep.mubr.f32.mxu0 %v2201
  %2508 = vmatmul.mubr.f32.gmra.mrb[0].mxu0 %v2371
  %v2509 = vpop.f32.mrb[0].mxu0
  %v2510 = vadd.f32 %v683, %v2509
  %v2511 = vpop.f32.mrb[0].mxu0
  %v2512 = vadd.f32 %v687, %v2511
  %2513 = vdwg.mxu0
  %v2514 = vxor.u32 %v2439, 2147483648
  %v2515 = vmul.f32 %v2514, 1.442695
  %v2516 = vpow.pop %v2515
  %v2517 = vadd.f32 %v2516, 1.0
  %v2518 = vrcp.pop %v2517
  %v2519 = vmul.f32 1.0, %v2518
  %v2520 = vxor.u32 %v2441, 2147483648
  %v2521 = vmul.f32 %v2520, 1.442695
  %v2522 = vpow.pop %v2521
  %v2523 = vadd.f32 %v2522, 1.0
  %v2524 = vrcp.pop %v2523
  %v2525 = vmul.f32 1.0, %v2524
  %v2526 = vtanh.pop %v2510
  %v2527 = vxor.u32 %v2512, 2147483648
  %v2528 = vmul.f32 %v2527, 1.442695
  %v2529 = vpow.pop %v2528
  %v2530 = vadd.f32 %v2529, 1.0
  %v2531 = vrcp.pop %v2530
  %v2532 = vmul.f32 1.0, %v2531
  %v2533 = vmul.f32 %v2525, %v2199
  %v2534 = vmul.f32 %v2519, %v2526
  %v2535 = vadd.f32 %v2533, %v2534
  %v2536 = vtanh.pop %v2535
  %v2537 = vmul.f32 %v2532, %v2536
  %2538 = vmatprep.subr.mxu0 %v309
  %2539 = vmatpush1.msra.mxu0 %v308
  %2540 = vmatprep.subr.mxu0 %v313
  %2541 = vmatpush1.msra.mxu0 %v312
  %2542 = vmatprep.subr.mxu0 %v317
  %2543 = vmatpush1.msra.mxu0 %v316
  %2544 = vmatprep.subr.mxu0 %v321
  %2545 = vmatpush1.msra.mxu0 %v320
  %2546 = vmatprep.subr.mxu0 %v325
  %2547 = vmatpush1.msra.mxu0 %v324
  %2548 = vmatprep.subr.mxu0 %v329
  %2549 = vmatpush1.msra.mxu0 %v328
  %2550 = vmatprep.subr.mxu0 %v333
  %2551 = vmatpush1.msra.mxu0 %v332
  %2552 = vmatprep.subr.mxu0 %v337
  %2553 = vmatpush1.msra.mxu0 %v336
  %2554 = vmatprep.subr.mxu0 %v341
  %2555 = vmatpush1.msra.mxu0 %v340
  %2556 = vmatprep.subr.mxu0 %v345
  %2557 = vmatpush1.msra.mxu0 %v344
  %2558 = vmatprep.subr.mxu0 %v349
  %2559 = vmatpush1.msra.mxu0 %v348
  %2560 = vmatprep.subr.mxu0 %v353
  %2561 = vmatpush1.msra.mxu0 %v352
  %2562 = vmatprep.subr.mxu0 %v357
  %2563 = vmatpush1.msra.mxu0 %v356
  %2564 = vmatprep.subr.mxu0 %v361
  %2565 = vmatpush1.msra.mxu0 %v360
  %2566 = vmatprep.subr.mxu0 %v365
  %2567 = vmatpush1.msra.mxu0 %v364
  %2568 = vmatprep.subr.mxu0 %v369
  %2569 = vmatpush1.msra.mxu0 %v368
  %2570 = vmatprep.subr.mxu0 0.0
  %2571 = vmatpush1.msra.mxu0 0.0
  %2572 = vmatprep.subr.mxu0 0.0
  %2573 = vmatpush1.msra.mxu0 0.0
  %2574 = vmatprep.subr.mxu0 0.0
  %2575 = vmatpush1.msra.mxu0 0.0
  %2576 = vmatprep.subr.mxu0 0.0
  %2577 = vmatpush1.msra.mxu0 0.0
  %2578 = vmatprep.subr.mxu0 0.0
  %2579 = vmatpush1.msra.mxu0 0.0
  %2580 = vmatprep.subr.mxu0 0.0
  %2581 = vmatpush1.msra.mxu0 0.0
  %2582 = vmatprep.subr.mxu0 0.0
  %2583 = vmatpush1.msra.mxu0 0.0
  %2584 = vmatprep.subr.mxu0 0.0
  %2585 = vmatpush1.msra.mxu0 0.0
  %2586 = vmatprep.subr.mxu0 0.0
  %2587 = vmatpush1.msra.mxu0 0.0
  %2588 = vmatprep.subr.mxu0 0.0
  %2589 = vmatpush1.msra.mxu0 0.0
  %2590 = vmatprep.subr.mxu0 0.0
  %2591 = vmatpush1.msra.mxu0 0.0
  %2592 = vmatprep.subr.mxu0 0.0
  %2593 = vmatpush1.msra.mxu0 0.0
  %2594 = vmatprep.subr.mxu0 0.0
  %2595 = vmatpush1.msra.mxu0 0.0
  %2596 = vmatprep.subr.mxu0 0.0
  %2597 = vmatpush1.msra.mxu0 0.0
  %2598 = vmatprep.subr.mxu0 0.0
  %2599 = vmatpush1.msra.mxu0 0.0
  %2600 = vmatprep.subr.mxu0 0.0
  %2601 = vmatpush1.msra.mxu0 0.0
  %2602 = vmatprep.mubr.f32.mxu0 0.0
  %2603 = vmatmul.mubr.f32.gmra.mrb[0].mxu0 %v2371
  %v2604 = vpop.f32.mrb[0].mxu0
  %v2605 = vadd.f32 0.0, %v2604
  %v2606 = vpop.f32.mrb[0].mxu0
  %v2607 = vadd.f32 0.0, %v2606
  %2608 = vdwg.mxu0
  %2609 = vmatprep.subr.mxu0 %v311
  %2610 = vmatpush1.msra.mxu0 %v310
  %2611 = vmatprep.subr.mxu0 %v315
  %2612 = vmatpush1.msra.mxu0 %v314
  %2613 = vmatprep.subr.mxu0 %v319
  %2614 = vmatpush1.msra.mxu0 %v318
  %2615 = vmatprep.subr.mxu0 %v323
  %2616 = vmatpush1.msra.mxu0 %v322
  %2617 = vmatprep.subr.mxu0 %v327
  %2618 = vmatpush1.msra.mxu0 %v326
  %2619 = vmatprep.subr.mxu0 %v331
  %2620 = vmatpush1.msra.mxu0 %v330
  %2621 = vmatprep.subr.mxu0 %v335
  %2622 = vmatpush1.msra.mxu0 %v334
  %2623 = vmatprep.subr.mxu0 %v339
  %2624 = vmatpush1.msra.mxu0 %v338
  %2625 = vmatprep.subr.mxu0 %v343
  %2626 = vmatpush1.msra.mxu0 %v342
  %2627 = vmatprep.subr.mxu0 %v347
  %2628 = vmatpush1.msra.mxu0 %v346
  %2629 = vmatprep.subr.mxu0 %v351
  %2630 = vmatpush1.msra.mxu0 %v350
  %2631 = vmatprep.subr.mxu0 %v355
  %2632 = vmatpush1.msra.mxu0 %v354
  %2633 = vmatprep.subr.mxu0 %v359
  %2634 = vmatpush1.msra.mxu0 %v358
  %2635 = vmatprep.subr.mxu0 %v363
  %2636 = vmatpush1.msra.mxu0 %v362
  %2637 = vmatprep.subr.mxu0 %v367
  %2638 = vmatpush1.msra.mxu0 %v366
  %2639 = vmatprep.subr.mxu0 %v371
  %2640 = vmatpush1.msra.mxu0 %v370
  %2641 = vmatprep.subr.mxu0 0.0
  %2642 = vmatpush1.msra.mxu0 0.0
  %2643 = vmatprep.subr.mxu0 0.0
  %2644 = vmatpush1.msra.mxu0 0.0
  %2645 = vmatprep.subr.mxu0 0.0
  %2646 = vmatpush1.msra.mxu0 0.0
  %2647 = vmatprep.subr.mxu0 0.0
  %2648 = vmatpush1.msra.mxu0 0.0
  %2649 = vmatprep.subr.mxu0 0.0
  %2650 = vmatpush1.msra.mxu0 0.0
  %2651 = vmatprep.subr.mxu0 0.0
  %2652 = vmatpush1.msra.mxu0 0.0
  %2653 = vmatprep.subr.mxu0 0.0
  %2654 = vmatpush1.msra.mxu0 0.0
  %2655 = vmatprep.subr.mxu0 0.0
  %2656 = vmatpush1.msra.mxu0 0.0
  %2657 = vmatprep.subr.mxu0 0.0
  %2658 = vmatpush1.msra.mxu0 0.0
  %2659 = vmatprep.subr.mxu0 0.0
  %2660 = vmatpush1.msra.mxu0 0.0
  %2661 = vmatprep.subr.mxu0 0.0
  %2662 = vmatpush1.msra.mxu0 0.0
  %2663 = vmatprep.subr.mxu0 0.0
  %2664 = vmatpush1.msra.mxu0 0.0
  %2665 = vmatprep.subr.mxu0 0.0
  %2666 = vmatpush1.msra.mxu0 0.0
  %2667 = vmatprep.subr.mxu0 0.0
  %2668 = vmatpush1.msra.mxu0 0.0
  %2669 = vmatprep.subr.mxu0 0.0
  %2670 = vmatpush1.msra.mxu0 0.0
  %2671 = vmatprep.subr.mxu0 0.0
  %2672 = vmatpush1.msra.mxu0 0.0
  %2673 = vmatprep.mubr.f32.mxu0 0.0
  %2674 = vmatmul.mubr.f32.gmra.mrb[0].mxu0 %v2371
  %v2675 = vpop.f32.mrb[0].mxu0
  %v2676 = vadd.f32 0.0, %v2675
  %v2677 = vpop.f32.mrb[0].mxu0
  %v2678 = vadd.f32 0.0, %v2677
  %2679 = vdwg.mxu0
  %v2680 = vadd.f32 %v185, %v2605
  %v2681 = vadd.f32 %v187, %v2607
  %v2682 = vadd.f32 %v298, %v2676
  %v2683 = vadd.f32 %v300, %v2678
  %v2684 = vxor.u32 %v2680, 2147483648
  %v2685 = vmul.f32 %v2684, 1.442695
  %v2686 = vpow.pop %v2685
  %v2687 = vadd.f32 %v2686, 1.0
  %v2688 = vrcp.pop %v2687
  %v2689 = vmul.f32 1.0, %v2688
  %v2690 = vxor.u32 %v2681, 2147483648
  %v2691 = vmul.f32 %v2690, 1.442695
  %v2692 = vpow.pop %v2691
  %v2693 = vadd.f32 %v2692, 1.0
  %v2694 = vrcp.pop %v2693
  %v2695 = vmul.f32 1.0, %v2694
  %v2696 = vtanh.pop %v2682
  %v2697 = vxor.u32 %v2683, 2147483648
  %v2698 = vmul.f32 %v2697, 1.442695
  %v2699 = vpow.pop %v2698
  %v2700 = vadd.f32 %v2699, 1.0
  %v2701 = vrcp.pop %v2700
  %v2702 = vmul.f32 1.0, %v2701
  %v2703 = vmul.f32 %v2695, %v2369
  %v2704 = vmul.f32 %v2689, %v2696
  %v2705 = vadd.f32 %v2703, %v2704
  %v2706 = vtanh.pop %v2705
  %v2707 = vmul.f32 %v2702, %v2706
  %2708 = vmatprep.subr.mxu0 %v373
  %2709 = vmatpush1.msra.mxu0 %v372
  %2710 = vmatprep.subr.mxu0 %v377
  %2711 = vmatpush1.msra.mxu0 %v376
  %2712 = vmatprep.subr.mxu0 %v381
  %2713 = vmatpush1.msra.mxu0 %v380
  %2714 = vmatprep.subr.mxu0 %v385
  %2715 = vmatpush1.msra.mxu0 %v384
  %2716 = vmatprep.subr.mxu0 %v389
  %2717 = vmatpush1.msra.mxu0 %v388
  %2718 = vmatprep.subr.mxu0 %v393
  %2719 = vmatpush1.msra.mxu0 %v392
  %2720 = vmatprep.subr.mxu0 %v397
  %2721 = vmatpush1.msra.mxu0 %v396
  %2722 = vmatprep.subr.mxu0 %v401
  %2723 = vmatpush1.msra.mxu0 %v400
  %2724 = vmatprep.subr.mxu0 %v405
  %2725 = vmatpush1.msra.mxu0 %v404
  %2726 = vmatprep.subr.mxu0 %v409
  %2727 = vmatpush1.msra.mxu0 %v408
  %2728 = vmatprep.subr.mxu0 %v413
  %2729 = vmatpush1.msra.mxu0 %v412
  %2730 = vmatprep.subr.mxu0 %v417
  %2731 = vmatpush1.msra.mxu0 %v416
  %2732 = vmatprep.subr.mxu0 %v421
  %2733 = vmatpush1.msra.mxu0 %v420
  %2734 = vmatprep.subr.mxu0 %v425
  %2735 = vmatpush1.msra.mxu0 %v424
  %2736 = vmatprep.subr.mxu0 %v429
  %2737 = vmatpush1.msra.mxu0 %v428
  %2738 = vmatprep.subr.mxu0 %v433
  %2739 = vmatpush1.msra.mxu0 %v432
  %2740 = vmatprep.subr.mxu0 %v437
  %2741 = vmatpush1.msra.mxu0 %v436
  %2742 = vmatprep.subr.mxu0 %v441
  %2743 = vmatpush1.msra.mxu0 %v440
  %2744 = vmatprep.subr.mxu0 %v445
  %2745 = vmatpush1.msra.mxu0 %v444
  %2746 = vmatprep.subr.mxu0 %v449
  %2747 = vmatpush1.msra.mxu0 %v448
  %2748 = vmatprep.subr.mxu0 %v453
  %2749 = vmatpush1.msra.mxu0 %v452
  %2750 = vmatprep.subr.mxu0 %v457
  %2751 = vmatpush1.msra.mxu0 %v456
  %2752 = vmatprep.subr.mxu0 %v461
  %2753 = vmatpush1.msra.mxu0 %v460
  %2754 = vmatprep.subr.mxu0 %v465
  %2755 = vmatpush1.msra.mxu0 %v464
  %2756 = vmatprep.subr.mxu0 %v469
  %2757 = vmatpush1.msra.mxu0 %v468
  %2758 = vmatprep.subr.mxu0 %v473
  %2759 = vmatpush1.msra.mxu0 %v472
  %2760 = vmatprep.subr.mxu0 %v477
  %2761 = vmatpush1.msra.mxu0 %v476
  %2762 = vmatprep.subr.mxu0 %v481
  %2763 = vmatpush1.msra.mxu0 %v480
  %2764 = vmatprep.subr.mxu0 %v485
  %2765 = vmatpush1.msra.mxu0 %v484
  %2766 = vmatprep.subr.mxu0 %v489
  %2767 = vmatpush1.msra.mxu0 %v488
  %2768 = vmatprep.subr.mxu0 %v493
  %2769 = vmatpush1.msra.mxu0 %v492
  %2770 = vmatprep.subr.mxu0 %v497
  %2771 = vmatpush1.msra.mxu0 %v496
  %2772 = vmatprep.mubr.f32.mxu0 %v2537
  %2773 = vmatmul.mubr.f32.gmra.mrb[0].mxu0 %v2707
  %v2774 = vpop.f32.mrb[0].mxu0
  %v2775 = vadd.f32 %v675, %v2774
  %v2776 = vpop.f32.mrb[0].mxu0
  %v2777 = vadd.f32 %v679, %v2776
  %2778 = vdwg.mxu0
  %2779 = vmatprep.subr.mxu0 %v375
  %2780 = vmatpush1.msra.mxu0 %v374
  %2781 = vmatprep.subr.mxu0 %v379
  %2782 = vmatpush1.msra.mxu0 %v378
  %2783 = vmatprep.subr.mxu0 %v383
  %2784 = vmatpush1.msra.mxu0 %v382
  %2785 = vmatprep.subr.mxu0 %v387
  %2786 = vmatpush1.msra.mxu0 %v386
  %2787 = vmatprep.subr.mxu0 %v391
  %2788 = vmatpush1.msra.mxu0 %v390
  %2789 = vmatprep.subr.mxu0 %v395
  %2790 = vmatpush1.msra.mxu0 %v394
  %2791 = vmatprep.subr.mxu0 %v399
  %2792 = vmatpush1.msra.mxu0 %v398
  %2793 = vmatprep.subr.mxu0 %v403
  %2794 = vmatpush1.msra.mxu0 %v402
  %2795 = vmatprep.subr.mxu0 %v407
  %2796 = vmatpush1.msra.mxu0 %v406
  %2797 = vmatprep.subr.mxu0 %v411
  %2798 = vmatpush1.msra.mxu0 %v410
  %2799 = vmatprep.subr.mxu0 %v415
  %2800 = vmatpush1.msra.mxu0 %v414
  %2801 = vmatprep.subr.mxu0 %v419
  %2802 = vmatpush1.msra.mxu0 %v418
  %2803 = vmatprep.subr.mxu0 %v423
  %2804 = vmatpush1.msra.mxu0 %v422
  %2805 = vmatprep.subr.mxu0 %v427
  %2806 = vmatpush1.msra.mxu0 %v426
  %2807 = vmatprep.subr.mxu0 %v431
  %2808 = vmatpush1.msra.mxu0 %v430
  %2809 = vmatprep.subr.mxu0 %v435
  %2810 = vmatpush1.msra.mxu0 %v434
  %2811 = vmatprep.subr.mxu0 %v439
  %2812 = vmatpush1.msra.mxu0 %v438
  %2813 = vmatprep.subr.mxu0 %v443
  %2814 = vmatpush1.msra.mxu0 %v442
  %2815 = vmatprep.subr.mxu0 %v447
  %2816 = vmatpush1.msra.mxu0 %v446
  %2817 = vmatprep.subr.mxu0 %v451
  %2818 = vmatpush1.msra.mxu0 %v450
  %2819 = vmatprep.subr.mxu0 %v455
  %2820 = vmatpush1.msra.mxu0 %v454
  %2821 = vmatprep.subr.mxu0 %v459
  %2822 = vmatpush1.msra.mxu0 %v458
  %2823 = vmatprep.subr.mxu0 %v463
  %2824 = vmatpush1.msra.mxu0 %v462
  %2825 = vmatprep.subr.mxu0 %v467
  %2826 = vmatpush1.msra.mxu0 %v466
  %2827 = vmatprep.subr.mxu0 %v471
  %2828 = vmatpush1.msra.mxu0 %v470
  %2829 = vmatprep.subr.mxu0 %v475
  %2830 = vmatpush1.msra.mxu0 %v474
  %2831 = vmatprep.subr.mxu0 %v479
  %2832 = vmatpush1.msra.mxu0 %v478
  %2833 = vmatprep.subr.mxu0 %v483
  %2834 = vmatpush1.msra.mxu0 %v482
  %2835 = vmatprep.subr.mxu0 %v487
  %2836 = vmatpush1.msra.mxu0 %v486
  %2837 = vmatprep.subr.mxu0 %v491
  %2838 = vmatpush1.msra.mxu0 %v490
  %2839 = vmatprep.subr.mxu0 %v495
  %2840 = vmatpush1.msra.mxu0 %v494
  %2841 = vmatprep.subr.mxu0 %v499
  %2842 = vmatpush1.msra.mxu0 %v498
  %2843 = vmatprep.mubr.f32.mxu0 %v2537
  %2844 = vmatmul.mubr.f32.gmra.mrb[0].mxu0 %v2707
  %v2845 = vpop.f32.mrb[0].mxu0
  %v2846 = vadd.f32 %v683, %v2845
  %v2847 = vpop.f32.mrb[0].mxu0
  %v2848 = vadd.f32 %v687, %v2847
  %2849 = vdwg.mxu0
  %v2850 = vxor.u32 %v2775, 2147483648
  %v2851 = vmul.f32 %v2850, 1.442695
  %v2852 = vpow.pop %v2851
  %v2853 = vadd.f32 %v2852, 1.0
  %v2854 = vrcp.pop %v2853
  %v2855 = vmul.f32 1.0, %v2854
  %v2856 = vxor.u32 %v2777, 2147483648
  %v2857 = vmul.f32 %v2856, 1.442695
  %v2858 = vpow.pop %v2857
  %v2859 = vadd.f32 %v2858, 1.0
  %v2860 = vrcp.pop %v2859
  %v2861 = vmul.f32 1.0, %v2860
  %v2862 = vtanh.pop %v2846
  %v2863 = vxor.u32 %v2848, 2147483648
  %v2864 = vmul.f32 %v2863, 1.442695
  %v2865 = vpow.pop %v2864
  %v2866 = vadd.f32 %v2865, 1.0
  %v2867 = vrcp.pop %v2866
  %v2868 = vmul.f32 1.0, %v2867
  %v2869 = vmul.f32 %v2861, %v2535
  %v2870 = vmul.f32 %v2855, %v2862
  %v2871 = vadd.f32 %v2869, %v2870
  %v2872 = vtanh.pop %v2871
  %v2873 = vmul.f32 %v2868, %v2872
  %2874 = vmatprep.subr.mxu0 %v309
  %2875 = vmatpush1.msra.mxu0 %v308
  %2876 = vmatprep.subr.mxu0 %v313
  %2877 = vmatpush1.msra.mxu0 %v312
  %2878 = vmatprep.subr.mxu0 %v317
  %2879 = vmatpush1.msra.mxu0 %v316
  %2880 = vmatprep.subr.mxu0 %v321
  %2881 = vmatpush1.msra.mxu0 %v320
  %2882 = vmatprep.subr.mxu0 %v325
  %2883 = vmatpush1.msra.mxu0 %v324
  %2884 = vmatprep.subr.mxu0 %v329
  %2885 = vmatpush1.msra.mxu0 %v328
  %2886 = vmatprep.subr.mxu0 %v333
  %2887 = vmatpush1.msra.mxu0 %v332
  %2888 = vmatprep.subr.mxu0 %v337
  %2889 = vmatpush1.msra.mxu0 %v336
  %2890 = vmatprep.subr.mxu0 %v341
  %2891 = vmatpush1.msra.mxu0 %v340
  %2892 = vmatprep.subr.mxu0 %v345
  %2893 = vmatpush1.msra.mxu0 %v344
  %2894 = vmatprep.subr.mxu0 %v349
  %2895 = vmatpush1.msra.mxu0 %v348
  %2896 = vmatprep.subr.mxu0 %v353
  %2897 = vmatpush1.msra.mxu0 %v352
  %2898 = vmatprep.subr.mxu0 %v357
  %2899 = vmatpush1.msra.mxu0 %v356
  %2900 = vmatprep.subr.mxu0 %v361
  %2901 = vmatpush1.msra.mxu0 %v360
  %2902 = vmatprep.subr.mxu0 %v365
  %2903 = vmatpush1.msra.mxu0 %v364
  %2904 = vmatprep.subr.mxu0 %v369
  %2905 = vmatpush1.msra.mxu0 %v368
  %2906 = vmatprep.subr.mxu0 0.0
  %2907 = vmatpush1.msra.mxu0 0.0
  %2908 = vmatprep.subr.mxu0 0.0
  %2909 = vmatpush1.msra.mxu0 0.0
  %2910 = vmatprep.subr.mxu0 0.0
  %2911 = vmatpush1.msra.mxu0 0.0
  %2912 = vmatprep.subr.mxu0 0.0
  %2913 = vmatpush1.msra.mxu0 0.0
  %2914 = vmatprep.subr.mxu0 0.0
  %2915 = vmatpush1.msra.mxu0 0.0
  %2916 = vmatprep.subr.mxu0 0.0
  %2917 = vmatpush1.msra.mxu0 0.0
  %2918 = vmatprep.subr.mxu0 0.0
  %2919 = vmatpush1.msra.mxu0 0.0
  %2920 = vmatprep.subr.mxu0 0.0
  %2921 = vmatpush1.msra.mxu0 0.0
  %2922 = vmatprep.subr.mxu0 0.0
  %2923 = vmatpush1.msra.mxu0 0.0
  %2924 = vmatprep.subr.mxu0 0.0
  %2925 = vmatpush1.msra.mxu0 0.0
  %2926 = vmatprep.subr.mxu0 0.0
  %2927 = vmatpush1.msra.mxu0 0.0
  %2928 = vmatprep.subr.mxu0 0.0
  %2929 = vmatpush1.msra.mxu0 0.0
  %2930 = vmatprep.subr.mxu0 0.0
  %2931 = vmatpush1.msra.mxu0 0.0
  %2932 = vmatprep.subr.mxu0 0.0
  %2933 = vmatpush1.msra.mxu0 0.0
  %2934 = vmatprep.subr.mxu0 0.0
  %2935 = vmatpush1.msra.mxu0 0.0
  %2936 = vmatprep.subr.mxu0 0.0
  %2937 = vmatpush1.msra.mxu0 0.0
  %2938 = vmatprep.mubr.f32.mxu0 0.0
  %2939 = vmatmul.mubr.f32.gmra.mrb[0].mxu0 %v2707
  %v2940 = vpop.f32.mrb[0].mxu0
  %v2941 = vadd.f32 0.0, %v2940
  %v2942 = vpop.f32.mrb[0].mxu0
  %v2943 = vadd.f32 0.0, %v2942
  %2944 = vdwg.mxu0
  %2945 = vmatprep.subr.mxu0 %v311
  %2946 = vmatpush1.msra.mxu0 %v310
  %2947 = vmatprep.subr.mxu0 %v315
  %2948 = vmatpush1.msra.mxu0 %v314
  %2949 = vmatprep.subr.mxu0 %v319
  %2950 = vmatpush1.msra.mxu0 %v318
  %2951 = vmatprep.subr.mxu0 %v323
  %2952 = vmatpush1.msra.mxu0 %v322
  %2953 = vmatprep.subr.mxu0 %v327
  %2954 = vmatpush1.msra.mxu0 %v326
  %2955 = vmatprep.subr.mxu0 %v331
  %2956 = vmatpush1.msra.mxu0 %v330
  %2957 = vmatprep.subr.mxu0 %v335
  %2958 = vmatpush1.msra.mxu0 %v334
  %2959 = vmatprep.subr.mxu0 %v339
  %2960 = vmatpush1.msra.mxu0 %v338
  %2961 = vmatprep.subr.mxu0 %v343
  %2962 = vmatpush1.msra.mxu0 %v342
  %2963 = vmatprep.subr.mxu0 %v347
  %2964 = vmatpush1.msra.mxu0 %v346
  %2965 = vmatprep.subr.mxu0 %v351
  %2966 = vmatpush1.msra.mxu0 %v350
  %2967 = vmatprep.subr.mxu0 %v355
  %2968 = vmatpush1.msra.mxu0 %v354
  %2969 = vmatprep.subr.mxu0 %v359
  %2970 = vmatpush1.msra.mxu0 %v358
  %2971 = vmatprep.subr.mxu0 %v363
  %2972 = vmatpush1.msra.mxu0 %v362
  %2973 = vmatprep.subr.mxu0 %v367
  %2974 = vmatpush1.msra.mxu0 %v366
  %2975 = vmatprep.subr.mxu0 %v371
  %2976 = vmatpush1.msra.mxu0 %v370
  %2977 = vmatprep.subr.mxu0 0.0
  %2978 = vmatpush1.msra.mxu0 0.0
  %2979 = vmatprep.subr.mxu0 0.0
  %2980 = vmatpush1.msra.mxu0 0.0
  %2981 = vmatprep.subr.mxu0 0.0
  %2982 = vmatpush1.msra.mxu0 0.0
  %2983 = vmatprep.subr.mxu0 0.0
  %2984 = vmatpush1.msra.mxu0 0.0
  %2985 = vmatprep.subr.mxu0 0.0
  %2986 = vmatpush1.msra.mxu0 0.0
  %2987 = vmatprep.subr.mxu0 0.0
  %2988 = vmatpush1.msra.mxu0 0.0
  %2989 = vmatprep.subr.mxu0 0.0
  %2990 = vmatpush1.msra.mxu0 0.0
  %2991 = vmatprep.subr.mxu0 0.0
  %2992 = vmatpush1.msra.mxu0 0.0
  %2993 = vmatprep.subr.mxu0 0.0
  %2994 = vmatpush1.msra.mxu0 0.0
  %2995 = vmatprep.subr.mxu0 0.0
  %2996 = vmatpush1.msra.mxu0 0.0
  %2997 = vmatprep.subr.mxu0 0.0
  %2998 = vmatpush1.msra.mxu0 0.0
  %2999 = vmatprep.subr.mxu0 0.0
  %3000 = vmatpush1.msra.mxu0 0.0
  %3001 = vmatprep.subr.mxu0 0.0
  %3002 = vmatpush1.msra.mxu0 0.0
  %3003 = vmatprep.subr.mxu0 0.0
  %3004 = vmatpush1.msra.mxu0 0.0
  %3005 = vmatprep.subr.mxu0 0.0
  %3006 = vmatpush1.msra.mxu0 0.0
  %3007 = vmatprep.subr.mxu0 0.0
  %3008 = vmatpush1.msra.mxu0 0.0
  %3009 = vmatprep.mubr.f32.mxu0 0.0
  %3010 = vmatmul.mubr.f32.gmra.mrb[0].mxu0 %v2707
  %v3011 = vpop.f32.mrb[0].mxu0
  %v3012 = vadd.f32 0.0, %v3011
  %v3013 = vpop.f32.mrb[0].mxu0
  %v3014 = vadd.f32 0.0, %v3013
  %3015 = vdwg.mxu0
  %v3016 = vadd.f32 %v191, %v2941
  %v3017 = vadd.f32 %v193, %v2943
  %v3018 = vadd.f32 %v304, %v3012
  %v3019 = vadd.f32 %v306, %v3014
  %v3020 = vxor.u32 %v3016, 2147483648
  %v3021 = vmul.f32 %v3020, 1.442695
  %v3022 = vpow.pop %v3021
  %v3023 = vadd.f32 %v3022, 1.0
  %v3024 = vrcp.pop %v3023
  %v3025 = vmul.f32 1.0, %v3024
  %v3026 = vxor.u32 %v3017, 2147483648
  %v3027 = vmul.f32 %v3026, 1.442695
  %v3028 = vpow.pop %v3027
  %v3029 = vadd.f32 %v3028, 1.0
  %v3030 = vrcp.pop %v3029
  %v3031 = vmul.f32 1.0, %v3030
  %v3032 = vtanh.pop %v3018
  %v3033 = vxor.u32 %v3019, 2147483648
  %v3034 = vmul.f32 %v3033, 1.442695
  %v3035 = vpow.pop %v3034
  %v3036 = vadd.f32 %v3035, 1.0
  %v3037 = vrcp.pop %v3036
  %v3038 = vmul.f32 1.0, %v3037
  %v3039 = vmul.f32 %v3031, %v2705
  %v3040 = vmul.f32 %v3025, %v3032
  %v3041 = vadd.f32 %v3039, %v3040
  %v3042 = vtanh.pop %v3041
  %v3043 = vmul.f32 %v3038, %v3042
  %3044 = vmatprep.subr.mxu0 %v373
  %3045 = vmatpush1.msra.mxu0 %v372
  %3046 = vmatprep.subr.mxu0 %v377
  %3047 = vmatpush1.msra.mxu0 %v376
  %3048 = vmatprep.subr.mxu0 %v381
  %3049 = vmatpush1.msra.mxu0 %v380
  %3050 = vmatprep.subr.mxu0 %v385
  %3051 = vmatpush1.msra.mxu0 %v384
  %3052 = vmatprep.subr.mxu0 %v389
  %3053 = vmatpush1.msra.mxu0 %v388
  %3054 = vmatprep.subr.mxu0 %v393
  %3055 = vmatpush1.msra.mxu0 %v392
  %3056 = vmatprep.subr.mxu0 %v397
  %3057 = vmatpush1.msra.mxu0 %v396
  %3058 = vmatprep.subr.mxu0 %v401
  %3059 = vmatpush1.msra.mxu0 %v400
  %3060 = vmatprep.subr.mxu0 %v405
  %3061 = vmatpush1.msra.mxu0 %v404
  %3062 = vmatprep.subr.mxu0 %v409
  %3063 = vmatpush1.msra.mxu0 %v408
  %3064 = vmatprep.subr.mxu0 %v413
  %3065 = vmatpush1.msra.mxu0 %v412
  %3066 = vmatprep.subr.mxu0 %v417
  %3067 = vmatpush1.msra.mxu0 %v416
  %3068 = vmatprep.subr.mxu0 %v421
  %3069 = vmatpush1.msra.mxu0 %v420
  %3070 = vmatprep.subr.mxu0 %v425
  %3071 = vmatpush1.msra.mxu0 %v424
  %3072 = vmatprep.subr.mxu0 %v429
  %3073 = vmatpush1.msra.mxu0 %v428
  %3074 = vmatprep.subr.mxu0 %v433
  %3075 = vmatpush1.msra.mxu0 %v432
  %3076 = vmatprep.subr.mxu0 %v437
  %3077 = vmatpush1.msra.mxu0 %v436
  %3078 = vmatprep.subr.mxu0 %v441
  %3079 = vmatpush1.msra.mxu0 %v440
  %3080 = vmatprep.subr.mxu0 %v445
  %3081 = vmatpush1.msra.mxu0 %v444
  %3082 = vmatprep.subr.mxu0 %v449
  %3083 = vmatpush1.msra.mxu0 %v448
  %3084 = vmatprep.subr.mxu0 %v453
  %3085 = vmatpush1.msra.mxu0 %v452
  %3086 = vmatprep.subr.mxu0 %v457
  %3087 = vmatpush1.msra.mxu0 %v456
  %3088 = vmatprep.subr.mxu0 %v461
  %3089 = vmatpush1.msra.mxu0 %v460
  %3090 = vmatprep.subr.mxu0 %v465
  %3091 = vmatpush1.msra.mxu0 %v464
  %3092 = vmatprep.subr.mxu0 %v469
  %3093 = vmatpush1.msra.mxu0 %v468
  %3094 = vmatprep.subr.mxu0 %v473
  %3095 = vmatpush1.msra.mxu0 %v472
  %3096 = vmatprep.subr.mxu0 %v477
  %3097 = vmatpush1.msra.mxu0 %v476
  %3098 = vmatprep.subr.mxu0 %v481
  %3099 = vmatpush1.msra.mxu0 %v480
  %3100 = vmatprep.subr.mxu0 %v485
  %3101 = vmatpush1.msra.mxu0 %v484
  %3102 = vmatprep.subr.mxu0 %v489
  %3103 = vmatpush1.msra.mxu0 %v488
  %3104 = vmatprep.subr.mxu0 %v493
  %3105 = vmatpush1.msra.mxu0 %v492
  %3106 = vmatprep.subr.mxu0 %v497
  %3107 = vmatpush1.msra.mxu0 %v496
  %3108 = vmatprep.mubr.f32.mxu0 %v2873
  %3109 = vmatmul.mubr.f32.gmra.mrb[0].mxu0 %v3043
  %v3110 = vpop.f32.mrb[0].mxu0
  %v3111 = vadd.f32 %v675, %v3110
  %v3112 = vpop.f32.mrb[0].mxu0
  %v3113 = vadd.f32 %v679, %v3112
  %3114 = vdwg.mxu0
  %3115 = vmatprep.subr.mxu0 %v375
  %3116 = vmatpush1.msra.mxu0 %v374
  %3117 = vmatprep.subr.mxu0 %v379
  %3118 = vmatpush1.msra.mxu0 %v378
  %3119 = vmatprep.subr.mxu0 %v383
  %3120 = vmatpush1.msra.mxu0 %v382
  %3121 = vmatprep.subr.mxu0 %v387
  %3122 = vmatpush1.msra.mxu0 %v386
  %3123 = vmatprep.subr.mxu0 %v391
  %3124 = vmatpush1.msra.mxu0 %v390
  %3125 = vmatprep.subr.mxu0 %v395
  %3126 = vmatpush1.msra.mxu0 %v394
  %3127 = vmatprep.subr.mxu0 %v399
  %3128 = vmatpush1.msra.mxu0 %v398
  %3129 = vmatprep.subr.mxu0 %v403
  %3130 = vmatpush1.msra.mxu0 %v402
  %3131 = vmatprep.subr.mxu0 %v407
  %3132 = vmatpush1.msra.mxu0 %v406
  %3133 = vmatprep.subr.mxu0 %v411
  %3134 = vmatpush1.msra.mxu0 %v410
  %3135 = vmatprep.subr.mxu0 %v415
  %3136 = vmatpush1.msra.mxu0 %v414
  %3137 = vmatprep.subr.mxu0 %v419
  %3138 = vmatpush1.msra.mxu0 %v418
  %3139 = vmatprep.subr.mxu0 %v423
  %3140 = vmatpush1.msra.mxu0 %v422
  %3141 = vmatprep.subr.mxu0 %v427
  %3142 = vmatpush1.msra.mxu0 %v426
  %3143 = vmatprep.subr.mxu0 %v431
  %3144 = vmatpush1.msra.mxu0 %v430
  %3145 = vmatprep.subr.mxu0 %v435
  %3146 = vmatpush1.msra.mxu0 %v434
  %3147 = vmatprep.subr.mxu0 %v439
  %3148 = vmatpush1.msra.mxu0 %v438
  %3149 = vmatprep.subr.mxu0 %v443
  %3150 = vmatpush1.msra.mxu0 %v442
  %3151 = vmatprep.subr.mxu0 %v447
  %3152 = vmatpush1.msra.mxu0 %v446
  %3153 = vmatprep.subr.mxu0 %v451
  %3154 = vmatpush1.msra.mxu0 %v450
  %3155 = vmatprep.subr.mxu0 %v455
  %3156 = vmatpush1.msra.mxu0 %v454
  %3157 = vmatprep.subr.mxu0 %v459
  %3158 = vmatpush1.msra.mxu0 %v458
  %3159 = vmatprep.subr.mxu0 %v463
  %3160 = vmatpush1.msra.mxu0 %v462
  %3161 = vmatprep.subr.mxu0 %v467
  %3162 = vmatpush1.msra.mxu0 %v466
  %3163 = vmatprep.subr.mxu0 %v471
  %3164 = vmatpush1.msra.mxu0 %v470
  %3165 = vmatprep.subr.mxu0 %v475
  %3166 = vmatpush1.msra.mxu0 %v474
  %3167 = vmatprep.subr.mxu0 %v479
  %3168 = vmatpush1.msra.mxu0 %v478
  %3169 = vmatprep.subr.mxu0 %v483
  %3170 = vmatpush1.msra.mxu0 %v482
  %3171 = vmatprep.subr.mxu0 %v487
  %3172 = vmatpush1.msra.mxu0 %v486
  %3173 = vmatprep.subr.mxu0 %v491
  %3174 = vmatpush1.msra.mxu0 %v490
  %3175 = vmatprep.subr.mxu0 %v495
  %3176 = vmatpush1.msra.mxu0 %v494
  %3177 = vmatprep.subr.mxu0 %v499
  %3178 = vmatpush1.msra.mxu0 %v498
  %3179 = vmatprep.mubr.f32.mxu0 %v2873
  %3180 = vmatmul.mubr.f32.gmra.mrb[0].mxu0 %v3043
  %v3181 = vpop.f32.mrb[0].mxu0
  %v3182 = vadd.f32 %v683, %v3181
  %v3183 = vpop.f32.mrb[0].mxu0
  %v3184 = vadd.f32 %v687, %v3183
  %3185 = vdwg.mxu0
  %v3186 = vxor.u32 %v3111, 2147483648
  %v3187 = vmul.f32 %v3186, 1.442695
  %v3188 = vpow.pop %v3187
  %v3189 = vadd.f32 %v3188, 1.0
  %v3190 = vrcp.pop %v3189
  %v3191 = vmul.f32 1.0, %v3190
  %v3192 = vxor.u32 %v3113, 2147483648
  %v3193 = vmul.f32 %v3192, 1.442695
  %v3194 = vpow.pop %v3193
  %v3195 = vadd.f32 %v3194, 1.0
  %v3196 = vrcp.pop %v3195
  %v3197 = vmul.f32 1.0, %v3196
  %v3198 = vtanh.pop %v3182
  %v3199 = vxor.u32 %v3184, 2147483648
  %v3200 = vmul.f32 %v3199, 1.442695
  %v3201 = vpow.pop %v3200
  %v3202 = vadd.f32 %v3201, 1.0
  %v3203 = vrcp.pop %v3202
  %v3204 = vmul.f32 1.0, %v3203
  %v3205 = vmul.f32 %v3197, %v2871
  %v3206 = vmul.f32 %v3191, %v3198
  %v3207 = vadd.f32 %v3205, %v3206
  %v3208 = vtanh.pop %v3207
  %v3209 = vmul.f32 %v3204, %v3208
  %3210 = vst [vmem:[%s6] sm:$0xff] %v3209
  // Predicated region
  $region26: #{stock_lstm_forward.1} parent=0 // pred_check
    _
  $region27: #{stock_lstm_forward.1} parent=0 // pred_check_branch
    %3212 = sbr.rel (0) target = $region29
  $region28: #{stock_lstm_forward.1} parent=0 // pred_region
    _
  $region29: #{stock_lstm_forward.1} parent=0 // pred_fallthru
    _
  // Predicated region
  $region30: #{stock_lstm_forward.1} parent=0 // pred_check
    _
  $region31: #{stock_lstm_forward.1} parent=0 // pred_check_branch
    %3214 = sbr.rel (0) target = $region33
  $region32: #{stock_lstm_forward.1} parent=0 // pred_region
    _
  $region33: #{stock_lstm_forward.1} parent=0 // pred_fallthru
    _

</llo_original>
